<compile_context>
chip_gen: v7x
topology: tpu7x:2x2x1
jax: 0.10.0
libtpu: 0.0.40
codegen_flags: <defaults>
</compile_context>

<pallas_src>
import functools

import numpy as np
import jax
import jax.numpy as jnp
from jax import lax
from jax.experimental import pallas as pl
from jax.experimental.pallas import tpu as pltpu

_EPS = 1e-5


# --------------------------------------------------------------------------
# kernels
# --------------------------------------------------------------------------
def _conv1x1_stats_kernel(x_ref, w_ref, o_ref, psum_ref, psumsq_ref):
    """o = x @ w (stored in compute dtype); f32 partial stats for the next BN."""
    h = jnp.dot(x_ref[...].astype(w_ref.dtype), w_ref[...],
                preferred_element_type=jnp.float32)
    o_ref[...] = h.astype(o_ref.dtype)
    psum_ref[...] = jnp.sum(h, axis=0).reshape(1, 1, -1)
    psumsq_ref[...] = jnp.sum(h * h, axis=0).reshape(1, 1, -1)


def _bn_relu_conv1x1_stats_kernel(y_ref, scale_ref, shift_ref, w_ref,
                                  o_ref, psum_ref, psumsq_ref):
    """o = relu(y*scale + shift) @ w ; f32 partial stats of o."""
    a = jnp.maximum(y_ref[...].astype(jnp.float32) * scale_ref[...]
                    + shift_ref[...], 0.0)
    h = jnp.dot(a.astype(w_ref.dtype), w_ref[...],
                preferred_element_type=jnp.float32)
    o_ref[...] = h.astype(o_ref.dtype)
    psum_ref[...] = jnp.sum(h, axis=0).reshape(1, 1, -1)
    psumsq_ref[...] = jnp.sum(h * h, axis=0).reshape(1, 1, -1)


def _bn_relu_gconv3x3_stats_kernel(y_ref, scale_ref, shift_ref, w2_ref,
                                   o_ref, psum_ref, psumsq_ref,
                                   pad_ref, acc_ref):
    """Grouped 3x3 conv (stride 1, pad 1) on one image, fused with the previous
    stage's BN affine + ReLU; emits f32 partial BN stats of its own output.

    pad_ref : (3, H+2, W, C1) compute-dtype scratch.  Variant dx holds the
              image shifted by (dx-1) along W with zero rows top/bottom, so the
              9 conv taps are plain outer-dim (H) slices inside the MXU loop.
    acc_ref : (H*W, C1) f32 VMEM accumulator (bounds vreg live ranges under
              the 9 unrolled matmuls).
    """
    _, H, W, C1 = y_ref.shape
    f32 = jnp.float32

    # Fused BN affine + ReLU of the previous stage, in f32.
    h = jnp.maximum(y_ref[0].astype(f32) * scale_ref[...] + shift_ref[...], 0.0)

    zrow = jnp.zeros((1, W, C1), pad_ref.dtype)
    zcol = jnp.zeros((H, 1, C1), f32)

    def put(d, img):
        pad_ref[d, 0:1, :, :] = zrow
        pad_ref[d, H + 1:H + 2, :, :] = zrow
        pad_ref[d, 1:H + 1, :, :] = img.astype(pad_ref.dtype)

    put(0, jnp.concatenate([zcol, h[:, :W - 1, :]], axis=1))   # dx = 0 (left)
    put(1, h)                                                  # dx = 1 (center)
    put(2, jnp.concatenate([h[:, 1:, :], zcol], axis=1))       # dx = 2 (right)

    # 9 spatially-shifted taps against block-diagonal (group-structured)
    # per-tap weights, accumulated in a VMEM f32 scratch.
    # TODO(synk): for group width >= 128 switch to compact per-group weights
    # (9, G, gw, gw) and per-group matmuls; below that the dense block-diagonal
    # matmul is cheaper in MXU passes despite the structural zeros.
    # TODO(synk): for very large C1 move the tap index onto an 'arbitrary' grid
    # axis so only one (C1, C1) tap weight is VMEM-resident at a time.
    for t in range(9):
        dy, dx = t // 3, t % 3
        tap = pad_ref[dx, dy:dy + H, :, :].reshape(H * W, C1)
        contrib = jnp.dot(tap.astype(w2_ref.dtype), w2_ref[t],
                          preferred_element_type=jnp.float32)
        if t == 0:
            acc_ref[...] = contrib
        else:
            acc_ref[...] += contrib

    acc = acc_ref[...]
    o_ref[...] = acc.reshape(1, H, W, C1).astype(o_ref.dtype)
    psum_ref[...] = jnp.sum(acc, axis=0).reshape(1, 1, -1)
    psumsq_ref[...] = jnp.sum(acc * acc, axis=0).reshape(1, 1, -1)


def _bn_residual_relu_kernel(y_ref, x_ref, scale_ref, shift_ref, o_ref):
    """o = relu(y*scale + shift + identity), math in f32."""
    o_ref[...] = jnp.maximum(
        y_ref[...].astype(jnp.float32) * scale_ref[...] + shift_ref[...]
        + x_ref[...].astype(jnp.float32), 0.0).astype(o_ref.dtype)


# --------------------------------------------------------------------------
# wrapper helpers
# --------------------------------------------------------------------------
def _pick_row_tile(m, row_tile):
    if row_tile is not None:
        assert m % row_tile == 0, "row_tile must divide N*H*W"
        return row_tile
    # Default cap of 512 rows keeps double-buffered tiles well inside v7x's
    # 64 MiB VMEM; on v5e/v6e (128 MiB VMEM, lower HBM BW) pass row_tile=1024+
    # (multiple of 128/256) to amortize per-step overhead further.
    for t in (512, 256, 128, 64, 32, 16, 8):
        if m % t == 0:
            return t
    return m


def _compiler_params(buffer_bytes, weight_bytes=0, scratch_bytes=0):
    # Explicit scoped-VMEM budget: double-buffered in/out tiles + weights +
    # scratch, with 2x margin and a 16 MiB floor (>= every chip's default),
    # capped at v7x's 64 MiB physical VMEM.
    est = 2 * buffer_bytes + 2 * weight_bytes + scratch_bytes
    limit = int(min(2 * est + (16 << 20), 64 << 20))
    return pltpu.CompilerParams(dimension_semantics=("parallel",),
                                vmem_limit_bytes=limit)


def _bn_scale_shift(psum, psumsq, count, gamma, beta):
    # Single-pass statistics: biased var = E[h^2] - E[h]^2 (training-mode
    # BatchNorm2d), clamped at 0 against cancellation noise.  Stats are on the
    # bias-free h (conv bias cancels inside BN).
    s = jnp.sum(psum, axis=0)        # (1, C)
    ss = jnp.sum(psumsq, axis=0)     # (1, C)
    mean = s / count
    var = jnp.maximum(ss / count - mean * mean, 0.0)
    scale = gamma * lax.rsqrt(var + _EPS)
    shift = beta - mean * scale
    return scale, shift


# --------------------------------------------------------------------------
# forward
# --------------------------------------------------------------------------
def _forward_nhwc(x, params, compute_dtype, row_tile):
    """x: (N, H, W, Cin) -> (N, H, W, Cin) f32.  stride=1, no downsample."""
    N, H, W, Cin = x.shape
    cdt = jnp.dtype(compute_dtype)
    csz = cdt.itemsize
    f32 = jnp.float32

    w1 = params["w1"].astype(cdt)            # (Cin, C1)
    w2 = params["w2"].astype(cdt)            # (9, C1, C1) block-diag groups
    w3 = params["w3"].astype(cdt)            # (C1, C2)
    C1, C2 = w1.shape[1], w3.shape[1]
    assert C2 == Cin, "residual add requires in_channels == 2*cardinality*width"

    M = N * H * W
    tm = _pick_row_tile(M, row_tile)
    T = M // tm

    x_flat = x.reshape(M, Cin).astype(cdt)

    # ---- stage 1: 1x1 conv + BN1 partial stats ------------------------------
    y1, s1, ss1 = pl.pallas_call(
        _conv1x1_stats_kernel,
        grid=(T,),
        in_specs=[pl.BlockSpec((tm, Cin), lambda i: (i, 0)),
                  pl.BlockSpec((Cin, C1), lambda i: (0, 0))],
        out_specs=(pl.BlockSpec((tm, C1), lambda i: (i, 0)),
                   pl.BlockSpec((1, 1, C1), lambda i: (i, 0, 0)),
                   pl.BlockSpec((1, 1, C1), lambda i: (i, 0, 0))),
        out_shape=(jax.ShapeDtypeStruct((M, C1), cdt),
                   jax.ShapeDtypeStruct((T, 1, C1), f32),
                   jax.ShapeDtypeStruct((T, 1, C1), f32)),
        compiler_params=_compiler_params(
            buffer_bytes=csz * tm * (Cin + C1), weight_bytes=csz * Cin * C1),
        cost_estimate=pl.CostEstimate(
            flops=2 * M * Cin * C1, transcendentals=0,
            bytes_accessed=csz * M * (Cin + C1) + csz * Cin * C1),
    )(x_flat, w1)
    scale1, shift1 = _bn_scale_shift(s1, ss1, M, params["g1"], params["be1"])

    # ---- stage 2: BN1 affine + ReLU + grouped 3x3 conv + BN2 partial stats ---
    # One image per grid step; 1-row halo handled by an H-padded VMEM scratch.
    # TODO(synk): tile over H row-bands (1-row halo) as a second parallel grid
    # axis for large images / to fill both v7x TensorCores at small batch.
    y2, s2, ss2 = pl.pallas_call(
        _bn_relu_gconv3x3_stats_kernel,
        grid=(N,),
        in_specs=[pl.BlockSpec((1, H, W, C1), lambda n: (n, 0, 0, 0)),
                  pl.BlockSpec((1, C1), lambda n: (0, 0)),
                  pl.BlockSpec((1, C1), lambda n: (0, 0)),
                  pl.BlockSpec((9, C1, C1), lambda n: (0, 0, 0))],
        out_specs=(pl.BlockSpec((1, H, W, C1), lambda n: (n, 0, 0, 0)),
                   pl.BlockSpec((1, 1, C1), lambda n: (n, 0, 0)),
                   pl.BlockSpec((1, 1, C1), lambda n: (n, 0, 0))),
        out_shape=(jax.ShapeDtypeStruct((N, H, W, C1), cdt),
                   jax.ShapeDtypeStruct((N, 1, C1), f32),
                   jax.ShapeDtypeStruct((N, 1, C1), f32)),
        scratch_shapes=[pltpu.VMEM((3, H + 2, W, C1), cdt),
                        pltpu.VMEM((H * W, C1), f32)],
        compiler_params=_compiler_params(
            buffer_bytes=2 * csz * H * W * C1,
            weight_bytes=csz * 9 * C1 * C1,
            scratch_bytes=csz * 3 * (H + 2) * W * C1 + 4 * H * W * C1),
        cost_estimate=pl.CostEstimate(
            flops=2 * M * 9 * C1 * C1, transcendentals=0,
            bytes_accessed=2 * csz * M * C1 + csz * 9 * C1 * C1),
    )(y1.reshape(N, H, W, C1), scale1, shift1, w2)
    scale2, shift2 = _bn_scale_shift(s2, ss2, M, params["g2"], params["be2"])

    # ---- stage 3: BN2 affine + ReLU + 1x1 conv + BN3 partial stats -----------
    y3, s3, ss3 = pl.pallas_call(
        _bn_relu_conv1x1_stats_kernel,
        grid=(T,),
        in_specs=[pl.BlockSpec((tm, C1), lambda i: (i, 0)),
                  pl.BlockSpec((1, C1), lambda i: (0, 0)),
                  pl.BlockSpec((1, C1), lambda i: (0, 0)),
                  pl.BlockSpec((C1, C2), lambda i: (0, 0))],
        out_specs=(pl.BlockSpec((tm, C2), lambda i: (i, 0)),
                   pl.BlockSpec((1, 1, C2), lambda i: (i, 0, 0)),
                   pl.BlockSpec((1, 1, C2), lambda i: (i, 0, 0))),
        out_shape=(jax.ShapeDtypeStruct((M, C2), cdt),
                   jax.ShapeDtypeStruct((T, 1, C2), f32),
                   jax.ShapeDtypeStruct((T, 1, C2), f32)),
        compiler_params=_compiler_params(
            buffer_bytes=csz * tm * (C1 + C2), weight_bytes=csz * C1 * C2),
        cost_estimate=pl.CostEstimate(
            flops=2 * M * C1 * C2, transcendentals=0,
            bytes_accessed=csz * M * (C1 + C2) + csz * C1 * C2),
    )(y2.reshape(M, C1), scale2, shift2, w3)
    scale3, shift3 = _bn_scale_shift(s3, ss3, M, params["g3"], params["be3"])

    # ---- stage 4: BN3 affine + residual add + ReLU ---------------------------
    out_flat = pl.pallas_call(
        _bn_residual_relu_kernel,
        grid=(T,),
        in_specs=[pl.BlockSpec((tm, C2), lambda i: (i, 0)),
                  pl.BlockSpec((tm, C2), lambda i: (i, 0)),
                  pl.BlockSpec((1, C2), lambda i: (0, 0)),
                  pl.BlockSpec((1, C2), lambda i: (0, 0))],
        out_specs=pl.BlockSpec((tm, C2), lambda i: (i, 0)),
        out_shape=jax.ShapeDtypeStruct((M, C2), f32),
        compiler_params=_compiler_params(
            buffer_bytes=2 * csz * tm * C2 + 4 * tm * C2),
        cost_estimate=pl.CostEstimate(
            flops=3 * M * C2, transcendentals=0,
            bytes_accessed=2 * csz * M * C2 + 4 * M * C2),
    )(y3, x_flat, scale3, shift3)

    return out_flat.reshape(N, H, W, C2)


@functools.partial(jax.jit, static_argnames=("compute_dtype", "row_tile"))
def resnext_block_forward_nhwc(x_nhwc, params, compute_dtype=jnp.bfloat16,
                               row_tile=None):
    """NHWC entry point (no boundary transposes)."""
    return _forward_nhwc(x_nhwc, params, compute_dtype, row_tile)


@functools.partial(jax.jit, static_argnames=("compute_dtype", "row_tile"))
def resnext_block_forward(x_nchw, params, compute_dtype=jnp.bfloat16,
                          row_tile=None):
    """x_nchw: (N, Cin, H, W) -> (N, Cin, H, W) f32 (stride=1, no downsample)."""
    # TODO(synk): in a real network keep the surrounding graph NHWC end-to-end
    # (use resnext_block_forward_nhwc) to skip these two full-HBM transposes;
    # here the f32->compute_dtype cast is at least fused into the entry copy.
    cdt = jnp.dtype(compute_dtype)
    x = jnp.transpose(x_nchw, (0, 2, 3, 1)).astype(cdt)           # NHWC
    out = _forward_nhwc(x, params, compute_dtype, row_tile)
    return jnp.transpose(out, (0, 3, 1, 2))                       # NCHW


# --------------------------------------------------------------------------
# parameters & pure-JAX reference
# --------------------------------------------------------------------------
def init_params(key, in_channels, cardinality, bottleneck_width):
    """Deterministic synthetic parameters matching nn.Conv2d/BatchNorm2d shapes."""
    C1 = cardinality * bottleneck_width
    C2 = 2 * C1                                   # expansion = 2
    assert C2 == in_channels, "residual add requires in_channels == 2*C1"
    ks = jax.random.split(key, 9)
    w1_t = jax.random.normal(ks[0], (C1, in_channels, 1, 1), jnp.float32) * 0.1
    b1 = jax.random.normal(ks[1], (C1,), jnp.float32) * 0.1
    w2_t = jax.random.normal(ks[2], (C1, C1 // cardinality, 3, 3), jnp.float32) * 0.1
    b2 = jax.random.normal(ks[3], (C1,), jnp.float32) * 0.1
    w3_t = jax.random.normal(ks[4], (C2, C1, 1, 1), jnp.float32) * 0.1
    b3 = jax.random.normal(ks[5], (C2,), jnp.float32) * 0.1
    g1 = 1.0 + 0.1 * jax.random.normal(ks[6], (C1,), jnp.float32)
    g2 = 1.0 + 0.1 * jax.random.normal(ks[7], (C1,), jnp.float32)
    g3 = 1.0 + 0.1 * jax.random.normal(ks[8], (C2,), jnp.float32)
    be1 = jnp.full((C1,), 0.05, jnp.float32)
    be2 = jnp.full((C1,), -0.05, jnp.float32)
    be3 = jnp.full((C2,), 0.02, jnp.float32)

    # matmul-form weights for the kernels
    w1 = jnp.transpose(w1_t[:, :, 0, 0])          # (Cin, C1)
    w3 = jnp.transpose(w3_t[:, :, 0, 0])          # (C1, C2)

    # block-diagonal per-tap weights (9, C1_in, C1_out) encoding the groups
    gw = C1 // cardinality
    w2_full = np.zeros((9, C1, C1), np.float32)
    w2_np = np.asarray(w2_t)
    for o in range(C1):
        g = o // gw
        for j in range(gw):
            w2_full[:, g * gw + j, o] = w2_np[o, j].reshape(9)

    # Conv biases b1/b2/b3 are deliberately absent from kernel_params: a bias
    # immediately followed by BatchNorm cancels exactly (BN(h+b) == BN(h)).
    kernel_params = dict(
        w1=w1, g1=g1.reshape(1, -1), be1=be1.reshape(1, -1),
        w2=jnp.asarray(w2_full), g2=g2.reshape(1, -1), be2=be2.reshape(1, -1),
        w3=w3, g3=g3.reshape(1, -1), be3=be3.reshape(1, -1),
    )
    torch_params = dict(w1_t=w1_t, b1=b1, w2_t=w2_t, b2=b2, w3_t=w3_t, b3=b3,
                        g1=g1, be1=be1, g2=g2, be2=be2, g3=g3, be3=be3)
    return kernel_params, torch_params


def ref_forward(x_nchw, tp, cardinality):
    """Pure-JAX NCHW reference mirroring the PyTorch module (biases included)."""
    def bn(h, g, b):
        mean = jnp.mean(h, axis=(0, 2, 3), keepdims=True)
        var = jnp.mean((h - mean) ** 2, axis=(0, 2, 3), keepdims=True)
        return (h - mean) / jnp.sqrt(var + _EPS) * g.reshape(1, -1, 1, 1) \
            + b.reshape(1, -1, 1, 1)

    dn = ("NCHW", "OIHW", "NCHW")
    h = lax.conv_general_dilated(x_nchw, tp["w1_t"], (1, 1), "VALID",
                                 dimension_numbers=dn) + tp["b1"].reshape(1, -1, 1, 1)
    h = jax.nn.relu(bn(h, tp["g1"], tp["be1"]))
    h = lax.conv_general_dilated(h, tp["w2_t"], (1, 1), ((1, 1), (1, 1)),
                                 dimension_numbers=dn,
                                 feature_group_count=cardinality) + tp["b2"].reshape(1, -1, 1, 1)
    h = jax.nn.relu(bn(h, tp["g2"], tp["be2"]))
    h = lax.conv_general_dilated(h, tp["w3_t"], (1, 1), "VALID",
                                 dimension_numbers=dn) + tp["b3"].reshape(1, -1, 1, 1)
    h = bn(h, tp["g3"], tp["be3"])
    return jax.nn.relu(h + x_nchw)


# --------------------------------------------------------------------------
if __name__ == "__main__":
    # Small shapes: in_channels=16, cardinality=2, bottleneck_width=4
    # => C1=8, C2=16 (residual add works), stride=1.
    N, Cin, H, W = 2, 16, 8, 8
    cardinality, bottleneck_width = 2, 4

    key = jax.random.PRNGKey(0)
    kx, kp = jax.random.split(key)
    x = jax.random.normal(kx, (N, Cin, H, W), jnp.float32)
    kernel_params, torch_params = init_params(kp, Cin, cardinality, bottleneck_width)

    ref = jax.block_until_ready(ref_forward(x, torch_params, cardinality))

    # f32 compute path (f32 MXU + f32 intermediates): strict check.
    # row_tile=32 -> 4 pipelined grid steps at this toy size.
    out_f32 = jax.block_until_ready(
        resnext_block_forward(x, kernel_params, compute_dtype=jnp.float32,
                              row_tile=32))
    np.testing.assert_allclose(np.asarray(out_f32), np.asarray(ref),
                               rtol=1e-3, atol=1e-3)

    # bf16 fast path (bf16 MXU operands + bf16 inter-stage activations,
    # f32 stats / BN math): looser tolerance.
    out_bf16 = jax.block_until_ready(
        resnext_block_forward(x, kernel_params, compute_dtype=jnp.bfloat16,
                              row_tile=32))
    np.testing.assert_allclose(np.asarray(out_bf16), np.asarray(ref),
                               rtol=1.5e-1, atol=1.5e-1)

    print("KERNEL_OK")
</pallas_src>

<mosaic_0001>
module attributes {stable_mosaic.version = 11 : i64} {
  func.func @_bn_relu_conv1x1_stats_kernel(%arg0: i32, %arg1: memref<32x8xf32, #tpu.memory_space<vmem>>, %arg2: memref<1x8xf32, #tpu.memory_space<vmem>>, %arg3: memref<1x8xf32, #tpu.memory_space<vmem>>, %arg4: memref<8x16xf32, #tpu.memory_space<vmem>>, %arg5: memref<32x16xf32, #tpu.memory_space<vmem>>, %arg6: memref<1x1x16xf32, #tpu.memory_space<vmem>>, %arg7: memref<1x1x16xf32, #tpu.memory_space<vmem>>) attributes {dimension_semantics = [#tpu.dimension_semantics<parallel>], iteration_bounds = array<i64: 4>, scalar_prefetch = 0 : i64, scratch_operands = 0 : i64, tpu.core_type = #tpu.core_type<tc>, window_params = [{transform_indices = @transform_0, window_bounds = array<i64: 32, 8>}, {pipeline_mode = #tpu.pipeline_mode<synchronous>, transform_indices = @transform_1, window_bounds = array<i64: 1, 8>}, {pipeline_mode = #tpu.pipeline_mode<synchronous>, transform_indices = @transform_2, window_bounds = array<i64: 1, 8>}, {pipeline_mode = #tpu.pipeline_mode<synchronous>, transform_indices = @transform_3, window_bounds = array<i64: 8, 16>}, {transform_indices = @transform_4, window_bounds = array<i64: 32, 16>}, {transform_indices = @transform_5, window_bounds = array<i64: 1, 1, 16>}, {transform_indices = @transform_6, window_bounds = array<i64: 1, 1, 16>}]} {
    %c0 = arith.constant 0 : index
    %c0_0 = arith.constant 0 : index
    %0 = vector.load %arg1[%c0, %c0_0] : memref<32x8xf32, #tpu.memory_space<vmem>>, vector<32x8xf32>
    %c0_1 = arith.constant 0 : index
    %c0_2 = arith.constant 0 : index
    %1 = vector.load %arg2[%c0_1, %c0_2] : memref<1x8xf32, #tpu.memory_space<vmem>>, vector<1x8xf32>
    %2 = vector.broadcast %1 : vector<1x8xf32> to vector<32x8xf32>
    %3 = arith.mulf %0, %2 : vector<32x8xf32>
    %c0_3 = arith.constant 0 : index
    %c0_4 = arith.constant 0 : index
    %4 = vector.load %arg3[%c0_3, %c0_4] : memref<1x8xf32, #tpu.memory_space<vmem>>, vector<1x8xf32>
    %5 = vector.broadcast %4 : vector<1x8xf32> to vector<32x8xf32>
    %6 = arith.addf %3, %5 : vector<32x8xf32>
    %cst = arith.constant 0.000000e+00 : f32
    %7 = vector.broadcast %cst : f32 to vector<32x8xf32>
    %8 = arith.maximumf %6, %7 : vector<32x8xf32>
    %c0_5 = arith.constant 0 : index
    %c0_6 = arith.constant 0 : index
    %9 = vector.load %arg4[%c0_5, %c0_6] : memref<8x16xf32, #tpu.memory_space<vmem>>, vector<8x16xf32>
    %cst_7 = arith.constant dense<0.000000e+00> : vector<32x16xf32>
    %10 = tpu.matmul %8, %9, %cst_7 {dimension_numbers = #tpu.dot_dimension_numbers<[1], [0], [0], [1], [0, 0, 1, 1], [], []>} : vector<32x8xf32>, vector<8x16xf32>, vector<32x16xf32> -> vector<32x16xf32>
    %c0_8 = arith.constant 0 : index
    %c0_9 = arith.constant 0 : index
    %11 = vector.load %arg5[%c0_8, %c0_9] : memref<32x16xf32, #tpu.memory_space<vmem>>, vector<32x16xf32>
    tpu.vector_store %arg5[%c0_8, %c0_9], %10 {strides = array<i32>} : memref<32x16xf32, #tpu.memory_space<vmem>>, vector<32x16xf32>,
    %cst_10 = arith.constant dense<0.000000e+00> : vector<16xf32>
    %12 = vector.multi_reduction <add>, %10, %cst_10 [0] : vector<32x16xf32> to vector<16xf32>
    %13 = vector.shape_cast %12 : vector<16xf32> to vector<1x1x16xf32>
    %c0_11 = arith.constant 0 : index
    %c0_12 = arith.constant 0 : index
    %c0_13 = arith.constant 0 : index
    %14 = vector.load %arg6[%c0_11, %c0_12, %c0_13] : memref<1x1x16xf32, #tpu.memory_space<vmem>>, vector<1x1x16xf32>
    tpu.vector_store %arg6[%c0_11, %c0_12, %c0_13], %13 {strides = array<i32>} : memref<1x1x16xf32, #tpu.memory_space<vmem>>, vector<1x1x16xf32>,
    %15 = arith.mulf %10, %10 : vector<32x16xf32>
    %cst_14 = arith.constant dense<0.000000e+00> : vector<16xf32>
    %16 = vector.multi_reduction <add>, %15, %cst_14 [0] : vector<32x16xf32> to vector<16xf32>
    %17 = vector.shape_cast %16 : vector<16xf32> to vector<1x1x16xf32>
    %c0_15 = arith.constant 0 : index
    %c0_16 = arith.constant 0 : index
    %c0_17 = arith.constant 0 : index
    %18 = vector.load %arg7[%c0_15, %c0_16, %c0_17] : memref<1x1x16xf32, #tpu.memory_space<vmem>>, vector<1x1x16xf32>
    tpu.vector_store %arg7[%c0_15, %c0_16, %c0_17], %17 {strides = array<i32>} : memref<1x1x16xf32, #tpu.memory_space<vmem>>, vector<1x1x16xf32>,
    return
  }
  func.func @transform_0(%arg0: i32) -> (i32, i32) {
    %c0_i32 = arith.constant 0 : i32
    %c0_i32_0 = arith.constant 0 : i32
    return %arg0, %c0_i32 : i32, i32
  }
  func.func @transform_1(%arg0: i32) -> (i32, i32) {
    %c0_i32 = arith.constant 0 : i32
    %c0_i32_0 = arith.constant 0 : i32
    %c0_i32_1 = arith.constant 0 : i32
    return %c0_i32, %c0_i32_0 : i32, i32
  }
  func.func @transform_2(%arg0: i32) -> (i32, i32) {
    %c0_i32 = arith.constant 0 : i32
    %c0_i32_0 = arith.constant 0 : i32
    %c0_i32_1 = arith.constant 0 : i32
    return %c0_i32, %c0_i32_0 : i32, i32
  }
  func.func @transform_3(%arg0: i32) -> (i32, i32) {
    %c0_i32 = arith.constant 0 : i32
    %c0_i32_0 = arith.constant 0 : i32
    %c0_i32_1 = arith.constant 0 : i32
    return %c0_i32, %c0_i32_0 : i32, i32
  }
  func.func @transform_4(%arg0: i32) -> (i32, i32) {
    %c0_i32 = arith.constant 0 : i32
    %c0_i32_0 = arith.constant 0 : i32
    return %arg0, %c0_i32 : i32, i32
  }
  func.func @transform_5(%arg0: i32) -> (i32, i32, i32) {
    %c0_i32 = arith.constant 0 : i32
    %c0_i32_0 = arith.constant 0 : i32
    %c0_i32_1 = arith.constant 0 : i32
    return %arg0, %c0_i32, %c0_i32_0 : i32, i32, i32
  }
  func.func @transform_6(%arg0: i32) -> (i32, i32, i32) {
    %c0_i32 = arith.constant 0 : i32
    %c0_i32_0 = arith.constant 0 : i32
    %c0_i32_1 = arith.constant 0 : i32
    return %arg0, %c0_i32, %c0_i32_0 : i32, i32, i32
  }
}

module attributes {stable_mosaic.version = 11 : i64} {
  func.func @_conv1x1_stats_kernel(%arg0: i32, %arg1: memref<32x16xf32, #tpu.memory_space<vmem>>, %arg2: memref<16x8xf32, #tpu.memory_space<vmem>>, %arg3: memref<32x8xf32, #tpu.memory_space<vmem>>, %arg4: memref<1x1x8xf32, #tpu.memory_space<vmem>>, %arg5: memref<1x1x8xf32, #tpu.memory_space<vmem>>) attributes {dimension_semantics = [#tpu.dimension_semantics<parallel>], iteration_bounds = array<i64: 4>, scalar_prefetch = 0 : i64, scratch_operands = 0 : i64, tpu.core_type = #tpu.core_type<tc>, window_params = [{transform_indices = @transform_0, window_bounds = array<i64: 32, 16>}, {pipeline_mode = #tpu.pipeline_mode<synchronous>, transform_indices = @transform_1, window_bounds = array<i64: 16, 8>}, {transform_indices = @transform_2, window_bounds = array<i64: 32, 8>}, {transform_indices = @transform_3, window_bounds = array<i64: 1, 1, 8>}, {transform_indices = @transform_4, window_bounds = array<i64: 1, 1, 8>}]} {
    %c0 = arith.constant 0 : index
    %c0_0 = arith.constant 0 : index
    %0 = vector.load %arg1[%c0, %c0_0] : memref<32x16xf32, #tpu.memory_space<vmem>>, vector<32x16xf32>
    %c0_1 = arith.constant 0 : index
    %c0_2 = arith.constant 0 : index
    %1 = vector.load %arg2[%c0_1, %c0_2] : memref<16x8xf32, #tpu.memory_space<vmem>>, vector<16x8xf32>
    %cst = arith.constant dense<0.000000e+00> : vector<32x8xf32>
    %2 = tpu.matmul %0, %1, %cst {dimension_numbers = #tpu.dot_dimension_numbers<[1], [0], [0], [1], [0, 0, 1, 1], [], []>} : vector<32x16xf32>, vector<16x8xf32>, vector<32x8xf32> -> vector<32x8xf32>
    %c0_3 = arith.constant 0 : index
    %c0_4 = arith.constant 0 : index
    %3 = vector.load %arg3[%c0_3, %c0_4] : memref<32x8xf32, #tpu.memory_space<vmem>>, vector<32x8xf32>
    tpu.vector_store %arg3[%c0_3, %c0_4], %2 {strides = array<i32>} : memref<32x8xf32, #tpu.memory_space<vmem>>, vector<32x8xf32>,
    %cst_5 = arith.constant dense<0.000000e+00> : vector<8xf32>
    %4 = vector.multi_reduction <add>, %2, %cst_5 [0] : vector<32x8xf32> to vector<8xf32>
    %5 = vector.shape_cast %4 : vector<8xf32> to vector<1x1x8xf32>
    %c0_6 = arith.constant 0 : index
    %c0_7 = arith.constant 0 : index
    %c0_8 = arith.constant 0 : index
    %6 = vector.load %arg4[%c0_6, %c0_7, %c0_8] : memref<1x1x8xf32, #tpu.memory_space<vmem>>, vector<1x1x8xf32>
    tpu.vector_store %arg4[%c0_6, %c0_7, %c0_8], %5 {strides = array<i32>} : memref<1x1x8xf32, #tpu.memory_space<vmem>>, vector<1x1x8xf32>,
    %7 = arith.mulf %2, %2 : vector<32x8xf32>
    %cst_9 = arith.constant dense<0.000000e+00> : vector<8xf32>
    %8 = vector.multi_reduction <add>, %7, %cst_9 [0] : vector<32x8xf32> to vector<8xf32>
    %9 = vector.shape_cast %8 : vector<8xf32> to vector<1x1x8xf32>
    %c0_10 = arith.constant 0 : index
    %c0_11 = arith.constant 0 : index
    %c0_12 = arith.constant 0 : index
    %10 = vector.load %arg5[%c0_10, %c0_11, %c0_12] : memref<1x1x8xf32, #tpu.memory_space<vmem>>, vector<1x1x8xf32>
    tpu.vector_store %arg5[%c0_10, %c0_11, %c0_12], %9 {strides = array<i32>} : memref<1x1x8xf32, #tpu.memory_space<vmem>>, vector<1x1x8xf32>,
    return
  }
  func.func @transform_0(%arg0: i32) -> (i32, i32) {
    %c0_i32 = arith.constant 0 : i32
    %c0_i32_0 = arith.constant 0 : i32
    return %arg0, %c0_i32 : i32, i32
  }
  func.func @transform_1(%arg0: i32) -> (i32, i32) {
    %c0_i32 = arith.constant 0 : i32
    %c0_i32_0 = arith.constant 0 : i32
    %c0_i32_1 = arith.constant 0 : i32
    return %c0_i32, %c0_i32_0 : i32, i32
  }
  func.func @transform_2(%arg0: i32) -> (i32, i32) {
    %c0_i32 = arith.constant 0 : i32
    %c0_i32_0 = arith.constant 0 : i32
    return %arg0, %c0_i32 : i32, i32
  }
  func.func @transform_3(%arg0: i32) -> (i32, i32, i32) {
    %c0_i32 = arith.constant 0 : i32
    %c0_i32_0 = arith.constant 0 : i32
    %c0_i32_1 = arith.constant 0 : i32
    return %arg0, %c0_i32, %c0_i32_0 : i32, i32, i32
  }
  func.func @transform_4(%arg0: i32) -> (i32, i32, i32) {
    %c0_i32 = arith.constant 0 : i32
    %c0_i32_0 = arith.constant 0 : i32
    %c0_i32_1 = arith.constant 0 : i32
    return %arg0, %c0_i32, %c0_i32_0 : i32, i32, i32
  }
}

module attributes {stable_mosaic.version = 11 : i64} {
  func.func @_bn_relu_gconv3x3_stats_kernel(%arg0: i32, %arg1: memref<1x8x8x8xf32, #tpu.memory_space<vmem>>, %arg2: memref<1x8xf32, #tpu.memory_space<vmem>>, %arg3: memref<1x8xf32, #tpu.memory_space<vmem>>, %arg4: memref<9x8x8xf32, #tpu.memory_space<vmem>>, %arg5: memref<1x8x8x8xf32, #tpu.memory_space<vmem>>, %arg6: memref<1x1x8xf32, #tpu.memory_space<vmem>>, %arg7: memref<1x1x8xf32, #tpu.memory_space<vmem>>, %arg8: memref<3x10x8x8xf32, #tpu.memory_space<vmem>>, %arg9: memref<64x8xf32, #tpu.memory_space<vmem>>) attributes {dimension_semantics = [#tpu.dimension_semantics<parallel>], iteration_bounds = array<i64: 2>, scalar_prefetch = 0 : i64, scratch_operands = 2 : i64, tpu.core_type = #tpu.core_type<tc>, window_params = [{transform_indices = @transform_0, window_bounds = array<i64: 1, 8, 8, 8>}, {pipeline_mode = #tpu.pipeline_mode<synchronous>, transform_indices = @transform_1, window_bounds = array<i64: 1, 8>}, {pipeline_mode = #tpu.pipeline_mode<synchronous>, transform_indices = @transform_2, window_bounds = array<i64: 1, 8>}, {pipeline_mode = #tpu.pipeline_mode<synchronous>, transform_indices = @transform_3, window_bounds = array<i64: 9, 8, 8>}, {transform_indices = @transform_4, window_bounds = array<i64: 1, 8, 8, 8>}, {transform_indices = @transform_5, window_bounds = array<i64: 1, 1, 8>}, {transform_indices = @transform_6, window_bounds = array<i64: 1, 1, 8>}]} {
    %c0 = arith.constant 0 : index
    %c0_0 = arith.constant 0 : index
    %c0_1 = arith.constant 0 : index
    %c0_2 = arith.constant 0 : index
    %0 = vector.load %arg1[%c0, %c0_0, %c0_1, %c0_2] : memref<1x8x8x8xf32, #tpu.memory_space<vmem>>, vector<1x8x8x8xf32>
    %1 = vector.shape_cast %0 : vector<1x8x8x8xf32> to vector<8x8x8xf32>
    %c0_3 = arith.constant 0 : index
    %c0_4 = arith.constant 0 : index
    %2 = vector.load %arg2[%c0_3, %c0_4] : memref<1x8xf32, #tpu.memory_space<vmem>>, vector<1x8xf32>
    %3 = vector.shape_cast %2 : vector<1x8xf32> to vector<1x1x8xf32>
    %4 = vector.broadcast %3 : vector<1x1x8xf32> to vector<8x8x8xf32>
    %5 = arith.mulf %1, %4 : vector<8x8x8xf32>
    %c0_5 = arith.constant 0 : index
    %c0_6 = arith.constant 0 : index
    %6 = vector.load %arg3[%c0_5, %c0_6] : memref<1x8xf32, #tpu.memory_space<vmem>>, vector<1x8xf32>
    %7 = vector.shape_cast %6 : vector<1x8xf32> to vector<1x1x8xf32>
    %8 = vector.broadcast %7 : vector<1x1x8xf32> to vector<8x8x8xf32>
    %9 = arith.addf %5, %8 : vector<8x8x8xf32>
    %cst = arith.constant 0.000000e+00 : f32
    %10 = vector.broadcast %cst : f32 to vector<8x8x8xf32>
    %11 = arith.maximumf %9, %10 : vector<8x8x8xf32>
    %cst_7 = arith.constant 0.000000e+00 : f32
    %12 = vector.broadcast %cst_7 : f32 to vector<1x8x8xf32>
    %cst_8 = arith.constant 0.000000e+00 : f32
    %13 = vector.broadcast %cst_8 : f32 to vector<8x1x8xf32>
    %14 = vector.extract_strided_slice %11 {offsets = [0, 0, 0], sizes = [8, 7, 8], strides = [1, 1, 1]} : vector<8x8x8xf32> to vector<8x7x8xf32>
    %15 = tpu.concatenate %13, %14 in 1 : vector<8x1x8xf32>, vector<8x7x8xf32> -> vector<8x8x8xf32>
    %c0_9 = arith.constant 0 : index
    %c0_10 = arith.constant 0 : index
    %c0_11 = arith.constant 0 : index
    %c0_12 = arith.constant 0 : index
    %16 = vector.load %arg8[%c0_9, %c0_10, %c0_11, %c0_12] : memref<3x10x8x8xf32, #tpu.memory_space<vmem>>, vector<1x1x8x8xf32>
    %17 = vector.shape_cast %16 : vector<1x1x8x8xf32> to vector<1x8x8xf32>
    %18 = vector.shape_cast %12 : vector<1x8x8xf32> to vector<1x1x8x8xf32>
    tpu.vector_store %arg8[%c0_9, %c0_10, %c0_11, %c0_12], %18 {strides = array<i32>} : memref<3x10x8x8xf32, #tpu.memory_space<vmem>>, vector<1x1x8x8xf32>,
    %c0_13 = arith.constant 0 : index
    %c9 = arith.constant 9 : index
    %c0_14 = arith.constant 0 : index
    %c0_15 = arith.constant 0 : index
    %19 = vector.load %arg8[%c0_13, %c9, %c0_14, %c0_15] : memref<3x10x8x8xf32, #tpu.memory_space<vmem>>, vector<1x1x8x8xf32>
    %20 = vector.shape_cast %19 : vector<1x1x8x8xf32> to vector<1x8x8xf32>
    %21 = vector.shape_cast %12 : vector<1x8x8xf32> to vector<1x1x8x8xf32>
    tpu.vector_store %arg8[%c0_13, %c9, %c0_14, %c0_15], %21 {strides = array<i32>} : memref<3x10x8x8xf32, #tpu.memory_space<vmem>>, vector<1x1x8x8xf32>,
    %c0_16 = arith.constant 0 : index
    %c1 = arith.constant 1 : index
    %c0_17 = arith.constant 0 : index
    %c0_18 = arith.constant 0 : index
    %22 = vector.load %arg8[%c0_16, %c1, %c0_17, %c0_18] : memref<3x10x8x8xf32, #tpu.memory_space<vmem>>, vector<1x8x8x8xf32>
    %23 = vector.shape_cast %22 : vector<1x8x8x8xf32> to vector<8x8x8xf32>
    %24 = vector.shape_cast %15 : vector<8x8x8xf32> to vector<1x8x8x8xf32>
    tpu.vector_store %arg8[%c0_16, %c1, %c0_17, %c0_18], %24 {strides = array<i32>} : memref<3x10x8x8xf32, #tpu.memory_space<vmem>>, vector<1x8x8x8xf32>,
    %c1_19 = arith.constant 1 : index
    %c0_20 = arith.constant 0 : index
    %c0_21 = arith.constant 0 : index
    %c0_22 = arith.constant 0 : index
    %25 = vector.load %arg8[%c1_19, %c0_20, %c0_21, %c0_22] : memref<3x10x8x8xf32, #tpu.memory_space<vmem>>, vector<1x1x8x8xf32>
    %26 = vector.shape_cast %25 : vector<1x1x8x8xf32> to vector<1x8x8xf32>
    %27 = vector.shape_cast %12 : vector<1x8x8xf32> to vector<1x1x8x8xf32>
    tpu.vector_store %arg8[%c1_19, %c0_20, %c0_21, %c0_22], %27 {strides = array<i32>} : memref<3x10x8x8xf32, #tpu.memory_space<vmem>>, vector<1x1x8x8xf32>,
    %c1_23 = arith.constant 1 : index
    %c9_24 = arith.constant 9 : index
    %c0_25 = arith.constant 0 : index
    %c0_26 = arith.constant 0 : index
    %28 = vector.load %arg8[%c1_23, %c9_24, %c0_25, %c0_26] : memref<3x10x8x8xf32, #tpu.memory_space<vmem>>, vector<1x1x8x8xf32>
    %29 = vector.shape_cast %28 : vector<1x1x8x8xf32> to vector<1x8x8xf32>
    %30 = vector.shape_cast %12 : vector<1x8x8xf32> to vector<1x1x8x8xf32>
    tpu.vector_store %arg8[%c1_23, %c9_24, %c0_25, %c0_26], %30 {strides = array<i32>} : memref<3x10x8x8xf32, #tpu.memory_space<vmem>>, vector<1x1x8x8xf32>,
    %c1_27 = arith.constant 1 : index
    %c1_28 = arith.constant 1 : index
    %c0_29 = arith.constant 0 : index
    %c0_30 = arith.constant 0 : index
    %31 = vector.load %arg8[%c1_27, %c1_28, %c0_29, %c0_30] : memref<3x10x8x8xf32, #tpu.memory_space<vmem>>, vector<1x8x8x8xf32>
    %32 = vector.shape_cast %31 : vector<1x8x8x8xf32> to vector<8x8x8xf32>
    %33 = vector.shape_cast %11 : vector<8x8x8xf32> to vector<1x8x8x8xf32>
    tpu.vector_store %arg8[%c1_27, %c1_28, %c0_29, %c0_30], %33 {strides = array<i32>} : memref<3x10x8x8xf32, #tpu.memory_space<vmem>>, vector<1x8x8x8xf32>,
    %34 = vector.extract_strided_slice %11 {offsets = [0, 1, 0], sizes = [8, 7, 8], strides = [1, 1, 1]} : vector<8x8x8xf32> to vector<8x7x8xf32>
    %35 = tpu.concatenate %34, %13 in 1 : vector<8x7x8xf32>, vector<8x1x8xf32> -> vector<8x8x8xf32>
    %c2 = arith.constant 2 : index
    %c0_31 = arith.constant 0 : index
    %c0_32 = arith.constant 0 : index
    %c0_33 = arith.constant 0 : index
    %36 = vector.load %arg8[%c2, %c0_31, %c0_32, %c0_33] : memref<3x10x8x8xf32, #tpu.memory_space<vmem>>, vector<1x1x8x8xf32>
    %37 = vector.shape_cast %36 : vector<1x1x8x8xf32> to vector<1x8x8xf32>
    %38 = vector.shape_cast %12 : vector<1x8x8xf32> to vector<1x1x8x8xf32>
    tpu.vector_store %arg8[%c2, %c0_31, %c0_32, %c0_33], %38 {strides = array<i32>} : memref<3x10x8x8xf32, #tpu.memory_space<vmem>>, vector<1x1x8x8xf32>,
    %c2_34 = arith.constant 2 : index
    %c9_35 = arith.constant 9 : index
    %c0_36 = arith.constant 0 : index
    %c0_37 = arith.constant 0 : index
    %39 = vector.load %arg8[%c2_34, %c9_35, %c0_36, %c0_37] : memref<3x10x8x8xf32, #tpu.memory_space<vmem>>, vector<1x1x8x8xf32>
    %40 = vector.shape_cast %39 : vector<1x1x8x8xf32> to vector<1x8x8xf32>
    %41 = vector.shape_cast %12 : vector<1x8x8xf32> to vector<1x1x8x8xf32>
    tpu.vector_store %arg8[%c2_34, %c9_35, %c0_36, %c0_37], %41 {strides = array<i32>} : memref<3x10x8x8xf32, #tpu.memory_space<vmem>>, vector<1x1x8x8xf32>,
    %c2_38 = arith.constant 2 : index
    %c1_39 = arith.constant 1 : index
    %c0_40 = arith.constant 0 : index
    %c0_41 = arith.constant 0 : index
    %42 = vector.load %arg8[%c2_38, %c1_39, %c0_40, %c0_41] : memref<3x10x8x8xf32, #tpu.memory_space<vmem>>, vector<1x8x8x8xf32>
    %43 = vector.shape_cast %42 : vector<1x8x8x8xf32> to vector<8x8x8xf32>
    %44 = vector.shape_cast %35 : vector<8x8x8xf32> to vector<1x8x8x8xf32>
    tpu.vector_store %arg8[%c2_38, %c1_39, %c0_40, %c0_41], %44 {strides = array<i32>} : memref<3x10x8x8xf32, #tpu.memory_space<vmem>>, vector<1x8x8x8xf32>,
    %c0_42 = arith.constant 0 : index
    %c0_43 = arith.constant 0 : index
    %c0_44 = arith.constant 0 : index
    %c0_45 = arith.constant 0 : index
    %45 = vector.load %arg8[%c0_42, %c0_43, %c0_44, %c0_45] : memref<3x10x8x8xf32, #tpu.memory_space<vmem>>, vector<1x8x8x8xf32>
    %46 = vector.shape_cast %45 : vector<1x8x8x8xf32> to vector<8x8x8xf32>
    %47 = vector.shape_cast %46 : vector<8x8x8xf32> to vector<64x8xf32>
    %c0_46 = arith.constant 0 : index
    %c0_47 = arith.constant 0 : index
    %c0_48 = arith.constant 0 : index
    %48 = vector.load %arg4[%c0_46, %c0_47, %c0_48] : memref<9x8x8xf32, #tpu.memory_space<vmem>>, vector<1x8x8xf32>
    %49 = vector.shape_cast %48 : vector<1x8x8xf32> to vector<8x8xf32>
    %cst_49 = arith.constant dense<0.000000e+00> : vector<64x8xf32>
    %50 = tpu.matmul %47, %49, %cst_49 {dimension_numbers = #tpu.dot_dimension_numbers<[1], [0], [0], [1], [0, 0, 1, 1], [], []>} : vector<64x8xf32>, vector<8x8xf32>, vector<64x8xf32> -> vector<64x8xf32>
    %c0_50 = arith.constant 0 : index
    %c0_51 = arith.constant 0 : index
    %51 = vector.load %arg9[%c0_50, %c0_51] : memref<64x8xf32, #tpu.memory_space<vmem>>, vector<64x8xf32>
    tpu.vector_store %arg9[%c0_50, %c0_51], %50 {strides = array<i32>} : memref<64x8xf32, #tpu.memory_space<vmem>>, vector<64x8xf32>,
    %c1_52 = arith.constant 1 : index
    %c0_53 = arith.constant 0 : index
    %c0_54 = arith.constant 0 : index
    %c0_55 = arith.constant 0 : index
    %52 = vector.load %arg8[%c1_52, %c0_53, %c0_54, %c0_55] : memref<3x10x8x8xf32, #tpu.memory_space<vmem>>, vector<1x8x8x8xf32>
    %53 = vector.shape_cast %52 : vector<1x8x8x8xf32> to vector<8x8x8xf32>
    %54 = vector.shape_cast %53 : vector<8x8x8xf32> to vector<64x8xf32>
    %c1_56 = arith.constant 1 : index
    %c0_57 = arith.constant 0 : index
    %c0_58 = arith.constant 0 : index
    %55 = vector.load %arg4[%c1_56, %c0_57, %c0_58] : memref<9x8x8xf32, #tpu.memory_space<vmem>>, vector<1x8x8xf32>
    %56 = vector.shape_cast %55 : vector<1x8x8xf32> to vector<8x8xf32>
    %cst_59 = arith.constant dense<0.000000e+00> : vector<64x8xf32>
    %57 = tpu.matmul %54, %56, %cst_59 {dimension_numbers = #tpu.dot_dimension_numbers<[1], [0], [0], [1], [0, 0, 1, 1], [], []>} : vector<64x8xf32>, vector<8x8xf32>, vector<64x8xf32> -> vector<64x8xf32>
    %c0_60 = arith.constant 0 : index
    %c0_61 = arith.constant 0 : index
    %58 = vector.load %arg9[%c0_60, %c0_61] : memref<64x8xf32, #tpu.memory_space<vmem>>, vector<64x8xf32>
    %59 = arith.addf %58, %57 : vector<64x8xf32>
    %c0_62 = arith.constant 0 : index
    %c0_63 = arith.constant 0 : index
    %60 = vector.load %arg9[%c0_62, %c0_63] : memref<64x8xf32, #tpu.memory_space<vmem>>, vector<64x8xf32>
    tpu.vector_store %arg9[%c0_62, %c0_63], %59 {strides = array<i32>} : memref<64x8xf32, #tpu.memory_space<vmem>>, vector<64x8xf32>,
    %c2_64 = arith.constant 2 : index
    %c0_65 = arith.constant 0 : index
    %c0_66 = arith.constant 0 : index
    %c0_67 = arith.constant 0 : index
    %61 = vector.load %arg8[%c2_64, %c0_65, %c0_66, %c0_67] : memref<3x10x8x8xf32, #tpu.memory_space<vmem>>, vector<1x8x8x8xf32>
    %62 = vector.shape_cast %61 : vector<1x8x8x8xf32> to vector<8x8x8xf32>
    %63 = vector.shape_cast %62 : vector<8x8x8xf32> to vector<64x8xf32>
    %c2_68 = arith.constant 2 : index
    %c0_69 = arith.constant 0 : index
    %c0_70 = arith.constant 0 : index
    %64 = vector.load %arg4[%c2_68, %c0_69, %c0_70] : memref<9x8x8xf32, #tpu.memory_space<vmem>>, vector<1x8x8xf32>
    %65 = vector.shape_cast %64 : vector<1x8x8xf32> to vector<8x8xf32>
    %cst_71 = arith.constant dense<0.000000e+00> : vector<64x8xf32>
    %66 = tpu.matmul %63, %65, %cst_71 {dimension_numbers = #tpu.dot_dimension_numbers<[1], [0], [0], [1], [0, 0, 1, 1], [], []>} : vector<64x8xf32>, vector<8x8xf32>, vector<64x8xf32> -> vector<64x8xf32>
    %c0_72 = arith.constant 0 : index
    %c0_73 = arith.constant 0 : index
    %67 = vector.load %arg9[%c0_72, %c0_73] : memref<64x8xf32, #tpu.memory_space<vmem>>, vector<64x8xf32>
    %68 = arith.addf %67, %66 : vector<64x8xf32>
    %c0_74 = arith.constant 0 : index
    %c0_75 = arith.constant 0 : index
    %69 = vector.load %arg9[%c0_74, %c0_75] : memref<64x8xf32, #tpu.memory_space<vmem>>, vector<64x8xf32>
    tpu.vector_store %arg9[%c0_74, %c0_75], %68 {strides = array<i32>} : memref<64x8xf32, #tpu.memory_space<vmem>>, vector<64x8xf32>,
    %c0_76 = arith.constant 0 : index
    %c1_77 = arith.constant 1 : index
    %c0_78 = arith.constant 0 : index
    %c0_79 = arith.constant 0 : index
    %70 = vector.load %arg8[%c0_76, %c1_77, %c0_78, %c0_79] : memref<3x10x8x8xf32, #tpu.memory_space<vmem>>, vector<1x8x8x8xf32>
    %71 = vector.shape_cast %70 : vector<1x8x8x8xf32> to vector<8x8x8xf32>
    %72 = vector.shape_cast %71 : vector<8x8x8xf32> to vector<64x8xf32>
    %c3 = arith.constant 3 : index
    %c0_80 = arith.constant 0 : index
    %c0_81 = arith.constant 0 : index
    %73 = vector.load %arg4[%c3, %c0_80, %c0_81] : memref<9x8x8xf32, #tpu.memory_space<vmem>>, vector<1x8x8xf32>
    %74 = vector.shape_cast %73 : vector<1x8x8xf32> to vector<8x8xf32>
    %cst_82 = arith.constant dense<0.000000e+00> : vector<64x8xf32>
    %75 = tpu.matmul %72, %74, %cst_82 {dimension_numbers = #tpu.dot_dimension_numbers<[1], [0], [0], [1], [0, 0, 1, 1], [], []>} : vector<64x8xf32>, vector<8x8xf32>, vector<64x8xf32> -> vector<64x8xf32>
    %c0_83 = arith.constant 0 : index
    %c0_84 = arith.constant 0 : index
    %76 = vector.load %arg9[%c0_83, %c0_84] : memref<64x8xf32, #tpu.memory_space<vmem>>, vector<64x8xf32>
    %77 = arith.addf %76, %75 : vector<64x8xf32>
    %c0_85 = arith.constant 0 : index
    %c0_86 = arith.constant 0 : index
    %78 = vector.load %arg9[%c0_85, %c0_86] : memref<64x8xf32, #tpu.memory_space<vmem>>, vector<64x8xf32>
    tpu.vector_store %arg9[%c0_85, %c0_86], %77 {strides = array<i32>} : memref<64x8xf32, #tpu.memory_space<vmem>>, vector<64x8xf32>,
    %c1_87 = arith.constant 1 : index
    %c1_88 = arith.constant 1 : index
    %c0_89 = arith.constant 0 : index
    %c0_90 = arith.constant 0 : index
    %79 = vector.load %arg8[%c1_87, %c1_88, %c0_89, %c0_90] : memref<3x10x8x8xf32, #tpu.memory_space<vmem>>, vector<1x8x8x8xf32>
    %80 = vector.shape_cast %79 : vector<1x8x8x8xf32> to vector<8x8x8xf32>
    %81 = vector.shape_cast %80 : vector<8x8x8xf32> to vector<64x8xf32>
    %c4 = arith.constant 4 : index
    %c0_91 = arith.constant 0 : index
    %c0_92 = arith.constant 0 : index
    %82 = vector.load %arg4[%c4, %c0_91, %c0_92] : memref<9x8x8xf32, #tpu.memory_space<vmem>>, vector<1x8x8xf32>
    %83 = vector.shape_cast %82 : vector<1x8x8xf32> to vector<8x8xf32>
    %cst_93 = arith.constant dense<0.000000e+00> : vector<64x8xf32>
    %84 = tpu.matmul %81, %83, %cst_93 {dimension_numbers = #tpu.dot_dimension_numbers<[1], [0], [0], [1], [0, 0, 1, 1], [], []>} : vector<64x8xf32>, vector<8x8xf32>, vector<64x8xf32> -> vector<64x8xf32>
    %c0_94 = arith.constant 0 : index
    %c0_95 = arith.constant 0 : index
    %85 = vector.load %arg9[%c0_94, %c0_95] : memref<64x8xf32, #tpu.memory_space<vmem>>, vector<64x8xf32>
    %86 = arith.addf %85, %84 : vector<64x8xf32>
    %c0_96 = arith.constant 0 : index
    %c0_97 = arith.constant 0 : index
    %87 = vector.load %arg9[%c0_96, %c0_97] : memref<64x8xf32, #tpu.memory_space<vmem>>, vector<64x8xf32>
    tpu.vector_store %arg9[%c0_96, %c0_97], %86 {strides = array<i32>} : memref<64x8xf32, #tpu.memory_space<vmem>>, vector<64x8xf32>,
    %c2_98 = arith.constant 2 : index
    %c1_99 = arith.constant 1 : index
    %c0_100 = arith.constant 0 : index
    %c0_101 = arith.constant 0 : index
    %88 = vector.load %arg8[%c2_98, %c1_99, %c0_100, %c0_101] : memref<3x10x8x8xf32, #tpu.memory_space<vmem>>, vector<1x8x8x8xf32>
    %89 = vector.shape_cast %88 : vector<1x8x8x8xf32> to vector<8x8x8xf32>
    %90 = vector.shape_cast %89 : vector<8x8x8xf32> to vector<64x8xf32>
    %c5 = arith.constant 5 : index
    %c0_102 = arith.constant 0 : index
    %c0_103 = arith.constant 0 : index
    %91 = vector.load %arg4[%c5, %c0_102, %c0_103] : memref<9x8x8xf32, #tpu.memory_space<vmem>>, vector<1x8x8xf32>
    %92 = vector.shape_cast %91 : vector<1x8x8xf32> to vector<8x8xf32>
    %cst_104 = arith.constant dense<0.000000e+00> : vector<64x8xf32>
    %93 = tpu.matmul %90, %92, %cst_104 {dimension_numbers = #tpu.dot_dimension_numbers<[1], [0], [0], [1], [0, 0, 1, 1], [], []>} : vector<64x8xf32>, vector<8x8xf32>, vector<64x8xf32> -> vector<64x8xf32>
    %c0_105 = arith.constant 0 : index
    %c0_106 = arith.constant 0 : index
    %94 = vector.load %arg9[%c0_105, %c0_106] : memref<64x8xf32, #tpu.memory_space<vmem>>, vector<64x8xf32>
    %95 = arith.addf %94, %93 : vector<64x8xf32>
    %c0_107 = arith.constant 0 : index
    %c0_108 = arith.constant 0 : index
    %96 = vector.load %arg9[%c0_107, %c0_108] : memref<64x8xf32, #tpu.memory_space<vmem>>, vector<64x8xf32>
    tpu.vector_store %arg9[%c0_107, %c0_108], %95 {strides = array<i32>} : memref<64x8xf32, #tpu.memory_space<vmem>>, vector<64x8xf32>,
    %c0_109 = arith.constant 0 : index
    %c2_110 = arith.constant 2 : index
    %c0_111 = arith.constant 0 : index
    %c0_112 = arith.constant 0 : index
    %97 = vector.load %arg8[%c0_109, %c2_110, %c0_111, %c0_112] : memref<3x10x8x8xf32, #tpu.memory_space<vmem>>, vector<1x8x8x8xf32>
    %98 = vector.shape_cast %97 : vector<1x8x8x8xf32> to vector<8x8x8xf32>
    %99 = vector.shape_cast %98 : vector<8x8x8xf32> to vector<64x8xf32>
    %c6 = arith.constant 6 : index
    %c0_113 = arith.constant 0 : index
    %c0_114 = arith.constant 0 : index
    %100 = vector.load %arg4[%c6, %c0_113, %c0_114] : memref<9x8x8xf32, #tpu.memory_space<vmem>>, vector<1x8x8xf32>
    %101 = vector.shape_cast %100 : vector<1x8x8xf32> to vector<8x8xf32>
    %cst_115 = arith.constant dense<0.000000e+00> : vector<64x8xf32>
    %102 = tpu.matmul %99, %101, %cst_115 {dimension_numbers = #tpu.dot_dimension_numbers<[1], [0], [0], [1], [0, 0, 1, 1], [], []>} : vector<64x8xf32>, vector<8x8xf32>, vector<64x8xf32> -> vector<64x8xf32>
    %c0_116 = arith.constant 0 : index
    %c0_117 = arith.constant 0 : index
    %103 = vector.load %arg9[%c0_116, %c0_117] : memref<64x8xf32, #tpu.memory_space<vmem>>, vector<64x8xf32>
    %104 = arith.addf %103, %102 : vector<64x8xf32>
    %c0_118 = arith.constant 0 : index
    %c0_119 = arith.constant 0 : index
    %105 = vector.load %arg9[%c0_118, %c0_119] : memref<64x8xf32, #tpu.memory_space<vmem>>, vector<64x8xf32>
    tpu.vector_store %arg9[%c0_118, %c0_119], %104 {strides = array<i32>} : memref<64x8xf32, #tpu.memory_space<vmem>>, vector<64x8xf32>,
    %c1_120 = arith.constant 1 : index
    %c2_121 = arith.constant 2 : index
    %c0_122 = arith.constant 0 : index
    %c0_123 = arith.constant 0 : index
    %106 = vector.load %arg8[%c1_120, %c2_121, %c0_122, %c0_123] : memref<3x10x8x8xf32, #tpu.memory_space<vmem>>, vector<1x8x8x8xf32>
    %107 = vector.shape_cast %106 : vector<1x8x8x8xf32> to vector<8x8x8xf32>
    %108 = vector.shape_cast %107 : vector<8x8x8xf32> to vector<64x8xf32>
    %c7 = arith.constant 7 : index
    %c0_124 = arith.constant 0 : index
    %c0_125 = arith.constant 0 : index
    %109 = vector.load %arg4[%c7, %c0_124, %c0_125] : memref<9x8x8xf32, #tpu.memory_space<vmem>>, vector<1x8x8xf32>
    %110 = vector.shape_cast %109 : vector<1x8x8xf32> to vector<8x8xf32>
    %cst_126 = arith.constant dense<0.000000e+00> : vector<64x8xf32>
    %111 = tpu.matmul %108, %110, %cst_126 {dimension_numbers = #tpu.dot_dimension_numbers<[1], [0], [0], [1], [0, 0, 1, 1], [], []>} : vector<64x8xf32>, vector<8x8xf32>, vector<64x8xf32> -> vector<64x8xf32>
    %c0_127 = arith.constant 0 : index
    %c0_128 = arith.constant 0 : index
    %112 = vector.load %arg9[%c0_127, %c0_128] : memref<64x8xf32, #tpu.memory_space<vmem>>, vector<64x8xf32>
    %113 = arith.addf %112, %111 : vector<64x8xf32>
    %c0_129 = arith.constant 0 : index
    %c0_130 = arith.constant 0 : index
    %114 = vector.load %arg9[%c0_129, %c0_130] : memref<64x8xf32, #tpu.memory_space<vmem>>, vector<64x8xf32>
    tpu.vector_store %arg9[%c0_129, %c0_130], %113 {strides = array<i32>} : memref<64x8xf32, #tpu.memory_space<vmem>>, vector<64x8xf32>,
    %c2_131 = arith.constant 2 : index
    %c2_132 = arith.constant 2 : index
    %c0_133 = arith.constant 0 : index
    %c0_134 = arith.constant 0 : index
    %115 = vector.load %arg8[%c2_131, %c2_132, %c0_133, %c0_134] : memref<3x10x8x8xf32, #tpu.memory_space<vmem>>, vector<1x8x8x8xf32>
    %116 = vector.shape_cast %115 : vector<1x8x8x8xf32> to vector<8x8x8xf32>
    %117 = vector.shape_cast %116 : vector<8x8x8xf32> to vector<64x8xf32>
    %c8 = arith.constant 8 : index
    %c0_135 = arith.constant 0 : index
    %c0_136 = arith.constant 0 : index
    %118 = vector.load %arg4[%c8, %c0_135, %c0_136] : memref<9x8x8xf32, #tpu.memory_space<vmem>>, vector<1x8x8xf32>
    %119 = vector.shape_cast %118 : vector<1x8x8xf32> to vector<8x8xf32>
    %cst_137 = arith.constant dense<0.000000e+00> : vector<64x8xf32>
    %120 = tpu.matmul %117, %119, %cst_137 {dimension_numbers = #tpu.dot_dimension_numbers<[1], [0], [0], [1], [0, 0, 1, 1], [], []>} : vector<64x8xf32>, vector<8x8xf32>, vector<64x8xf32> -> vector<64x8xf32>
    %c0_138 = arith.constant 0 : index
    %c0_139 = arith.constant 0 : index
    %121 = vector.load %arg9[%c0_138, %c0_139] : memref<64x8xf32, #tpu.memory_space<vmem>>, vector<64x8xf32>
    %122 = arith.addf %121, %120 : vector<64x8xf32>
    %c0_140 = arith.constant 0 : index
    %c0_141 = arith.constant 0 : index
    %123 = vector.load %arg9[%c0_140, %c0_141] : memref<64x8xf32, #tpu.memory_space<vmem>>, vector<64x8xf32>
    tpu.vector_store %arg9[%c0_140, %c0_141], %122 {strides = array<i32>} : memref<64x8xf32, #tpu.memory_space<vmem>>, vector<64x8xf32>,
    %c0_142 = arith.constant 0 : index
    %c0_143 = arith.constant 0 : index
    %124 = vector.load %arg9[%c0_142, %c0_143] : memref<64x8xf32, #tpu.memory_space<vmem>>, vector<64x8xf32>
    %125 = vector.shape_cast %124 : vector<64x8xf32> to vector<1x8x8x8xf32>
    %c0_144 = arith.constant 0 : index
    %c0_145 = arith.constant 0 : index
    %c0_146 = arith.constant 0 : index
    %c0_147 = arith.constant 0 : index
    %126 = vector.load %arg5[%c0_144, %c0_145, %c0_146, %c0_147] : memref<1x8x8x8xf32, #tpu.memory_space<vmem>>, vector<1x8x8x8xf32>
    tpu.vector_store %arg5[%c0_144, %c0_145, %c0_146, %c0_147], %125 {strides = array<i32>} : memref<1x8x8x8xf32, #tpu.memory_space<vmem>>, vector<1x8x8x8xf32>,
    %cst_148 = arith.constant dense<0.000000e+00> : vector<8xf32>
    %127 = vector.multi_reduction <add>, %124, %cst_148 [0] : vector<64x8xf32> to vector<8xf32>
    %128 = vector.shape_cast %127 : vector<8xf32> to vector<1x1x8xf32>
    %c0_149 = arith.constant 0 : index
    %c0_150 = arith.constant 0 : index
    %c0_151 = arith.constant 0 : index
    %129 = vector.load %arg6[%c0_149, %c0_150, %c0_151] : memref<1x1x8xf32, #tpu.memory_space<vmem>>, vector<1x1x8xf32>
    tpu.vector_store %arg6[%c0_149, %c0_150, %c0_151], %128 {strides = array<i32>} : memref<1x1x8xf32, #tpu.memory_space<vmem>>, vector<1x1x8xf32>,
    %130 = arith.mulf %124, %124 : vector<64x8xf32>
    %cst_152 = arith.constant dense<0.000000e+00> : vector<8xf32>
    %131 = vector.multi_reduction <add>, %130, %cst_152 [0] : vector<64x8xf32> to vector<8xf32>
    %132 = vector.shape_cast %131 : vector<8xf32> to vector<1x1x8xf32>
    %c0_153 = arith.constant 0 : index
    %c0_154 = arith.constant 0 : index
    %c0_155 = arith.constant 0 : index
    %133 = vector.load %arg7[%c0_153, %c0_154, %c0_155] : memref<1x1x8xf32, #tpu.memory_space<vmem>>, vector<1x1x8xf32>
    tpu.vector_store %arg7[%c0_153, %c0_154, %c0_155], %132 {strides = array<i32>} : memref<1x1x8xf32, #tpu.memory_space<vmem>>, vector<1x1x8xf32>,
    return
  }
  func.func @transform_0(%arg0: i32) -> (i32, i32, i32, i32) {
    %c0_i32 = arith.constant 0 : i32
    %c0_i32_0 = arith.constant 0 : i32
    %c0_i32_1 = arith.constant 0 : i32
    %c0_i32_2 = arith.constant 0 : i32
    return %arg0, %c0_i32, %c0_i32_0, %c0_i32_1 : i32, i32, i32, i32
  }
  func.func @transform_1(%arg0: i32) -> (i32, i32) {
    %c0_i32 = arith.constant 0 : i32
    %c0_i32_0 = arith.constant 0 : i32
    %c0_i32_1 = arith.constant 0 : i32
    return %c0_i32, %c0_i32_0 : i32, i32
  }
  func.func @transform_2(%arg0: i32) -> (i32, i32) {
    %c0_i32 = arith.constant 0 : i32
    %c0_i32_0 = arith.constant 0 : i32
    %c0_i32_1 = arith.constant 0 : i32
    return %c0_i32, %c0_i32_0 : i32, i32
  }
  func.func @transform_3(%arg0: i32) -> (i32, i32, i32) {
    %c0_i32 = arith.constant 0 : i32
    %c0_i32_0 = arith.constant 0 : i32
    %c0_i32_1 = arith.constant 0 : i32
    %c0_i32_2 = arith.constant 0 : i32
    return %c0_i32, %c0_i32_0, %c0_i32_1 : i32, i32, i32
  }
  func.func @transform_4(%arg0: i32) -> (i32, i32, i32, i32) {
    %c0_i32 = arith.constant 0 : i32
    %c0_i32_0 = arith.constant 0 : i32
    %c0_i32_1 = arith.constant 0 : i32
    %c0_i32_2 = arith.constant 0 : i32
    return %arg0, %c0_i32, %c0_i32_0, %c0_i32_1 : i32, i32, i32, i32
  }
  func.func @transform_5(%arg0: i32) -> (i32, i32, i32) {
    %c0_i32 = arith.constant 0 : i32
    %c0_i32_0 = arith.constant 0 : i32
    %c0_i32_1 = arith.constant 0 : i32
    return %arg0, %c0_i32, %c0_i32_0 : i32, i32, i32
  }
  func.func @transform_6(%arg0: i32) -> (i32, i32, i32) {
    %c0_i32 = arith.constant 0 : i32
    %c0_i32_0 = arith.constant 0 : i32
    %c0_i32_1 = arith.constant 0 : i32
    return %arg0, %c0_i32, %c0_i32_0 : i32, i32, i32
  }
}

module attributes {stable_mosaic.version = 11 : i64} {
  func.func @_bn_residual_relu_kernel(%arg0: i32, %arg1: memref<32x16xf32, #tpu.memory_space<vmem>>, %arg2: memref<32x16xf32, #tpu.memory_space<vmem>>, %arg3: memref<1x16xf32, #tpu.memory_space<vmem>>, %arg4: memref<1x16xf32, #tpu.memory_space<vmem>>, %arg5: memref<32x16xf32, #tpu.memory_space<vmem>>) attributes {dimension_semantics = [#tpu.dimension_semantics<parallel>], iteration_bounds = array<i64: 4>, scalar_prefetch = 0 : i64, scratch_operands = 0 : i64, tpu.core_type = #tpu.core_type<tc>, window_params = [{transform_indices = @transform_0, window_bounds = array<i64: 32, 16>}, {transform_indices = @transform_1, window_bounds = array<i64: 32, 16>}, {pipeline_mode = #tpu.pipeline_mode<synchronous>, transform_indices = @transform_2, window_bounds = array<i64: 1, 16>}, {pipeline_mode = #tpu.pipeline_mode<synchronous>, transform_indices = @transform_3, window_bounds = array<i64: 1, 16>}, {transform_indices = @transform_4, window_bounds = array<i64: 32, 16>}]} {
    %c0 = arith.constant 0 : index
    %c0_0 = arith.constant 0 : index
    %0 = vector.load %arg1[%c0, %c0_0] : memref<32x16xf32, #tpu.memory_space<vmem>>, vector<32x16xf32>
    %c0_1 = arith.constant 0 : index
    %c0_2 = arith.constant 0 : index
    %1 = vector.load %arg3[%c0_1, %c0_2] : memref<1x16xf32, #tpu.memory_space<vmem>>, vector<1x16xf32>
    %2 = vector.broadcast %1 : vector<1x16xf32> to vector<32x16xf32>
    %3 = arith.mulf %0, %2 : vector<32x16xf32>
    %c0_3 = arith.constant 0 : index
    %c0_4 = arith.constant 0 : index
    %4 = vector.load %arg4[%c0_3, %c0_4] : memref<1x16xf32, #tpu.memory_space<vmem>>, vector<1x16xf32>
    %5 = vector.broadcast %4 : vector<1x16xf32> to vector<32x16xf32>
    %6 = arith.addf %3, %5 : vector<32x16xf32>
    %c0_5 = arith.constant 0 : index
    %c0_6 = arith.constant 0 : index
    %7 = vector.load %arg2[%c0_5, %c0_6] : memref<32x16xf32, #tpu.memory_space<vmem>>, vector<32x16xf32>
    %8 = arith.addf %6, %7 : vector<32x16xf32>
    %cst = arith.constant 0.000000e+00 : f32
    %9 = vector.broadcast %cst : f32 to vector<32x16xf32>
    %10 = arith.maximumf %8, %9 : vector<32x16xf32>
    %c0_7 = arith.constant 0 : index
    %c0_8 = arith.constant 0 : index
    %11 = vector.load %arg5[%c0_7, %c0_8] : memref<32x16xf32, #tpu.memory_space<vmem>>, vector<32x16xf32>
    tpu.vector_store %arg5[%c0_7, %c0_8], %10 {strides = array<i32>} : memref<32x16xf32, #tpu.memory_space<vmem>>, vector<32x16xf32>,
    return
  }
  func.func @transform_0(%arg0: i32) -> (i32, i32) {
    %c0_i32 = arith.constant 0 : i32
    %c0_i32_0 = arith.constant 0 : i32
    return %arg0, %c0_i32 : i32, i32
  }
  func.func @transform_1(%arg0: i32) -> (i32, i32) {
    %c0_i32 = arith.constant 0 : i32
    %c0_i32_0 = arith.constant 0 : i32
    return %arg0, %c0_i32 : i32, i32
  }
  func.func @transform_2(%arg0: i32) -> (i32, i32) {
    %c0_i32 = arith.constant 0 : i32
    %c0_i32_0 = arith.constant 0 : i32
    %c0_i32_1 = arith.constant 0 : i32
    return %c0_i32, %c0_i32_0 : i32, i32
  }
  func.func @transform_3(%arg0: i32) -> (i32, i32) {
    %c0_i32 = arith.constant 0 : i32
    %c0_i32_0 = arith.constant 0 : i32
    %c0_i32_1 = arith.constant 0 : i32
    return %c0_i32, %c0_i32_0 : i32, i32
  }
  func.func @transform_4(%arg0: i32) -> (i32, i32) {
    %c0_i32 = arith.constant 0 : i32
    %c0_i32_0 = arith.constant 0 : i32
    return %arg0, %c0_i32 : i32, i32
  }
}

</mosaic_0001>

<llo_original>
// kernel: resnext_block_forward.6
$region0: #{resnext_block_forward.6}
  #allocation0 [shape = 'u32[]', space=smem, size = 0x4, offset = 0x4, fixed_abs, tag = 'smem constant byte address 0x4 - core index']
  #allocation1 [shape = 'u32[144,128]{1,0:T(1,128)}', space=vmem, size = 0x12000, scoped, tag = 'internal scratch']
  %s0 = inlined_call_operand.vmem [shape: f32[128,8], index: 0, kind: input, shape index: {}]
  %s1 = inlined_call_operand.vmem [shape: f32[1,8], index: 1, kind: input, shape index: {}]
  %s2 = inlined_call_operand.vmem [shape: f32[1,8], index: 2, kind: input, shape index: {}]
  %s3 = inlined_call_operand.vmem [shape: f32[8,16], index: 3, kind: input, shape index: {}]
  %s4 = inlined_call_operand.vmem [shape: f32[128,16], index: 4, kind: output, shape index: {0}]
  %s5 = inlined_call_operand.vmem [shape: f32[4,1,16], index: 5, kind: output, shape index: {1}]
  %s6 = inlined_call_operand.vmem [shape: f32[4,1,16], index: 6, kind: output, shape index: {2}]
  %7 = xla_tuple %s4, %s5, %s6
  %s8 = sld [smem:[#allocation0]]
  $region65: #{resnext_block_forward.6} parent=0
    _
  %s10 = ssub.s32 1, %s8
  %s11 = scalar_select 0, %s10, %s8
  loop: start=0, step=1, limit=6
  $region2: #{resnext_block_forward.6} parent=0 // loop_pre_header
    _
  $region3: #{resnext_block_forward.6} parent=0 // loop_header
    %s13 = sphi 0, %s17
    %p14 = scmp.ge.s32.totalorder %s13, 6
    %s23 = sphi 0, %s25
    %s26 = sphi 0, %s23
    %s27 = sphi 0, %s26
    %s43 = sphi 0, %s27
    %s47 = sphi 0, %s47
    %s49 = sphi 0, %s47
    %s50 = sphi 0, %s49
    %s64 = sphi 0, %s50
    %s68 = sphi 0, %s68
    %s70 = sphi 0, %s68
    %s71 = sphi 0, %s70
    %s85 = sphi 0, %s71
    %s89 = sphi 0, %s89
    %s91 = sphi 0, %s89
    %s92 = sphi 0, %s91
    %s106 = sphi 0, %s92
    %s112 = sphi 0, %s114
    %s115 = sphi 0, %s112
    %s116 = sphi 0, %s115
    %s132 = sphi 0, %s116
    %s138 = sphi 0, %s140
    %s141 = sphi 0, %s138
    %s142 = sphi 0, %s141
    %s158 = sphi 0, %s142
    %s164 = sphi 0, %s166
    %s167 = sphi 0, %s164
    %s168 = sphi 0, %s167
    %s184 = sphi 0, %s168
  $region4: #{resnext_block_forward.6} parent=0 // loop_header_branch
    %16 = sbr.rel (%p14) target = $region8
  $region5: #{resnext_block_forward.6} parent=0 // loop_body
    %s18 = ssub.s32 %s13, 1
    %s19 = ssub.s32 %s13, 2
    %s20 = sadd.s32 %s13, 1
    %s21 = ssub.s32 %s13, %s20
    %p22 = scmp.eq.s32.totalorder %s21, 0
    %s24 = sadd.s32 %s23, 1
    %s25 = scalar_select %p22, %s23, %s24
    %p28 = pneg %p22
    %p29 = scmp.eq.s32.totalorder %s13, 3
    %p30 = por %p28, %p29
    %p31 = scmp.ne.s32.totalorder %s23, %s26
    %p32 = scmp.eq.s32.totalorder %s13, 0
    %p33 = por %p31, %p32
    %p34 = scmp.ne.s32.totalorder %s23, %s26
    %p35 = scmp.eq.s32.totalorder %s18, 3
    %p36 = por %p34, %p35
    %p37 = scmp.ne.s32.totalorder %s26, %s27
    %p38 = scmp.eq.s32.totalorder %s18, 0
    %p39 = por %p37, %p38
    %p40 = scmp.ne.s32.totalorder %s26, %s27
    %p41 = scmp.eq.s32.totalorder %s19, 3
    %p42 = por %p40, %p41
    %p44 = scmp.ne.s32.totalorder %s27, %s43
    %p45 = scmp.eq.s32.totalorder %s19, 0
    %p46 = por %p44, %p45
    %s48 = sadd.s32 %s47, 1
    %p51 = scmp.eq.s32.totalorder %s13, 3
    %p52 = scmp.ne.s32.totalorder %s47, %s49
    %p53 = scmp.eq.s32.totalorder %s13, 0
    %p54 = por %p52, %p53
    %p55 = scmp.ne.s32.totalorder %s47, %s49
    %p56 = scmp.eq.s32.totalorder %s18, 3
    %p57 = por %p55, %p56
    %p58 = scmp.ne.s32.totalorder %s49, %s50
    %p59 = scmp.eq.s32.totalorder %s18, 0
    %p60 = por %p58, %p59
    %p61 = scmp.ne.s32.totalorder %s49, %s50
    %p62 = scmp.eq.s32.totalorder %s19, 3
    %p63 = por %p61, %p62
    %p65 = scmp.ne.s32.totalorder %s50, %s64
    %p66 = scmp.eq.s32.totalorder %s19, 0
    %p67 = por %p65, %p66
    %s69 = sadd.s32 %s68, 1
    %p72 = scmp.eq.s32.totalorder %s13, 3
    %p73 = scmp.ne.s32.totalorder %s68, %s70
    %p74 = scmp.eq.s32.totalorder %s13, 0
    %p75 = por %p73, %p74
    %p76 = scmp.ne.s32.totalorder %s68, %s70
    %p77 = scmp.eq.s32.totalorder %s18, 3
    %p78 = por %p76, %p77
    %p79 = scmp.ne.s32.totalorder %s70, %s71
    %p80 = scmp.eq.s32.totalorder %s18, 0
    %p81 = por %p79, %p80
    %p82 = scmp.ne.s32.totalorder %s70, %s71
    %p83 = scmp.eq.s32.totalorder %s19, 3
    %p84 = por %p82, %p83
    %p86 = scmp.ne.s32.totalorder %s71, %s85
    %p87 = scmp.eq.s32.totalorder %s19, 0
    %p88 = por %p86, %p87
    %s90 = sadd.s32 %s89, 1
    %p93 = scmp.eq.s32.totalorder %s13, 3
    %p94 = scmp.ne.s32.totalorder %s89, %s91
    %p95 = scmp.eq.s32.totalorder %s13, 0
    %p96 = por %p94, %p95
    %p97 = scmp.ne.s32.totalorder %s89, %s91
    %p98 = scmp.eq.s32.totalorder %s18, 3
    %p99 = por %p97, %p98
    %p100 = scmp.ne.s32.totalorder %s91, %s92
    %p101 = scmp.eq.s32.totalorder %s18, 0
    %p102 = por %p100, %p101
    %p103 = scmp.ne.s32.totalorder %s91, %s92
    %p104 = scmp.eq.s32.totalorder %s19, 3
    %p105 = por %p103, %p104
    %p107 = scmp.ne.s32.totalorder %s92, %s106
    %p108 = scmp.eq.s32.totalorder %s19, 0
    %p109 = por %p107, %p108
    %s110 = ssub.s32 %s13, %s20
    %p111 = scmp.eq.s32.totalorder %s110, 0
    %s113 = sadd.s32 %s112, 1
    %s114 = scalar_select %p111, %s112, %s113
    %p117 = pneg %p111
    %p118 = scmp.eq.s32.totalorder %s13, 3
    %p119 = por %p117, %p118
    %p120 = scmp.ne.s32.totalorder %s112, %s115
    %p121 = scmp.eq.s32.totalorder %s13, 0
    %p122 = por %p120, %p121
    %p123 = scmp.ne.s32.totalorder %s112, %s115
    %p124 = scmp.eq.s32.totalorder %s18, 3
    %p125 = por %p123, %p124
    %p126 = scmp.ne.s32.totalorder %s115, %s116
    %p127 = scmp.eq.s32.totalorder %s18, 0
    %p128 = por %p126, %p127
    %p129 = scmp.ne.s32.totalorder %s115, %s116
    %p130 = scmp.eq.s32.totalorder %s19, 3
    %p131 = por %p129, %p130
    %p133 = scmp.ne.s32.totalorder %s116, %s132
    %p134 = scmp.eq.s32.totalorder %s19, 0
    %p135 = por %p133, %p134
    %s136 = ssub.s32 %s13, %s20
    %p137 = scmp.eq.s32.totalorder %s136, 0
    %s139 = sadd.s32 %s138, 1
    %s140 = scalar_select %p137, %s138, %s139
    %p143 = pneg %p137
    %p144 = scmp.eq.s32.totalorder %s13, 3
    %p145 = por %p143, %p144
    %p146 = scmp.ne.s32.totalorder %s138, %s141
    %p147 = scmp.eq.s32.totalorder %s13, 0
    %p148 = por %p146, %p147
    %p149 = scmp.ne.s32.totalorder %s138, %s141
    %p150 = scmp.eq.s32.totalorder %s18, 3
    %p151 = por %p149, %p150
    %p152 = scmp.ne.s32.totalorder %s141, %s142
    %p153 = scmp.eq.s32.totalorder %s18, 0
    %p154 = por %p152, %p153
    %p155 = scmp.ne.s32.totalorder %s141, %s142
    %p156 = scmp.eq.s32.totalorder %s19, 3
    %p157 = por %p155, %p156
    %p159 = scmp.ne.s32.totalorder %s142, %s158
    %p160 = scmp.eq.s32.totalorder %s19, 0
    %p161 = por %p159, %p160
    %s162 = ssub.s32 %s13, %s20
    %p163 = scmp.eq.s32.totalorder %s162, 0
    %s165 = sadd.s32 %s164, 1
    %s166 = scalar_select %p163, %s164, %s165
    %p169 = pneg %p163
    %p170 = scmp.eq.s32.totalorder %s13, 3
    %p171 = por %p169, %p170
    %p172 = scmp.ne.s32.totalorder %s164, %s167
    %p173 = scmp.eq.s32.totalorder %s13, 0
    %p174 = por %p172, %p173
    %p175 = scmp.ne.s32.totalorder %s164, %s167
    %p176 = scmp.eq.s32.totalorder %s18, 3
    %p177 = por %p175, %p176
    %p178 = scmp.ne.s32.totalorder %s167, %s168
    %p179 = scmp.eq.s32.totalorder %s18, 0
    %p180 = por %p178, %p179
    %p181 = scmp.ne.s32.totalorder %s167, %s168
    %p182 = scmp.eq.s32.totalorder %s19, 3
    %p183 = por %p181, %p182
    %p185 = scmp.ne.s32.totalorder %s168, %s184
    %p186 = scmp.eq.s32.totalorder %s19, 0
    %p187 = por %p185, %p186
    %p188 = scmp.le.s32.totalorder 1, %s13
    %p189 = scmp.lt.s32.totalorder %s13, 5
    %p190 = pnand %p188, %p189
    %p191 = pneg %p190
    // Predicated region
    $region9: #{resnext_block_forward.6} parent=5 // pred_check
      _
    $region10: #{resnext_block_forward.6} parent=5 // pred_check_branch
      %193 = sbr.rel (%p190) target = $region12
    $region11: #{resnext_block_forward.6} parent=5 // pred_region
      %s194 = ssub.s32 %s13, 1
      // Predicated region
      $region13: #{resnext_block_forward.6} parent=11 // pred_check
        %p195 = pneg %p60
      $region14: #{resnext_block_forward.6} parent=11 // pred_check_branch
        %197 = sbr.rel (%p195) target = $region16
      $region15: #{resnext_block_forward.6} parent=11 // pred_region
        _
      $region16: #{resnext_block_forward.6} parent=11 // pred_fallthru
        _
      // Predicated region
      $region17: #{resnext_block_forward.6} parent=11 // pred_check
        %p198 = pneg %p81
      $region18: #{resnext_block_forward.6} parent=11 // pred_check_branch
        %200 = sbr.rel (%p198) target = $region20
      $region19: #{resnext_block_forward.6} parent=11 // pred_region
        _
      $region20: #{resnext_block_forward.6} parent=11 // pred_fallthru
        _
      // Predicated region
      $region21: #{resnext_block_forward.6} parent=11 // pred_check
        %p201 = pneg %p102
      $region22: #{resnext_block_forward.6} parent=11 // pred_check_branch
        %203 = sbr.rel (%p201) target = $region24
      $region23: #{resnext_block_forward.6} parent=11 // pred_region
        _
      $region24: #{resnext_block_forward.6} parent=11 // pred_fallthru
        _
    $region12: #{resnext_block_forward.6} parent=5 // pred_fallthru
      _
    %p204 = scmp.lt.s32.totalorder %s13, 4
    // Predicated region
    $region25: #{resnext_block_forward.6} parent=5 // pred_check
      %p205 = pneg %p204
    $region26: #{resnext_block_forward.6} parent=5 // pred_check_branch
      %207 = sbr.rel (%p205) target = $region28
    $region27: #{resnext_block_forward.6} parent=5 // pred_region
      // Predicated region
      $region29: #{resnext_block_forward.6} parent=27 // pred_check
        %p208 = pneg %p33
      $region30: #{resnext_block_forward.6} parent=27 // pred_check_branch
        %210 = sbr.rel (%p208) target = $region32
      $region31: #{resnext_block_forward.6} parent=27 // pred_region
        %s211 = smul.u32 4, %s13
        %p212 = scmp.lt.s32.totalorder %s211, 15
        %s213 = scalar_select %p212, %s211, 15
        %s214 = smul.addr %s213, 8
        %s215 = scalar_lea.vmem %s0, %s214
        %s216 = smul.u32 4, %s13
      $region32: #{resnext_block_forward.6} parent=27 // pred_fallthru
        _
    $region28: #{resnext_block_forward.6} parent=5 // pred_fallthru
      _
    %p217 = scmp.le.s32.totalorder 1, %s13
    %p218 = scmp.lt.s32.totalorder %s13, 5
    %p219 = pnand %p217, %p218
    %p220 = pneg %p219
    // Predicated region
    $region33: #{resnext_block_forward.6} parent=5 // pred_check
      _
    $region34: #{resnext_block_forward.6} parent=5 // pred_check_branch
      %222 = sbr.rel (%p219) target = $region36
    $region35: #{resnext_block_forward.6} parent=5 // pred_region
      %s223 = ssub.s32 %s13, 1
      %s224 = smul.u32 4, %s18
      %p225 = scmp.lt.s32.totalorder %s224, 15
      %s226 = scalar_select %p225, %s224, 15
      %s227 = smul.addr %s226, 8
      %s228 = scalar_lea.vmem %s0, %s227
      %p229 = pneg %p39
      %p230 = pneg %p36
      %p231 = pneg %p60
      %p232 = pneg %p57
      %p233 = pneg %p81
      %p234 = pneg %p78
      %p235 = pneg %p102
      %p236 = pneg %p99
      %p237 = pneg %p128
      %p238 = pneg %p125
      %s239 = smul.u32 4, %s18
      %p240 = scmp.lt.s32.totalorder %s239, 15
      %s241 = scalar_select %p240, %s239, 15
      %s242 = smul.addr %s241, 8
      %s243 = scalar_lea.vmem %s4, %s242
      %p244 = pneg %p154
      %p245 = pneg %p151
      %p246 = scmp.lt.s32.totalorder %s18, 3
      %s247 = scalar_select %p246, %s18, 3
      %s248 = scalar_lea.vmem %s5, %s247
      %p249 = pneg %p180
      %p250 = pneg %p177
      %p251 = scmp.lt.s32.totalorder %s18, 3
      %s252 = scalar_select %p251, %s18, 3
      %s253 = scalar_lea.vmem %s6, %s252
      %s254 = smul.u32 4, %s18
      %p255 = scmp.lt.s32.totalorder %s254, 15
      %s256 = scalar_select %p255, %s254, 15
      %s257 = smul.addr %s256, 8
      %s258 = scalar_lea.vmem %s0, %s257
      %s259 = smul.u32 4, %s18
      %s260 = smul.u32 4, %s18
      %p261 = scmp.lt.s32.totalorder %s260, 15
      %s262 = scalar_select %p261, %s260, 15
      %s263 = smul.addr %s262, 8
      %s264 = scalar_lea.vmem %s4, %s263
      %s265 = smul.u32 4, %s18
      %p266 = scmp.lt.s32.totalorder %s18, 3
      %s267 = scalar_select %p266, %s18, 3
      %s268 = scalar_lea.vmem %s5, %s267
      %p269 = scmp.lt.s32.totalorder %s18, 3
      %s270 = scalar_select %p269, %s18, 3
      %s271 = scalar_lea.vmem %s6, %s270
      %v272 = vld [vmem:[%s258] sm:$0xff]
      %v273 = vld [vmem:[%s258 + $0x8] sm:$0xff]
      %v274 = vld [vmem:[%s258 + $0x10] sm:$0xff]
      %v275 = vld [vmem:[%s258 + $0x18] sm:$0xff]
      %v276 = vld [vmem:[%s1] sm:$0x1]
      %v278 = vlaneseq
      %v279 = vshrl.u32 %v278, 7
      %v280 = vsub.s32 0, %v279
      %v281 = vrot.slane %v276, %v280
      %v283 = vmul.f32 %v272, %v281
      %v284 = vmul.f32 %v273, %v281
      %v285 = vmul.f32 %v274, %v281
      %v286 = vmul.f32 %v275, %v281
      %v287 = vld [vmem:[%s2] sm:$0x1]
      %v289 = vlaneseq
      %v290 = vshrl.u32 %v289, 7
      %v291 = vsub.s32 0, %v290
      %v292 = vrot.slane %v287, %v291
      %v294 = vadd.f32 %v283, %v292
      %v295 = vadd.f32 %v284, %v292
      %v296 = vadd.f32 %v285, %v292
      %v297 = vadd.f32 %v286, %v292
      %v298 = vmax.f32 %v294, 0.0
      %v299 = vmax.f32 %v295, 0.0
      %v300 = vmax.f32 %v296, 0.0
      %v301 = vmax.f32 %v297, 0.0
      %v302 = vld [vmem:[%s3] sm:$0xff]
      %vm303 = vcmask 64512
      %v305 = vsel %vm303, %v298, 0
      %v308 = vsel %vm303, %v299, 0
      %v311 = vsel %vm303, %v300, 0
      %v314 = vsel %vm303, %v301, 0
      %316 = vmatprep.subr.mxu0 0.0
      %317 = vmatpush1.msra.mxu0 %v302
      %318 = vmatprep.subr.mxu0 0.0
      %319 = vmatpush1.msra.mxu0 0.0
      %320 = vmatprep.subr.mxu0 0.0
      %321 = vmatpush1.msra.mxu0 0.0
      %322 = vmatprep.subr.mxu0 0.0
      %323 = vmatpush1.msra.mxu0 0.0
      %324 = vmatprep.subr.mxu0 0.0
      %325 = vmatpush1.msra.mxu0 0.0
      %326 = vmatprep.subr.mxu0 0.0
      %327 = vmatpush1.msra.mxu0 0.0
      %328 = vmatprep.subr.mxu0 0.0
      %329 = vmatpush1.msra.mxu0 0.0
      %330 = vmatprep.subr.mxu0 0.0
      %331 = vmatpush1.msra.mxu0 0.0
      %332 = vmatprep.subr.mxu0 0.0
      %333 = vmatpush1.msra.mxu0 0.0
      %334 = vmatprep.subr.mxu0 0.0
      %335 = vmatpush1.msra.mxu0 0.0
      %336 = vmatprep.subr.mxu0 0.0
      %337 = vmatpush1.msra.mxu0 0.0
      %338 = vmatprep.subr.mxu0 0.0
      %339 = vmatpush1.msra.mxu0 0.0
      %340 = vmatprep.subr.mxu0 0.0
      %341 = vmatpush1.msra.mxu0 0.0
      %342 = vmatprep.subr.mxu0 0.0
      %343 = vmatpush1.msra.mxu0 0.0
      %344 = vmatprep.subr.mxu0 0.0
      %345 = vmatpush1.msra.mxu0 0.0
      %346 = vmatprep.subr.mxu0 0.0
      %347 = vmatpush1.msra.mxu0 0.0
      %348 = vmatprep.subr.mxu0 0.0
      %349 = vmatpush1.msra.mxu0 0.0
      %350 = vmatprep.subr.mxu0 0.0
      %351 = vmatpush1.msra.mxu0 0.0
      %352 = vmatprep.subr.mxu0 0.0
      %353 = vmatpush1.msra.mxu0 0.0
      %354 = vmatprep.subr.mxu0 0.0
      %355 = vmatpush1.msra.mxu0 0.0
      %356 = vmatprep.subr.mxu0 0.0
      %357 = vmatpush1.msra.mxu0 0.0
      %358 = vmatprep.subr.mxu0 0.0
      %359 = vmatpush1.msra.mxu0 0.0
      %360 = vmatprep.subr.mxu0 0.0
      %361 = vmatpush1.msra.mxu0 0.0
      %362 = vmatprep.subr.mxu0 0.0
      %363 = vmatpush1.msra.mxu0 0.0
      %364 = vmatprep.subr.mxu0 0.0
      %365 = vmatpush1.msra.mxu0 0.0
      %366 = vmatprep.subr.mxu0 0.0
      %367 = vmatpush1.msra.mxu0 0.0
      %368 = vmatprep.subr.mxu0 0.0
      %369 = vmatpush1.msra.mxu0 0.0
      %370 = vmatprep.subr.mxu0 0.0
      %371 = vmatpush1.msra.mxu0 0.0
      %372 = vmatprep.subr.mxu0 0.0
      %373 = vmatpush1.msra.mxu0 0.0
      %374 = vmatprep.subr.mxu0 0.0
      %375 = vmatpush1.msra.mxu0 0.0
      %376 = vmatprep.subr.mxu0 0.0
      %377 = vmatpush1.msra.mxu0 0.0
      %378 = vmatprep.subr.mxu0 0.0
      %379 = vmatpush1.msra.mxu0 0.0
      %380 = vmatprep.mubr.f32.mxu0 0.0
      %381 = vmatmul.mubr.f32.gmra.mrb[0].mxu0 %v305
      %v382 = vpop.f32.mrb[0].mxu0
      %v383 = vadd.f32 0.0, %v382
      %v384 = vpop.f32.mrb[0].mxu0
      %385 = vmatprep.mubr.f32.mxu0 0.0
      %386 = vmatmul.mubr.f32.gmra.mrb[0].mxu0 %v308
      %v387 = vpop.f32.mrb[0].mxu0
      %v388 = vadd.f32 0.0, %v387
      %v389 = vpop.f32.mrb[0].mxu0
      %390 = vmatprep.mubr.f32.mxu0 0.0
      %391 = vmatmul.mubr.f32.gmra.mrb[0].mxu0 %v311
      %v392 = vpop.f32.mrb[0].mxu0
      %v393 = vadd.f32 0.0, %v392
      %v394 = vpop.f32.mrb[0].mxu0
      %395 = vmatprep.mubr.f32.mxu0 0.0
      %396 = vmatmul.mubr.f32.gmra.mrb[0].mxu0 %v314
      %v397 = vpop.f32.mrb[0].mxu0
      %v398 = vadd.f32 0.0, %v397
      %v399 = vpop.f32.mrb[0].mxu0
      %400 = vdwg.mxu0
      %vm401 = vcmask 130048
      %402 = vst.msk [vmem:[%s264] sm:$0xff] %vm401, %v383
      %403 = vst.msk [vmem:[%s264 + $0x8] sm:$0xff] %vm401, %v388
      %404 = vst.msk [vmem:[%s264 + $0x10] sm:$0xff] %vm401, %v393
      %405 = vst.msk [vmem:[%s264 + $0x18] sm:$0xff] %vm401, %v398
      %v406 = vsel %vm401, %v383, 0.0
      %v407 = vsel %vm401, %v388, 0.0
      %v408 = vadd.f32 %v406, %v407
      %v409 = vsel %vm401, %v393, 0.0
      %v410 = vadd.f32 %v408, %v409
      %v411 = vsel %vm401, %v398, 0.0
      %v412 = vadd.f32 %v410, %v411
      %v413 = vrot.slane %v412, 4
      %v414 = vadd.f32 %v412, %v413
      %v415 = vrot.slane %v414, 2
      %v416 = vadd.f32 %v414, %v415
      %v417 = vrot.slane %v416, 1
      %v418 = vadd.f32 %v416, %v417
      %vm419 = vcmask 122880
      %420 = vst.msk [vmem:[%s268] sm:$0x1] %vm419, %v418
      %v421 = vmul.f32 %v383, %v383
      %v422 = vmul.f32 %v388, %v388
      %v423 = vmul.f32 %v393, %v393
      %v424 = vmul.f32 %v398, %v398
      %v425 = vsel %vm401, %v421, 0.0
      %v426 = vsel %vm401, %v422, 0.0
      %v427 = vadd.f32 %v425, %v426
      %v428 = vsel %vm401, %v423, 0.0
      %v429 = vadd.f32 %v427, %v428
      %v430 = vsel %vm401, %v424, 0.0
      %v431 = vadd.f32 %v429, %v430
      %v432 = vrot.slane %v431, 4
      %v433 = vadd.f32 %v431, %v432
      %v434 = vrot.slane %v433, 2
      %v435 = vadd.f32 %v433, %v434
      %v436 = vrot.slane %v435, 1
      %v437 = vadd.f32 %v435, %v436
      %438 = vst.msk [vmem:[%s271] sm:$0x1] %vm419, %v437
      %s439 = smul.u32 4, %s18
      %p440 = scmp.lt.s32.totalorder %s439, 15
      %s441 = scalar_select %p440, %s439, 15
      %s442 = smul.addr %s441, 8
      %s443 = scalar_lea.vmem %s4, %s442
      %p444 = scmp.lt.s32.totalorder %s18, 3
      %s445 = scalar_select %p444, %s18, 3
      %s446 = scalar_lea.vmem %s5, %s445
      %p447 = scmp.lt.s32.totalorder %s18, 3
      %s448 = scalar_select %p447, %s18, 3
      %s449 = scalar_lea.vmem %s6, %s448
      // Predicated region
      $region37: #{resnext_block_forward.6} parent=35 // pred_check
        %p450 = pneg %p125
      $region38: #{resnext_block_forward.6} parent=35 // pred_check_branch
        %452 = sbr.rel (%p450) target = $region40
      $region39: #{resnext_block_forward.6} parent=35 // pred_region
        %s453 = smul.u32 4, %s18
      $region40: #{resnext_block_forward.6} parent=35 // pred_fallthru
        _
      // Predicated region
      $region41: #{resnext_block_forward.6} parent=35 // pred_check
        %p454 = pneg %p151
      $region42: #{resnext_block_forward.6} parent=35 // pred_check_branch
        %456 = sbr.rel (%p454) target = $region44
      $region43: #{resnext_block_forward.6} parent=35 // pred_region
        _
      $region44: #{resnext_block_forward.6} parent=35 // pred_fallthru
        _
      // Predicated region
      $region45: #{resnext_block_forward.6} parent=35 // pred_check
        %p457 = pneg %p177
      $region46: #{resnext_block_forward.6} parent=35 // pred_check_branch
        %459 = sbr.rel (%p457) target = $region48
      $region47: #{resnext_block_forward.6} parent=35 // pred_region
        _
      $region48: #{resnext_block_forward.6} parent=35 // pred_fallthru
        _
    $region36: #{resnext_block_forward.6} parent=5 // pred_fallthru
      _
    %p460 = scmp.le.s32.totalorder 2, %s13
    // Predicated region
    $region49: #{resnext_block_forward.6} parent=5 // pred_check
      %p461 = pneg %p460
    $region50: #{resnext_block_forward.6} parent=5 // pred_check_branch
      %463 = sbr.rel (%p461) target = $region52
    $region51: #{resnext_block_forward.6} parent=5 // pred_region
      %s464 = ssub.s32 %s13, 2
      // Predicated region
      $region53: #{resnext_block_forward.6} parent=51 // pred_check
        %p465 = pneg %p131
      $region54: #{resnext_block_forward.6} parent=51 // pred_check_branch
        %467 = sbr.rel (%p465) target = $region56
      $region55: #{resnext_block_forward.6} parent=51 // pred_region
        %s468 = smul.u32 4, %s19
        %p469 = scmp.lt.s32.totalorder %s468, 15
        %s470 = scalar_select %p469, %s468, 15
        %s471 = smul.addr %s470, 8
        %s472 = scalar_lea.vmem %s4, %s471
      $region56: #{resnext_block_forward.6} parent=51 // pred_fallthru
        _
      // Predicated region
      $region57: #{resnext_block_forward.6} parent=51 // pred_check
        %p473 = pneg %p157
      $region58: #{resnext_block_forward.6} parent=51 // pred_check_branch
        %475 = sbr.rel (%p473) target = $region60
      $region59: #{resnext_block_forward.6} parent=51 // pred_region
        %p476 = scmp.lt.s32.totalorder %s19, 3
        %s477 = scalar_select %p476, %s19, 3
        %s478 = scalar_lea.vmem %s5, %s477
      $region60: #{resnext_block_forward.6} parent=51 // pred_fallthru
        _
      // Predicated region
      $region61: #{resnext_block_forward.6} parent=51 // pred_check
        %p479 = pneg %p183
      $region62: #{resnext_block_forward.6} parent=51 // pred_check_branch
        %481 = sbr.rel (%p479) target = $region64
      $region63: #{resnext_block_forward.6} parent=51 // pred_region
        %p482 = scmp.lt.s32.totalorder %s19, 3
        %s483 = scalar_select %p482, %s19, 3
        %s484 = scalar_lea.vmem %s6, %s483
      $region64: #{resnext_block_forward.6} parent=51 // pred_fallthru
        _
    $region52: #{resnext_block_forward.6} parent=5 // pred_fallthru
      _
  $region6: #{resnext_block_forward.6} parent=0 // loop_footer
    %s17 = sadd.s32 1, %s13
  $region7: #{resnext_block_forward.6} parent=0 // loop_footer_branch
    %12 = sbr.rel target = $region3
  $region8: #{resnext_block_forward.6} parent=0 // loop_exit
    _

// kernel: resnext_block_forward.4
$region0: #{resnext_block_forward.4}
  #allocation0 [shape = 'u32[]', space=smem, size = 0x4, offset = 0x4, fixed_abs, tag = 'smem constant byte address 0x4 - core index']
  #allocation1 [shape = 'u32[144,128]{1,0:T(1,128)}', space=vmem, size = 0x12000, scoped, tag = 'internal scratch']
  %s0 = inlined_call_operand.vmem [shape: f32[128,16], index: 0, kind: input, shape index: {}]
  %s1 = inlined_call_operand.vmem [shape: f32[16,8], index: 1, kind: input, shape index: {}]
  %s2 = inlined_call_operand.vmem [shape: f32[128,8], index: 2, kind: output, shape index: {0}]
  %s3 = inlined_call_operand.vmem [shape: f32[4,1,8], index: 3, kind: output, shape index: {1}]
  %s4 = inlined_call_operand.vmem [shape: f32[4,1,8], index: 4, kind: output, shape index: {2}]
  %5 = xla_tuple %s2, %s3, %s4
  %s6 = sld [smem:[#allocation0]]
  $region57: #{resnext_block_forward.4} parent=0
    _
  %s8 = ssub.s32 1, %s6
  %s9 = scalar_select 0, %s8, %s6
  loop: start=0, step=1, limit=6
  $region2: #{resnext_block_forward.4} parent=0 // loop_pre_header
    _
  $region3: #{resnext_block_forward.4} parent=0 // loop_header
    %s11 = sphi 0, %s15
    %p12 = scmp.ge.s32.totalorder %s11, 6
    %s21 = sphi 0, %s23
    %s24 = sphi 0, %s21
    %s25 = sphi 0, %s24
    %s41 = sphi 0, %s25
    %s45 = sphi 0, %s45
    %s47 = sphi 0, %s45
    %s48 = sphi 0, %s47
    %s62 = sphi 0, %s48
    %s68 = sphi 0, %s70
    %s71 = sphi 0, %s68
    %s72 = sphi 0, %s71
    %s88 = sphi 0, %s72
    %s94 = sphi 0, %s96
    %s97 = sphi 0, %s94
    %s98 = sphi 0, %s97
    %s114 = sphi 0, %s98
    %s120 = sphi 0, %s122
    %s123 = sphi 0, %s120
    %s124 = sphi 0, %s123
    %s140 = sphi 0, %s124
  $region4: #{resnext_block_forward.4} parent=0 // loop_header_branch
    %14 = sbr.rel (%p12) target = $region8
  $region5: #{resnext_block_forward.4} parent=0 // loop_body
    %s16 = ssub.s32 %s11, 1
    %s17 = ssub.s32 %s11, 2
    %s18 = sadd.s32 %s11, 1
    %s19 = ssub.s32 %s11, %s18
    %p20 = scmp.eq.s32.totalorder %s19, 0
    %s22 = sadd.s32 %s21, 1
    %s23 = scalar_select %p20, %s21, %s22
    %p26 = pneg %p20
    %p27 = scmp.eq.s32.totalorder %s11, 3
    %p28 = por %p26, %p27
    %p29 = scmp.ne.s32.totalorder %s21, %s24
    %p30 = scmp.eq.s32.totalorder %s11, 0
    %p31 = por %p29, %p30
    %p32 = scmp.ne.s32.totalorder %s21, %s24
    %p33 = scmp.eq.s32.totalorder %s16, 3
    %p34 = por %p32, %p33
    %p35 = scmp.ne.s32.totalorder %s24, %s25
    %p36 = scmp.eq.s32.totalorder %s16, 0
    %p37 = por %p35, %p36
    %p38 = scmp.ne.s32.totalorder %s24, %s25
    %p39 = scmp.eq.s32.totalorder %s17, 3
    %p40 = por %p38, %p39
    %p42 = scmp.ne.s32.totalorder %s25, %s41
    %p43 = scmp.eq.s32.totalorder %s17, 0
    %p44 = por %p42, %p43
    %s46 = sadd.s32 %s45, 1
    %p49 = scmp.eq.s32.totalorder %s11, 3
    %p50 = scmp.ne.s32.totalorder %s45, %s47
    %p51 = scmp.eq.s32.totalorder %s11, 0
    %p52 = por %p50, %p51
    %p53 = scmp.ne.s32.totalorder %s45, %s47
    %p54 = scmp.eq.s32.totalorder %s16, 3
    %p55 = por %p53, %p54
    %p56 = scmp.ne.s32.totalorder %s47, %s48
    %p57 = scmp.eq.s32.totalorder %s16, 0
    %p58 = por %p56, %p57
    %p59 = scmp.ne.s32.totalorder %s47, %s48
    %p60 = scmp.eq.s32.totalorder %s17, 3
    %p61 = por %p59, %p60
    %p63 = scmp.ne.s32.totalorder %s48, %s62
    %p64 = scmp.eq.s32.totalorder %s17, 0
    %p65 = por %p63, %p64
    %s66 = ssub.s32 %s11, %s18
    %p67 = scmp.eq.s32.totalorder %s66, 0
    %s69 = sadd.s32 %s68, 1
    %s70 = scalar_select %p67, %s68, %s69
    %p73 = pneg %p67
    %p74 = scmp.eq.s32.totalorder %s11, 3
    %p75 = por %p73, %p74
    %p76 = scmp.ne.s32.totalorder %s68, %s71
    %p77 = scmp.eq.s32.totalorder %s11, 0
    %p78 = por %p76, %p77
    %p79 = scmp.ne.s32.totalorder %s68, %s71
    %p80 = scmp.eq.s32.totalorder %s16, 3
    %p81 = por %p79, %p80
    %p82 = scmp.ne.s32.totalorder %s71, %s72
    %p83 = scmp.eq.s32.totalorder %s16, 0
    %p84 = por %p82, %p83
    %p85 = scmp.ne.s32.totalorder %s71, %s72
    %p86 = scmp.eq.s32.totalorder %s17, 3
    %p87 = por %p85, %p86
    %p89 = scmp.ne.s32.totalorder %s72, %s88
    %p90 = scmp.eq.s32.totalorder %s17, 0
    %p91 = por %p89, %p90
    %s92 = ssub.s32 %s11, %s18
    %p93 = scmp.eq.s32.totalorder %s92, 0
    %s95 = sadd.s32 %s94, 1
    %s96 = scalar_select %p93, %s94, %s95
    %p99 = pneg %p93
    %p100 = scmp.eq.s32.totalorder %s11, 3
    %p101 = por %p99, %p100
    %p102 = scmp.ne.s32.totalorder %s94, %s97
    %p103 = scmp.eq.s32.totalorder %s11, 0
    %p104 = por %p102, %p103
    %p105 = scmp.ne.s32.totalorder %s94, %s97
    %p106 = scmp.eq.s32.totalorder %s16, 3
    %p107 = por %p105, %p106
    %p108 = scmp.ne.s32.totalorder %s97, %s98
    %p109 = scmp.eq.s32.totalorder %s16, 0
    %p110 = por %p108, %p109
    %p111 = scmp.ne.s32.totalorder %s97, %s98
    %p112 = scmp.eq.s32.totalorder %s17, 3
    %p113 = por %p111, %p112
    %p115 = scmp.ne.s32.totalorder %s98, %s114
    %p116 = scmp.eq.s32.totalorder %s17, 0
    %p117 = por %p115, %p116
    %s118 = ssub.s32 %s11, %s18
    %p119 = scmp.eq.s32.totalorder %s118, 0
    %s121 = sadd.s32 %s120, 1
    %s122 = scalar_select %p119, %s120, %s121
    %p125 = pneg %p119
    %p126 = scmp.eq.s32.totalorder %s11, 3
    %p127 = por %p125, %p126
    %p128 = scmp.ne.s32.totalorder %s120, %s123
    %p129 = scmp.eq.s32.totalorder %s11, 0
    %p130 = por %p128, %p129
    %p131 = scmp.ne.s32.totalorder %s120, %s123
    %p132 = scmp.eq.s32.totalorder %s16, 3
    %p133 = por %p131, %p132
    %p134 = scmp.ne.s32.totalorder %s123, %s124
    %p135 = scmp.eq.s32.totalorder %s16, 0
    %p136 = por %p134, %p135
    %p137 = scmp.ne.s32.totalorder %s123, %s124
    %p138 = scmp.eq.s32.totalorder %s17, 3
    %p139 = por %p137, %p138
    %p141 = scmp.ne.s32.totalorder %s124, %s140
    %p142 = scmp.eq.s32.totalorder %s17, 0
    %p143 = por %p141, %p142
    %p144 = scmp.le.s32.totalorder 1, %s11
    %p145 = scmp.lt.s32.totalorder %s11, 5
    %p146 = pnand %p144, %p145
    %p147 = pneg %p146
    // Predicated region
    $region9: #{resnext_block_forward.4} parent=5 // pred_check
      _
    $region10: #{resnext_block_forward.4} parent=5 // pred_check_branch
      %149 = sbr.rel (%p146) target = $region12
    $region11: #{resnext_block_forward.4} parent=5 // pred_region
      %s150 = ssub.s32 %s11, 1
      // Predicated region
      $region13: #{resnext_block_forward.4} parent=11 // pred_check
        %p151 = pneg %p58
      $region14: #{resnext_block_forward.4} parent=11 // pred_check_branch
        %153 = sbr.rel (%p151) target = $region16
      $region15: #{resnext_block_forward.4} parent=11 // pred_region
        _
      $region16: #{resnext_block_forward.4} parent=11 // pred_fallthru
        _
    $region12: #{resnext_block_forward.4} parent=5 // pred_fallthru
      _
    %p154 = scmp.lt.s32.totalorder %s11, 4
    // Predicated region
    $region17: #{resnext_block_forward.4} parent=5 // pred_check
      %p155 = pneg %p154
    $region18: #{resnext_block_forward.4} parent=5 // pred_check_branch
      %157 = sbr.rel (%p155) target = $region20
    $region19: #{resnext_block_forward.4} parent=5 // pred_region
      // Predicated region
      $region21: #{resnext_block_forward.4} parent=19 // pred_check
        %p158 = pneg %p31
      $region22: #{resnext_block_forward.4} parent=19 // pred_check_branch
        %160 = sbr.rel (%p158) target = $region24
      $region23: #{resnext_block_forward.4} parent=19 // pred_region
        %s161 = smul.u32 4, %s11
        %p162 = scmp.lt.s32.totalorder %s161, 15
        %s163 = scalar_select %p162, %s161, 15
        %s164 = smul.addr %s163, 8
        %s165 = scalar_lea.vmem %s0, %s164
        %s166 = smul.u32 4, %s11
      $region24: #{resnext_block_forward.4} parent=19 // pred_fallthru
        _
    $region20: #{resnext_block_forward.4} parent=5 // pred_fallthru
      _
    %p167 = scmp.le.s32.totalorder 1, %s11
    %p168 = scmp.lt.s32.totalorder %s11, 5
    %p169 = pnand %p167, %p168
    %p170 = pneg %p169
    // Predicated region
    $region25: #{resnext_block_forward.4} parent=5 // pred_check
      _
    $region26: #{resnext_block_forward.4} parent=5 // pred_check_branch
      %172 = sbr.rel (%p169) target = $region28
    $region27: #{resnext_block_forward.4} parent=5 // pred_region
      %s173 = ssub.s32 %s11, 1
      %s174 = smul.u32 4, %s16
      %p175 = scmp.lt.s32.totalorder %s174, 15
      %s176 = scalar_select %p175, %s174, 15
      %s177 = smul.addr %s176, 8
      %s178 = scalar_lea.vmem %s0, %s177
      %p179 = pneg %p37
      %p180 = pneg %p34
      %p181 = pneg %p58
      %p182 = pneg %p55
      %p183 = pneg %p84
      %p184 = pneg %p81
      %s185 = smul.u32 4, %s16
      %p186 = scmp.lt.s32.totalorder %s185, 15
      %s187 = scalar_select %p186, %s185, 15
      %s188 = smul.addr %s187, 8
      %s189 = scalar_lea.vmem %s2, %s188
      %p190 = pneg %p110
      %p191 = pneg %p107
      %p192 = scmp.lt.s32.totalorder %s16, 3
      %s193 = scalar_select %p192, %s16, 3
      %s194 = scalar_lea.vmem %s3, %s193
      %p195 = pneg %p136
      %p196 = pneg %p133
      %p197 = scmp.lt.s32.totalorder %s16, 3
      %s198 = scalar_select %p197, %s16, 3
      %s199 = scalar_lea.vmem %s4, %s198
      %s200 = smul.u32 4, %s16
      %p201 = scmp.lt.s32.totalorder %s200, 15
      %s202 = scalar_select %p201, %s200, 15
      %s203 = smul.addr %s202, 8
      %s204 = scalar_lea.vmem %s0, %s203
      %s205 = smul.u32 4, %s16
      %s206 = smul.u32 4, %s16
      %p207 = scmp.lt.s32.totalorder %s206, 15
      %s208 = scalar_select %p207, %s206, 15
      %s209 = smul.addr %s208, 8
      %s210 = scalar_lea.vmem %s2, %s209
      %s211 = smul.u32 4, %s16
      %p212 = scmp.lt.s32.totalorder %s16, 3
      %s213 = scalar_select %p212, %s16, 3
      %s214 = scalar_lea.vmem %s3, %s213
      %p215 = scmp.lt.s32.totalorder %s16, 3
      %s216 = scalar_select %p215, %s16, 3
      %s217 = scalar_lea.vmem %s4, %s216
      %v218 = vld [vmem:[%s204] sm:$0xff]
      %v219 = vld [vmem:[%s204 + $0x8] sm:$0xff]
      %v220 = vld [vmem:[%s204 + $0x10] sm:$0xff]
      %v221 = vld [vmem:[%s204 + $0x18] sm:$0xff]
      %v222 = vld [vmem:[%s1] sm:$0xff]
      %v223 = vld [vmem:[%s1 + $0x8] sm:$0xff]
      %vm224 = vcmask 130048
      %v226 = vsel %vm224, %v218, 0
      %v229 = vsel %vm224, %v219, 0
      %v232 = vsel %vm224, %v220, 0
      %v235 = vsel %vm224, %v221, 0
      %237 = vmatprep.subr.mxu0 0.0
      %238 = vmatpush1.msra.mxu0 %v222
      %239 = vmatprep.subr.mxu0 0.0
      %240 = vmatpush1.msra.mxu0 %v223
      %241 = vmatprep.subr.mxu0 0.0
      %242 = vmatpush1.msra.mxu0 0.0
      %243 = vmatprep.subr.mxu0 0.0
      %244 = vmatpush1.msra.mxu0 0.0
      %245 = vmatprep.subr.mxu0 0.0
      %246 = vmatpush1.msra.mxu0 0.0
      %247 = vmatprep.subr.mxu0 0.0
      %248 = vmatpush1.msra.mxu0 0.0
      %249 = vmatprep.subr.mxu0 0.0
      %250 = vmatpush1.msra.mxu0 0.0
      %251 = vmatprep.subr.mxu0 0.0
      %252 = vmatpush1.msra.mxu0 0.0
      %253 = vmatprep.subr.mxu0 0.0
      %254 = vmatpush1.msra.mxu0 0.0
      %255 = vmatprep.subr.mxu0 0.0
      %256 = vmatpush1.msra.mxu0 0.0
      %257 = vmatprep.subr.mxu0 0.0
      %258 = vmatpush1.msra.mxu0 0.0
      %259 = vmatprep.subr.mxu0 0.0
      %260 = vmatpush1.msra.mxu0 0.0
      %261 = vmatprep.subr.mxu0 0.0
      %262 = vmatpush1.msra.mxu0 0.0
      %263 = vmatprep.subr.mxu0 0.0
      %264 = vmatpush1.msra.mxu0 0.0
      %265 = vmatprep.subr.mxu0 0.0
      %266 = vmatpush1.msra.mxu0 0.0
      %267 = vmatprep.subr.mxu0 0.0
      %268 = vmatpush1.msra.mxu0 0.0
      %269 = vmatprep.subr.mxu0 0.0
      %270 = vmatpush1.msra.mxu0 0.0
      %271 = vmatprep.subr.mxu0 0.0
      %272 = vmatpush1.msra.mxu0 0.0
      %273 = vmatprep.subr.mxu0 0.0
      %274 = vmatpush1.msra.mxu0 0.0
      %275 = vmatprep.subr.mxu0 0.0
      %276 = vmatpush1.msra.mxu0 0.0
      %277 = vmatprep.subr.mxu0 0.0
      %278 = vmatpush1.msra.mxu0 0.0
      %279 = vmatprep.subr.mxu0 0.0
      %280 = vmatpush1.msra.mxu0 0.0
      %281 = vmatprep.subr.mxu0 0.0
      %282 = vmatpush1.msra.mxu0 0.0
      %283 = vmatprep.subr.mxu0 0.0
      %284 = vmatpush1.msra.mxu0 0.0
      %285 = vmatprep.subr.mxu0 0.0
      %286 = vmatpush1.msra.mxu0 0.0
      %287 = vmatprep.subr.mxu0 0.0
      %288 = vmatpush1.msra.mxu0 0.0
      %289 = vmatprep.subr.mxu0 0.0
      %290 = vmatpush1.msra.mxu0 0.0
      %291 = vmatprep.subr.mxu0 0.0
      %292 = vmatpush1.msra.mxu0 0.0
      %293 = vmatprep.subr.mxu0 0.0
      %294 = vmatpush1.msra.mxu0 0.0
      %295 = vmatprep.subr.mxu0 0.0
      %296 = vmatpush1.msra.mxu0 0.0
      %297 = vmatprep.subr.mxu0 0.0
      %298 = vmatpush1.msra.mxu0 0.0
      %299 = vmatprep.subr.mxu0 0.0
      %300 = vmatpush1.msra.mxu0 0.0
      %301 = vmatprep.mubr.f32.mxu0 0.0
      %302 = vmatmul.mubr.f32.gmra.mrb[0].mxu0 %v226
      %v303 = vpop.f32.mrb[0].mxu0
      %v304 = vadd.f32 0.0, %v303
      %v305 = vpop.f32.mrb[0].mxu0
      %306 = vmatprep.mubr.f32.mxu0 0.0
      %307 = vmatmul.mubr.f32.gmra.mrb[0].mxu0 %v229
      %v308 = vpop.f32.mrb[0].mxu0
      %v309 = vadd.f32 0.0, %v308
      %v310 = vpop.f32.mrb[0].mxu0
      %311 = vmatprep.mubr.f32.mxu0 0.0
      %312 = vmatmul.mubr.f32.gmra.mrb[0].mxu0 %v232
      %v313 = vpop.f32.mrb[0].mxu0
      %v314 = vadd.f32 0.0, %v313
      %v315 = vpop.f32.mrb[0].mxu0
      %316 = vmatprep.mubr.f32.mxu0 0.0
      %317 = vmatmul.mubr.f32.gmra.mrb[0].mxu0 %v235
      %v318 = vpop.f32.mrb[0].mxu0
      %v319 = vadd.f32 0.0, %v318
      %v320 = vpop.f32.mrb[0].mxu0
      %321 = vdwg.mxu0
      %vm322 = vcmask 64512
      %323 = vst.msk [vmem:[%s210] sm:$0xff] %vm322, %v304
      %324 = vst.msk [vmem:[%s210 + $0x8] sm:$0xff] %vm322, %v309
      %325 = vst.msk [vmem:[%s210 + $0x10] sm:$0xff] %vm322, %v314
      %326 = vst.msk [vmem:[%s210 + $0x18] sm:$0xff] %vm322, %v319
      %v327 = vsel %vm322, %v304, 0.0
      %v328 = vsel %vm322, %v309, 0.0
      %v329 = vadd.f32 %v327, %v328
      %v330 = vsel %vm322, %v314, 0.0
      %v331 = vadd.f32 %v329, %v330
      %v332 = vsel %vm322, %v319, 0.0
      %v333 = vadd.f32 %v331, %v332
      %v334 = vrot.slane %v333, 4
      %v335 = vadd.f32 %v333, %v334
      %v336 = vrot.slane %v335, 2
      %v337 = vadd.f32 %v335, %v336
      %v338 = vrot.slane %v337, 1
      %v339 = vadd.f32 %v337, %v338
      %vm340 = vcmask 57344
      %341 = vst.msk [vmem:[%s214] sm:$0x1] %vm340, %v339
      %v342 = vmul.f32 %v304, %v304
      %v343 = vmul.f32 %v309, %v309
      %v344 = vmul.f32 %v314, %v314
      %v345 = vmul.f32 %v319, %v319
      %v346 = vsel %vm322, %v342, 0.0
      %v347 = vsel %vm322, %v343, 0.0
      %v348 = vadd.f32 %v346, %v347
      %v349 = vsel %vm322, %v344, 0.0
      %v350 = vadd.f32 %v348, %v349
      %v351 = vsel %vm322, %v345, 0.0
      %v352 = vadd.f32 %v350, %v351
      %v353 = vrot.slane %v352, 4
      %v354 = vadd.f32 %v352, %v353
      %v355 = vrot.slane %v354, 2
      %v356 = vadd.f32 %v354, %v355
      %v357 = vrot.slane %v356, 1
      %v358 = vadd.f32 %v356, %v357
      %359 = vst.msk [vmem:[%s217] sm:$0x1] %vm340, %v358
      %s360 = smul.u32 4, %s16
      %p361 = scmp.lt.s32.totalorder %s360, 15
      %s362 = scalar_select %p361, %s360, 15
      %s363 = smul.addr %s362, 8
      %s364 = scalar_lea.vmem %s2, %s363
      %p365 = scmp.lt.s32.totalorder %s16, 3
      %s366 = scalar_select %p365, %s16, 3
      %s367 = scalar_lea.vmem %s3, %s366
      %p368 = scmp.lt.s32.totalorder %s16, 3
      %s369 = scalar_select %p368, %s16, 3
      %s370 = scalar_lea.vmem %s4, %s369
      // Predicated region
      $region29: #{resnext_block_forward.4} parent=27 // pred_check
        %p371 = pneg %p81
      $region30: #{resnext_block_forward.4} parent=27 // pred_check_branch
        %373 = sbr.rel (%p371) target = $region32
      $region31: #{resnext_block_forward.4} parent=27 // pred_region
        %s374 = smul.u32 4, %s16
      $region32: #{resnext_block_forward.4} parent=27 // pred_fallthru
        _
      // Predicated region
      $region33: #{resnext_block_forward.4} parent=27 // pred_check
        %p375 = pneg %p107
      $region34: #{resnext_block_forward.4} parent=27 // pred_check_branch
        %377 = sbr.rel (%p375) target = $region36
      $region35: #{resnext_block_forward.4} parent=27 // pred_region
        _
      $region36: #{resnext_block_forward.4} parent=27 // pred_fallthru
        _
      // Predicated region
      $region37: #{resnext_block_forward.4} parent=27 // pred_check
        %p378 = pneg %p133
      $region38: #{resnext_block_forward.4} parent=27 // pred_check_branch
        %380 = sbr.rel (%p378) target = $region40
      $region39: #{resnext_block_forward.4} parent=27 // pred_region
        _
      $region40: #{resnext_block_forward.4} parent=27 // pred_fallthru
        _
    $region28: #{resnext_block_forward.4} parent=5 // pred_fallthru
      _
    %p381 = scmp.le.s32.totalorder 2, %s11
    // Predicated region
    $region41: #{resnext_block_forward.4} parent=5 // pred_check
      %p382 = pneg %p381
    $region42: #{resnext_block_forward.4} parent=5 // pred_check_branch
      %384 = sbr.rel (%p382) target = $region44
    $region43: #{resnext_block_forward.4} parent=5 // pred_region
      %s385 = ssub.s32 %s11, 2
      // Predicated region
      $region45: #{resnext_block_forward.4} parent=43 // pred_check
        %p386 = pneg %p87
      $region46: #{resnext_block_forward.4} parent=43 // pred_check_branch
        %388 = sbr.rel (%p386) target = $region48
      $region47: #{resnext_block_forward.4} parent=43 // pred_region
        %s389 = smul.u32 4, %s17
        %p390 = scmp.lt.s32.totalorder %s389, 15
        %s391 = scalar_select %p390, %s389, 15
        %s392 = smul.addr %s391, 8
        %s393 = scalar_lea.vmem %s2, %s392
      $region48: #{resnext_block_forward.4} parent=43 // pred_fallthru
        _
      // Predicated region
      $region49: #{resnext_block_forward.4} parent=43 // pred_check
        %p394 = pneg %p113
      $region50: #{resnext_block_forward.4} parent=43 // pred_check_branch
        %396 = sbr.rel (%p394) target = $region52
      $region51: #{resnext_block_forward.4} parent=43 // pred_region
        %p397 = scmp.lt.s32.totalorder %s17, 3
        %s398 = scalar_select %p397, %s17, 3
        %s399 = scalar_lea.vmem %s3, %s398
      $region52: #{resnext_block_forward.4} parent=43 // pred_fallthru
        _
      // Predicated region
      $region53: #{resnext_block_forward.4} parent=43 // pred_check
        %p400 = pneg %p139
      $region54: #{resnext_block_forward.4} parent=43 // pred_check_branch
        %402 = sbr.rel (%p400) target = $region56
      $region55: #{resnext_block_forward.4} parent=43 // pred_region
        %p403 = scmp.lt.s32.totalorder %s17, 3
        %s404 = scalar_select %p403, %s17, 3
        %s405 = scalar_lea.vmem %s4, %s404
      $region56: #{resnext_block_forward.4} parent=43 // pred_fallthru
        _
    $region44: #{resnext_block_forward.4} parent=5 // pred_fallthru
      _
  $region6: #{resnext_block_forward.4} parent=0 // loop_footer
    %s15 = sadd.s32 1, %s11
  $region7: #{resnext_block_forward.4} parent=0 // loop_footer_branch
    %10 = sbr.rel target = $region3
  $region8: #{resnext_block_forward.4} parent=0 // loop_exit
    _

// kernel: resnext_block_forward.7
$region0: #{resnext_block_forward.7}
  #allocation0 [shape = 'u32[]', space=smem, size = 0x4, offset = 0x4, fixed_abs, tag = 'smem constant byte address 0x4 - core index']
  #allocation1 [shape = 'u32[144,128]{1,0:T(1,128)}', space=vmem, size = 0x12000, scoped, tag = 'internal scratch']
  %s0 = inlined_call_operand.vmem [shape: f32[128,16], index: 0, kind: input, shape index: {}]
  %s1 = inlined_call_operand.vmem [shape: f32[128,16], index: 1, kind: input, shape index: {}]
  %s2 = inlined_call_operand.vmem [shape: f32[1,16], index: 2, kind: input, shape index: {}]
  %s3 = inlined_call_operand.vmem [shape: f32[1,16], index: 3, kind: input, shape index: {}]
  %s4 = inlined_call_operand.hbm [shape: f32[128,16], index: 4, kind: output, shape index: {}]
  %s5 = sld [smem:[#allocation0]]
  $region49: #{resnext_block_forward.7} parent=0
    _
  %s7 = ssub.s32 1, %s5
  %s8 = scalar_select 0, %s7, %s5
  $region1: #{resnext_block_forward.7} parent=0
    #allocation2 [shape = 'u8[32768]{0}', space=vmem, size = 0x8000, scoped, tag = 'output window, operand 0']
    #allocation3 [shape = 's32[2]{0}', space=sflag, size = 0x8, scoped, tag = 'scoped memory for resnext_block_forward.7']
    %9 = vsyncpa [#allocation3], 0
    %s10 = scalar_lea.sflag [#allocation3], 1
    %11 = vsyncpa %s10, 0
    loop: start=0, step=1, limit=6
    $region2: #{resnext_block_forward.7} parent=1 // loop_pre_header
      _
    $region3: #{resnext_block_forward.7} parent=1 // loop_header
      %s13 = sphi 0, %s17
      %p14 = scmp.ge.s32.totalorder %s13, 6
      %s23 = sphi 0, %s25
      %s26 = sphi 0, %s23
      %s27 = sphi 0, %s26
      %s43 = sphi 0, %s27
      %s49 = sphi 0, %s51
      %s52 = sphi 0, %s49
      %s53 = sphi 0, %s52
      %s69 = sphi 0, %s53
      %s73 = sphi 0, %s73
      %s75 = sphi 0, %s73
      %s76 = sphi 0, %s75
      %s90 = sphi 0, %s76
      %s94 = sphi 0, %s94
      %s96 = sphi 0, %s94
      %s97 = sphi 0, %s96
      %s111 = sphi 0, %s97
      %s117 = sphi 0, %s119
      %s120 = sphi 0, %s117
      %s121 = sphi 0, %s120
      %s137 = sphi 0, %s121
    $region4: #{resnext_block_forward.7} parent=1 // loop_header_branch
      %16 = sbr.rel (%p14) target = $region8
    $region5: #{resnext_block_forward.7} parent=1 // loop_body
      %s18 = ssub.s32 %s13, 1
      %s19 = ssub.s32 %s13, 2
      %s20 = sadd.s32 %s13, 1
      %s21 = ssub.s32 %s13, %s20
      %p22 = scmp.eq.s32.totalorder %s21, 0
      %s24 = sadd.s32 %s23, 1
      %s25 = scalar_select %p22, %s23, %s24
      %p28 = pneg %p22
      %p29 = scmp.eq.s32.totalorder %s13, 3
      %p30 = por %p28, %p29
      %p31 = scmp.ne.s32.totalorder %s23, %s26
      %p32 = scmp.eq.s32.totalorder %s13, 0
      %p33 = por %p31, %p32
      %p34 = scmp.ne.s32.totalorder %s23, %s26
      %p35 = scmp.eq.s32.totalorder %s18, 3
      %p36 = por %p34, %p35
      %p37 = scmp.ne.s32.totalorder %s26, %s27
      %p38 = scmp.eq.s32.totalorder %s18, 0
      %p39 = por %p37, %p38
      %p40 = scmp.ne.s32.totalorder %s26, %s27
      %p41 = scmp.eq.s32.totalorder %s19, 3
      %p42 = por %p40, %p41
      %p44 = scmp.ne.s32.totalorder %s27, %s43
      %p45 = scmp.eq.s32.totalorder %s19, 0
      %p46 = por %p44, %p45
      %s47 = ssub.s32 %s13, %s20
      %p48 = scmp.eq.s32.totalorder %s47, 0
      %s50 = sadd.s32 %s49, 1
      %s51 = scalar_select %p48, %s49, %s50
      %p54 = pneg %p48
      %p55 = scmp.eq.s32.totalorder %s13, 3
      %p56 = por %p54, %p55
      %p57 = scmp.ne.s32.totalorder %s49, %s52
      %p58 = scmp.eq.s32.totalorder %s13, 0
      %p59 = por %p57, %p58
      %p60 = scmp.ne.s32.totalorder %s49, %s52
      %p61 = scmp.eq.s32.totalorder %s18, 3
      %p62 = por %p60, %p61
      %p63 = scmp.ne.s32.totalorder %s52, %s53
      %p64 = scmp.eq.s32.totalorder %s18, 0
      %p65 = por %p63, %p64
      %p66 = scmp.ne.s32.totalorder %s52, %s53
      %p67 = scmp.eq.s32.totalorder %s19, 3
      %p68 = por %p66, %p67
      %p70 = scmp.ne.s32.totalorder %s53, %s69
      %p71 = scmp.eq.s32.totalorder %s19, 0
      %p72 = por %p70, %p71
      %s74 = sadd.s32 %s73, 1
      %p77 = scmp.eq.s32.totalorder %s13, 3
      %p78 = scmp.ne.s32.totalorder %s73, %s75
      %p79 = scmp.eq.s32.totalorder %s13, 0
      %p80 = por %p78, %p79
      %p81 = scmp.ne.s32.totalorder %s73, %s75
      %p82 = scmp.eq.s32.totalorder %s18, 3
      %p83 = por %p81, %p82
      %p84 = scmp.ne.s32.totalorder %s75, %s76
      %p85 = scmp.eq.s32.totalorder %s18, 0
      %p86 = por %p84, %p85
      %p87 = scmp.ne.s32.totalorder %s75, %s76
      %p88 = scmp.eq.s32.totalorder %s19, 3
      %p89 = por %p87, %p88
      %p91 = scmp.ne.s32.totalorder %s76, %s90
      %p92 = scmp.eq.s32.totalorder %s19, 0
      %p93 = por %p91, %p92
      %s95 = sadd.s32 %s94, 1
      %p98 = scmp.eq.s32.totalorder %s13, 3
      %p99 = scmp.ne.s32.totalorder %s94, %s96
      %p100 = scmp.eq.s32.totalorder %s13, 0
      %p101 = por %p99, %p100
      %p102 = scmp.ne.s32.totalorder %s94, %s96
      %p103 = scmp.eq.s32.totalorder %s18, 3
      %p104 = por %p102, %p103
      %p105 = scmp.ne.s32.totalorder %s96, %s97
      %p106 = scmp.eq.s32.totalorder %s18, 0
      %p107 = por %p105, %p106
      %p108 = scmp.ne.s32.totalorder %s96, %s97
      %p109 = scmp.eq.s32.totalorder %s19, 3
      %p110 = por %p108, %p109
      %p112 = scmp.ne.s32.totalorder %s97, %s111
      %p113 = scmp.eq.s32.totalorder %s19, 0
      %p114 = por %p112, %p113
      %s115 = ssub.s32 %s13, %s20
      %p116 = scmp.eq.s32.totalorder %s115, 0
      %s118 = sadd.s32 %s117, 1
      %s119 = scalar_select %p116, %s117, %s118
      %p122 = pneg %p116
      %p123 = scmp.eq.s32.totalorder %s13, 3
      %p124 = por %p122, %p123
      %p125 = scmp.ne.s32.totalorder %s117, %s120
      %p126 = scmp.eq.s32.totalorder %s13, 0
      %p127 = por %p125, %p126
      %p128 = scmp.ne.s32.totalorder %s117, %s120
      %p129 = scmp.eq.s32.totalorder %s18, 3
      %p130 = por %p128, %p129
      %p131 = scmp.ne.s32.totalorder %s120, %s121
      %p132 = scmp.eq.s32.totalorder %s18, 0
      %p133 = por %p131, %p132
      %p134 = scmp.ne.s32.totalorder %s120, %s121
      %p135 = scmp.eq.s32.totalorder %s19, 3
      %p136 = por %p134, %p135
      %p138 = scmp.ne.s32.totalorder %s121, %s137
      %p139 = scmp.eq.s32.totalorder %s19, 0
      %p140 = por %p138, %p139
      %p141 = scmp.le.s32.totalorder 1, %s13
      %p142 = scmp.lt.s32.totalorder %s13, 5
      %p143 = pnand %p141, %p142
      %p144 = pneg %p143
      // Predicated region
      $region9: #{resnext_block_forward.7} parent=5 // pred_check
        _
      $region10: #{resnext_block_forward.7} parent=5 // pred_check_branch
        %146 = sbr.rel (%p143) target = $region12
      $region11: #{resnext_block_forward.7} parent=5 // pred_region
        %s147 = ssub.s32 %s13, 1
        // Predicated region
        $region13: #{resnext_block_forward.7} parent=11 // pred_check
          %p148 = pneg %p86
        $region14: #{resnext_block_forward.7} parent=11 // pred_check_branch
          %150 = sbr.rel (%p148) target = $region16
        $region15: #{resnext_block_forward.7} parent=11 // pred_region
          _
        $region16: #{resnext_block_forward.7} parent=11 // pred_fallthru
          _
        // Predicated region
        $region17: #{resnext_block_forward.7} parent=11 // pred_check
          %p151 = pneg %p107
        $region18: #{resnext_block_forward.7} parent=11 // pred_check_branch
          %153 = sbr.rel (%p151) target = $region20
        $region19: #{resnext_block_forward.7} parent=11 // pred_region
          _
        $region20: #{resnext_block_forward.7} parent=11 // pred_fallthru
          _
      $region12: #{resnext_block_forward.7} parent=5 // pred_fallthru
        _
      %p154 = scmp.lt.s32.totalorder %s13, 4
      // Predicated region
      $region21: #{resnext_block_forward.7} parent=5 // pred_check
        %p155 = pneg %p154
      $region22: #{resnext_block_forward.7} parent=5 // pred_check_branch
        %157 = sbr.rel (%p155) target = $region24
      $region23: #{resnext_block_forward.7} parent=5 // pred_region
        // Predicated region
        $region25: #{resnext_block_forward.7} parent=23 // pred_check
          %p158 = pneg %p33
        $region26: #{resnext_block_forward.7} parent=23 // pred_check_branch
          %160 = sbr.rel (%p158) target = $region28
        $region27: #{resnext_block_forward.7} parent=23 // pred_region
          %s161 = smul.u32 4, %s13
          %p162 = scmp.lt.s32.totalorder %s161, 15
          %s163 = scalar_select %p162, %s161, 15
          %s164 = smul.addr %s163, 8
          %s165 = scalar_lea.vmem %s0, %s164
          %s166 = smul.u32 4, %s13
        $region28: #{resnext_block_forward.7} parent=23 // pred_fallthru
          _
        // Predicated region
        $region29: #{resnext_block_forward.7} parent=23 // pred_check
          %p167 = pneg %p59
        $region30: #{resnext_block_forward.7} parent=23 // pred_check_branch
          %169 = sbr.rel (%p167) target = $region32
        $region31: #{resnext_block_forward.7} parent=23 // pred_region
          %s170 = smul.u32 4, %s13
          %p171 = scmp.lt.s32.totalorder %s170, 15
          %s172 = scalar_select %p171, %s170, 15
          %s173 = smul.addr %s172, 8
          %s174 = scalar_lea.vmem %s1, %s173
          %s175 = smul.u32 4, %s13
        $region32: #{resnext_block_forward.7} parent=23 // pred_fallthru
          _
      $region24: #{resnext_block_forward.7} parent=5 // pred_fallthru
        _
      %p176 = scmp.le.s32.totalorder 1, %s13
      %p177 = scmp.lt.s32.totalorder %s13, 5
      %p178 = pnand %p176, %p177
      %p179 = pneg %p178
      // Predicated region
      $region33: #{resnext_block_forward.7} parent=5 // pred_check
        _
      $region34: #{resnext_block_forward.7} parent=5 // pred_check_branch
        %181 = sbr.rel (%p178) target = $region36
      $region35: #{resnext_block_forward.7} parent=5 // pred_region
        %s182 = ssub.s32 %s13, 1
        %s183 = smul.u32 4, %s18
        %p184 = scmp.lt.s32.totalorder %s183, 15
        %s185 = scalar_select %p184, %s183, 15
        %s186 = smul.addr %s185, 8
        %s187 = scalar_lea.vmem %s0, %s186
        %p188 = pneg %p39
        %p189 = pneg %p36
        %s190 = smul.u32 4, %s18
        %p191 = scmp.lt.s32.totalorder %s190, 15
        %s192 = scalar_select %p191, %s190, 15
        %s193 = smul.addr %s192, 8
        %s194 = scalar_lea.vmem %s1, %s193
        %p195 = pneg %p65
        %p196 = pneg %p62
        %p197 = pneg %p86
        %p198 = pneg %p83
        %p199 = pneg %p107
        %p200 = pneg %p104
        %p201 = pneg %p133
        %p202 = pneg %p130
        %s203 = sand.u32 %s120, 1
        %s204 = scalar_lea.sflag [#allocation3], %s203
        %s205 = sand.u32 %s120, 1
        %s206 = smul.addr %s205, 32
        %s207 = scalar_lea.vmem [#allocation2], %s206
        %s208 = smul.u32 4, %s18
        %p209 = scmp.lt.s32.totalorder %s208, 15
        %s210 = scalar_select %p209, %s208, 15
        %s211 = smul.addr %s210, 8
        %s212 = scalar_lea.vmem %s0, %s211
        %s213 = smul.u32 4, %s18
        %s214 = smul.u32 4, %s18
        %p215 = scmp.lt.s32.totalorder %s214, 15
        %s216 = scalar_select %p215, %s214, 15
        %s217 = smul.addr %s216, 8
        %s218 = scalar_lea.vmem %s1, %s217
        %s219 = smul.u32 4, %s18
        %s220 = smul.u32 4, %s18
        %v221 = vld [vmem:[%s212] sm:$0xff]
        %v222 = vld [vmem:[%s212 + $0x8] sm:$0xff]
        %v223 = vld [vmem:[%s212 + $0x10] sm:$0xff]
        %v224 = vld [vmem:[%s212 + $0x18] sm:$0xff]
        %v225 = vld [vmem:[%s2] sm:$0x1]
        %v227 = vlaneseq
        %v228 = vshrl.u32 %v227, 7
        %v229 = vsub.s32 0, %v228
        %v230 = vrot.slane %v225, %v229
        %v232 = vmul.f32 %v221, %v230
        %v233 = vmul.f32 %v222, %v230
        %v234 = vmul.f32 %v223, %v230
        %v235 = vmul.f32 %v224, %v230
        %v236 = vld [vmem:[%s3] sm:$0x1]
        %v238 = vlaneseq
        %v239 = vshrl.u32 %v238, 7
        %v240 = vsub.s32 0, %v239
        %v241 = vrot.slane %v236, %v240
        %v243 = vadd.f32 %v232, %v241
        %v244 = vadd.f32 %v233, %v241
        %v245 = vadd.f32 %v234, %v241
        %v246 = vadd.f32 %v235, %v241
        %v247 = vld [vmem:[%s218] sm:$0xff]
        %v248 = vld [vmem:[%s218 + $0x8] sm:$0xff]
        %v249 = vld [vmem:[%s218 + $0x10] sm:$0xff]
        %v250 = vld [vmem:[%s218 + $0x18] sm:$0xff]
        %v251 = vadd.f32 %v243, %v247
        %v252 = vadd.f32 %v244, %v248
        %v253 = vadd.f32 %v245, %v249
        %v254 = vadd.f32 %v246, %v250
        %v255 = vmax.f32 %v251, 0.0
        %v256 = vmax.f32 %v252, 0.0
        %v257 = vmax.f32 %v253, 0.0
        %v258 = vmax.f32 %v254, 0.0
        %vm259 = vcmask 130048
        %260 = vst.msk [vmem:[%s207] sm:$0xff] %vm259, %v255
        %261 = vst.msk [vmem:[%s207 + $0x8] sm:$0xff] %vm259, %v256
        %262 = vst.msk [vmem:[%s207 + $0x10] sm:$0xff] %vm259, %v257
        %263 = vst.msk [vmem:[%s207 + $0x18] sm:$0xff] %vm259, %v258
        %s264 = sand.u32 %s120, 1
        %s265 = scalar_lea.sflag [#allocation3], %s264
        %s266 = sand.u32 %s120, 1
        %s267 = smul.addr %s266, 32
        %s268 = scalar_lea.vmem [#allocation2], %s267
        // Predicated region
        $region37: #{resnext_block_forward.7} parent=35 // pred_check
          %p269 = pneg %p130
        $region38: #{resnext_block_forward.7} parent=35 // pred_check_branch
          %271 = sbr.rel (%p269) target = $region40
        $region39: #{resnext_block_forward.7} parent=35 // pred_region
          %s272 = smul.u32 4, %s18
          %s274 = ssub.s32 512, 512
          %275 = vsyncadd %s265, %s274
          %s276 = smul.addr %s272, 128
          %s277 = scalar_lea.hbm %s4, %s276
          %s278 = sshll.u32 %s268, 4
          %s279 = int_to_ptr.vmem [resolvable:$true] %s278
          %284 = dma.vmem_to_hbm [thread:$0]  %s279, 512, %s277, %s265, 128, 128, 8
        $region40: #{resnext_block_forward.7} parent=35 // pred_fallthru
          _
      $region36: #{resnext_block_forward.7} parent=5 // pred_fallthru
        _
      %p285 = scmp.le.s32.totalorder 2, %s13
      // Predicated region
      $region41: #{resnext_block_forward.7} parent=5 // pred_check
        %p286 = pneg %p285
      $region42: #{resnext_block_forward.7} parent=5 // pred_check_branch
        %288 = sbr.rel (%p286) target = $region44
      $region43: #{resnext_block_forward.7} parent=5 // pred_region
        %s289 = ssub.s32 %s13, 2
        // Predicated region
        $region45: #{resnext_block_forward.7} parent=43 // pred_check
          %p290 = pneg %p136
        $region46: #{resnext_block_forward.7} parent=43 // pred_check_branch
          %292 = sbr.rel (%p290) target = $region48
        $region47: #{resnext_block_forward.7} parent=43 // pred_region
          %s293 = sand.u32 %s121, 1
          %s294 = scalar_lea.sflag [#allocation3], %s293
          %s295 = sand.u32 %s121, 1
          %s296 = smul.addr %s295, 32
          %s297 = scalar_lea.vmem [#allocation2], %s296
          %298 = dma.done %s294, 512
        $region48: #{resnext_block_forward.7} parent=43 // pred_fallthru
          _
      $region44: #{resnext_block_forward.7} parent=5 // pred_fallthru
        _
    $region6: #{resnext_block_forward.7} parent=1 // loop_footer
      %s17 = sadd.s32 1, %s13
    $region7: #{resnext_block_forward.7} parent=1 // loop_footer_branch
      %12 = sbr.rel target = $region3
    $region8: #{resnext_block_forward.7} parent=1 // loop_exit
      _
    %299 = vsyncpa [#allocation3], 1
    %s300 = scalar_lea.sflag [#allocation3], 1
    %301 = vsyncpa %s300, 1

// kernel: resnext_block_forward.5
$region0: #{resnext_block_forward.5}
  #allocation0 [shape = 'u32[]', space=smem, size = 0x4, offset = 0x4, fixed_abs, tag = 'smem constant byte address 0x4 - core index']
  #allocation1 [shape = 'u32[144,128]{1,0:T(1,128)}', space=vmem, size = 0x12000, scoped, tag = 'internal scratch']
  #allocation2 [shape = 'f32[3,10,8,8]{3,2,1,0:T(8,128)}', space=vmem, size = 0x1e000, scoped, tag = 'scratch operand']
  #allocation3 [shape = 'f32[64,8]{1,0:T(8,128)}', space=vmem, size = 0x8000, scoped, tag = 'scratch operand']
  %s0 = inlined_call_operand.vmem [shape: f32[2,8,8,8], index: 0, kind: input, shape index: {}]
  %s1 = inlined_call_operand.vmem [shape: f32[1,8], index: 1, kind: input, shape index: {}]
  %s2 = inlined_call_operand.vmem [shape: f32[1,8], index: 2, kind: input, shape index: {}]
  %s3 = inlined_call_operand.vmem [shape: f32[9,8,8], index: 3, kind: input, shape index: {}]
  %s4 = inlined_call_operand.vmem [shape: f32[2,8,8,8], index: 4, kind: output, shape index: {0}]
  %s5 = inlined_call_operand.vmem [shape: f32[2,1,8], index: 5, kind: output, shape index: {1}]
  %s6 = inlined_call_operand.vmem [shape: f32[2,1,8], index: 6, kind: output, shape index: {2}]
  %7 = xla_tuple %s4, %s5, %s6
  %s8 = sld [smem:[#allocation0]]
  $region65: #{resnext_block_forward.5} parent=0
    _
  %s10 = ssub.s32 1, %s8
  %s11 = scalar_select 0, %s10, %s8
  loop: start=0, step=1, limit=4
  $region2: #{resnext_block_forward.5} parent=0 // loop_pre_header
    _
  $region3: #{resnext_block_forward.5} parent=0 // loop_header
    %s13 = sphi 0, %s17
    %p14 = scmp.ge.s32.totalorder %s13, 4
    %s23 = sphi 0, %s25
    %s26 = sphi 0, %s23
    %s27 = sphi 0, %s26
    %s43 = sphi 0, %s27
    %s47 = sphi 0, %s47
    %s49 = sphi 0, %s47
    %s50 = sphi 0, %s49
    %s64 = sphi 0, %s50
    %s68 = sphi 0, %s68
    %s70 = sphi 0, %s68
    %s71 = sphi 0, %s70
    %s85 = sphi 0, %s71
    %s89 = sphi 0, %s89
    %s91 = sphi 0, %s89
    %s92 = sphi 0, %s91
    %s106 = sphi 0, %s92
    %s112 = sphi 0, %s114
    %s115 = sphi 0, %s112
    %s116 = sphi 0, %s115
    %s132 = sphi 0, %s116
    %s138 = sphi 0, %s140
    %s141 = sphi 0, %s138
    %s142 = sphi 0, %s141
    %s158 = sphi 0, %s142
    %s164 = sphi 0, %s166
    %s167 = sphi 0, %s164
    %s168 = sphi 0, %s167
    %s184 = sphi 0, %s168
  $region4: #{resnext_block_forward.5} parent=0 // loop_header_branch
    %16 = sbr.rel (%p14) target = $region8
  $region5: #{resnext_block_forward.5} parent=0 // loop_body
    %s18 = ssub.s32 %s13, 1
    %s19 = ssub.s32 %s13, 2
    %s20 = sadd.s32 %s13, 1
    %s21 = ssub.s32 %s13, %s20
    %p22 = scmp.eq.s32.totalorder %s21, 0
    %s24 = sadd.s32 %s23, 1
    %s25 = scalar_select %p22, %s23, %s24
    %p28 = pneg %p22
    %p29 = scmp.eq.s32.totalorder %s13, 1
    %p30 = por %p28, %p29
    %p31 = scmp.ne.s32.totalorder %s23, %s26
    %p32 = scmp.eq.s32.totalorder %s13, 0
    %p33 = por %p31, %p32
    %p34 = scmp.ne.s32.totalorder %s23, %s26
    %p35 = scmp.eq.s32.totalorder %s18, 1
    %p36 = por %p34, %p35
    %p37 = scmp.ne.s32.totalorder %s26, %s27
    %p38 = scmp.eq.s32.totalorder %s18, 0
    %p39 = por %p37, %p38
    %p40 = scmp.ne.s32.totalorder %s26, %s27
    %p41 = scmp.eq.s32.totalorder %s19, 1
    %p42 = por %p40, %p41
    %p44 = scmp.ne.s32.totalorder %s27, %s43
    %p45 = scmp.eq.s32.totalorder %s19, 0
    %p46 = por %p44, %p45
    %s48 = sadd.s32 %s47, 1
    %p51 = scmp.eq.s32.totalorder %s13, 1
    %p52 = scmp.ne.s32.totalorder %s47, %s49
    %p53 = scmp.eq.s32.totalorder %s13, 0
    %p54 = por %p52, %p53
    %p55 = scmp.ne.s32.totalorder %s47, %s49
    %p56 = scmp.eq.s32.totalorder %s18, 1
    %p57 = por %p55, %p56
    %p58 = scmp.ne.s32.totalorder %s49, %s50
    %p59 = scmp.eq.s32.totalorder %s18, 0
    %p60 = por %p58, %p59
    %p61 = scmp.ne.s32.totalorder %s49, %s50
    %p62 = scmp.eq.s32.totalorder %s19, 1
    %p63 = por %p61, %p62
    %p65 = scmp.ne.s32.totalorder %s50, %s64
    %p66 = scmp.eq.s32.totalorder %s19, 0
    %p67 = por %p65, %p66
    %s69 = sadd.s32 %s68, 1
    %p72 = scmp.eq.s32.totalorder %s13, 1
    %p73 = scmp.ne.s32.totalorder %s68, %s70
    %p74 = scmp.eq.s32.totalorder %s13, 0
    %p75 = por %p73, %p74
    %p76 = scmp.ne.s32.totalorder %s68, %s70
    %p77 = scmp.eq.s32.totalorder %s18, 1
    %p78 = por %p76, %p77
    %p79 = scmp.ne.s32.totalorder %s70, %s71
    %p80 = scmp.eq.s32.totalorder %s18, 0
    %p81 = por %p79, %p80
    %p82 = scmp.ne.s32.totalorder %s70, %s71
    %p83 = scmp.eq.s32.totalorder %s19, 1
    %p84 = por %p82, %p83
    %p86 = scmp.ne.s32.totalorder %s71, %s85
    %p87 = scmp.eq.s32.totalorder %s19, 0
    %p88 = por %p86, %p87
    %s90 = sadd.s32 %s89, 1
    %p93 = scmp.eq.s32.totalorder %s13, 1
    %p94 = scmp.ne.s32.totalorder %s89, %s91
    %p95 = scmp.eq.s32.totalorder %s13, 0
    %p96 = por %p94, %p95
    %p97 = scmp.ne.s32.totalorder %s89, %s91
    %p98 = scmp.eq.s32.totalorder %s18, 1
    %p99 = por %p97, %p98
    %p100 = scmp.ne.s32.totalorder %s91, %s92
    %p101 = scmp.eq.s32.totalorder %s18, 0
    %p102 = por %p100, %p101
    %p103 = scmp.ne.s32.totalorder %s91, %s92
    %p104 = scmp.eq.s32.totalorder %s19, 1
    %p105 = por %p103, %p104
    %p107 = scmp.ne.s32.totalorder %s92, %s106
    %p108 = scmp.eq.s32.totalorder %s19, 0
    %p109 = por %p107, %p108
    %s110 = ssub.s32 %s13, %s20
    %p111 = scmp.eq.s32.totalorder %s110, 0
    %s113 = sadd.s32 %s112, 1
    %s114 = scalar_select %p111, %s112, %s113
    %p117 = pneg %p111
    %p118 = scmp.eq.s32.totalorder %s13, 1
    %p119 = por %p117, %p118
    %p120 = scmp.ne.s32.totalorder %s112, %s115
    %p121 = scmp.eq.s32.totalorder %s13, 0
    %p122 = por %p120, %p121
    %p123 = scmp.ne.s32.totalorder %s112, %s115
    %p124 = scmp.eq.s32.totalorder %s18, 1
    %p125 = por %p123, %p124
    %p126 = scmp.ne.s32.totalorder %s115, %s116
    %p127 = scmp.eq.s32.totalorder %s18, 0
    %p128 = por %p126, %p127
    %p129 = scmp.ne.s32.totalorder %s115, %s116
    %p130 = scmp.eq.s32.totalorder %s19, 1
    %p131 = por %p129, %p130
    %p133 = scmp.ne.s32.totalorder %s116, %s132
    %p134 = scmp.eq.s32.totalorder %s19, 0
    %p135 = por %p133, %p134
    %s136 = ssub.s32 %s13, %s20
    %p137 = scmp.eq.s32.totalorder %s136, 0
    %s139 = sadd.s32 %s138, 1
    %s140 = scalar_select %p137, %s138, %s139
    %p143 = pneg %p137
    %p144 = scmp.eq.s32.totalorder %s13, 1
    %p145 = por %p143, %p144
    %p146 = scmp.ne.s32.totalorder %s138, %s141
    %p147 = scmp.eq.s32.totalorder %s13, 0
    %p148 = por %p146, %p147
    %p149 = scmp.ne.s32.totalorder %s138, %s141
    %p150 = scmp.eq.s32.totalorder %s18, 1
    %p151 = por %p149, %p150
    %p152 = scmp.ne.s32.totalorder %s141, %s142
    %p153 = scmp.eq.s32.totalorder %s18, 0
    %p154 = por %p152, %p153
    %p155 = scmp.ne.s32.totalorder %s141, %s142
    %p156 = scmp.eq.s32.totalorder %s19, 1
    %p157 = por %p155, %p156
    %p159 = scmp.ne.s32.totalorder %s142, %s158
    %p160 = scmp.eq.s32.totalorder %s19, 0
    %p161 = por %p159, %p160
    %s162 = ssub.s32 %s13, %s20
    %p163 = scmp.eq.s32.totalorder %s162, 0
    %s165 = sadd.s32 %s164, 1
    %s166 = scalar_select %p163, %s164, %s165
    %p169 = pneg %p163
    %p170 = scmp.eq.s32.totalorder %s13, 1
    %p171 = por %p169, %p170
    %p172 = scmp.ne.s32.totalorder %s164, %s167
    %p173 = scmp.eq.s32.totalorder %s13, 0
    %p174 = por %p172, %p173
    %p175 = scmp.ne.s32.totalorder %s164, %s167
    %p176 = scmp.eq.s32.totalorder %s18, 1
    %p177 = por %p175, %p176
    %p178 = scmp.ne.s32.totalorder %s167, %s168
    %p179 = scmp.eq.s32.totalorder %s18, 0
    %p180 = por %p178, %p179
    %p181 = scmp.ne.s32.totalorder %s167, %s168
    %p182 = scmp.eq.s32.totalorder %s19, 1
    %p183 = por %p181, %p182
    %p185 = scmp.ne.s32.totalorder %s168, %s184
    %p186 = scmp.eq.s32.totalorder %s19, 0
    %p187 = por %p185, %p186
    %p188 = scmp.le.s32.totalorder 1, %s13
    %p189 = scmp.lt.s32.totalorder %s13, 3
    %p190 = pnand %p188, %p189
    %p191 = pneg %p190
    // Predicated region
    $region9: #{resnext_block_forward.5} parent=5 // pred_check
      _
    $region10: #{resnext_block_forward.5} parent=5 // pred_check_branch
      %193 = sbr.rel (%p190) target = $region12
    $region11: #{resnext_block_forward.5} parent=5 // pred_region
      %s194 = ssub.s32 %s13, 1
      // Predicated region
      $region13: #{resnext_block_forward.5} parent=11 // pred_check
        %p195 = pneg %p60
      $region14: #{resnext_block_forward.5} parent=11 // pred_check_branch
        %197 = sbr.rel (%p195) target = $region16
      $region15: #{resnext_block_forward.5} parent=11 // pred_region
        _
      $region16: #{resnext_block_forward.5} parent=11 // pred_fallthru
        _
      // Predicated region
      $region17: #{resnext_block_forward.5} parent=11 // pred_check
        %p198 = pneg %p81
      $region18: #{resnext_block_forward.5} parent=11 // pred_check_branch
        %200 = sbr.rel (%p198) target = $region20
      $region19: #{resnext_block_forward.5} parent=11 // pred_region
        _
      $region20: #{resnext_block_forward.5} parent=11 // pred_fallthru
        _
      // Predicated region
      $region21: #{resnext_block_forward.5} parent=11 // pred_check
        %p201 = pneg %p102
      $region22: #{resnext_block_forward.5} parent=11 // pred_check_branch
        %203 = sbr.rel (%p201) target = $region24
      $region23: #{resnext_block_forward.5} parent=11 // pred_region
        _
      $region24: #{resnext_block_forward.5} parent=11 // pred_fallthru
        _
    $region12: #{resnext_block_forward.5} parent=5 // pred_fallthru
      _
    %p204 = scmp.lt.s32.totalorder %s13, 2
    // Predicated region
    $region25: #{resnext_block_forward.5} parent=5 // pred_check
      %p205 = pneg %p204
    $region26: #{resnext_block_forward.5} parent=5 // pred_check_branch
      %207 = sbr.rel (%p205) target = $region28
    $region27: #{resnext_block_forward.5} parent=5 // pred_region
      // Predicated region
      $region29: #{resnext_block_forward.5} parent=27 // pred_check
        %p208 = pneg %p33
      $region30: #{resnext_block_forward.5} parent=27 // pred_check_branch
        %210 = sbr.rel (%p208) target = $region32
      $region31: #{resnext_block_forward.5} parent=27 // pred_region
        %p211 = scmp.lt.s32.totalorder %s13, 1
        %s212 = scalar_select %p211, %s13, 1
        %s213 = smul.addr %s212, 8
        %s214 = smul.addr %s213, 8
        %s215 = scalar_lea.vmem %s0, %s214
      $region32: #{resnext_block_forward.5} parent=27 // pred_fallthru
        _
    $region28: #{resnext_block_forward.5} parent=5 // pred_fallthru
      _
    %p216 = scmp.le.s32.totalorder 1, %s13
    %p217 = scmp.lt.s32.totalorder %s13, 3
    %p218 = pnand %p216, %p217
    %p219 = pneg %p218
    // Predicated region
    $region33: #{resnext_block_forward.5} parent=5 // pred_check
      _
    $region34: #{resnext_block_forward.5} parent=5 // pred_check_branch
      %221 = sbr.rel (%p218) target = $region36
    $region35: #{resnext_block_forward.5} parent=5 // pred_region
      %s222 = ssub.s32 %s13, 1
      %p223 = scmp.lt.s32.totalorder %s18, 1
      %s224 = scalar_select %p223, %s18, 1
      %s225 = smul.addr %s224, 8
      %s226 = smul.addr %s225, 8
      %s227 = scalar_lea.vmem %s0, %s226
      %p228 = pneg %p39
      %p229 = pneg %p36
      %p230 = pneg %p60
      %p231 = pneg %p57
      %p232 = pneg %p81
      %p233 = pneg %p78
      %p234 = pneg %p102
      %p235 = pneg %p99
      %p236 = pneg %p128
      %p237 = pneg %p125
      %p238 = scmp.lt.s32.totalorder %s18, 1
      %s239 = scalar_select %p238, %s18, 1
      %s240 = smul.addr %s239, 8
      %s241 = smul.addr %s240, 8
      %s242 = scalar_lea.vmem %s4, %s241
      %p243 = pneg %p154
      %p244 = pneg %p151
      %p245 = scmp.lt.s32.totalorder %s18, 1
      %s246 = scalar_select %p245, %s18, 1
      %s247 = scalar_lea.vmem %s5, %s246
      %p248 = pneg %p180
      %p249 = pneg %p177
      %p250 = scmp.lt.s32.totalorder %s18, 1
      %s251 = scalar_select %p250, %s18, 1
      %s252 = scalar_lea.vmem %s6, %s251
      %p253 = scmp.lt.s32.totalorder %s18, 1
      %s254 = scalar_select %p253, %s18, 1
      %s255 = smul.addr %s254, 8
      %s256 = smul.addr %s255, 8
      %s257 = scalar_lea.vmem %s0, %s256
      %p258 = scmp.lt.s32.totalorder %s18, 1
      %s259 = scalar_select %p258, %s18, 1
      %s260 = smul.addr %s259, 8
      %s261 = smul.addr %s260, 8
      %s262 = scalar_lea.vmem %s4, %s261
      %p263 = scmp.lt.s32.totalorder %s18, 1
      %s264 = scalar_select %p263, %s18, 1
      %s265 = scalar_lea.vmem %s5, %s264
      %p266 = scmp.lt.s32.totalorder %s18, 1
      %s267 = scalar_select %p266, %s18, 1
      %s268 = scalar_lea.vmem %s6, %s267
      %v269 = vld [vmem:[%s257] sm:$0xff]
      %v270 = vld [vmem:[%s257 + $0x8] sm:$0xff]
      %v271 = vld [vmem:[%s257 + $0x10] sm:$0xff]
      %v272 = vld [vmem:[%s257 + $0x18] sm:$0xff]
      %v273 = vld [vmem:[%s257 + $0x20] sm:$0xff]
      %v274 = vld [vmem:[%s257 + $0x28] sm:$0xff]
      %v275 = vld [vmem:[%s257 + $0x30] sm:$0xff]
      %v276 = vld [vmem:[%s257 + $0x38] sm:$0xff]
      %v277 = vld [vmem:[%s1] sm:$0x1]
      %v279 = vlaneseq
      %v280 = vshrl.u32 %v279, 7
      %v281 = vsub.s32 0, %v280
      %v282 = vrot.slane %v277, %v281
      %v284 = vmul.f32 %v269, %v282
      %v285 = vmul.f32 %v270, %v282
      %v286 = vmul.f32 %v271, %v282
      %v287 = vmul.f32 %v272, %v282
      %v288 = vmul.f32 %v273, %v282
      %v289 = vmul.f32 %v274, %v282
      %v290 = vmul.f32 %v275, %v282
      %v291 = vmul.f32 %v276, %v282
      %v292 = vld [vmem:[%s2] sm:$0x1]
      %v294 = vlaneseq
      %v295 = vshrl.u32 %v294, 7
      %v296 = vsub.s32 0, %v295
      %v297 = vrot.slane %v292, %v296
      %v299 = vadd.f32 %v284, %v297
      %v300 = vadd.f32 %v285, %v297
      %v301 = vadd.f32 %v286, %v297
      %v302 = vadd.f32 %v287, %v297
      %v303 = vadd.f32 %v288, %v297
      %v304 = vadd.f32 %v289, %v297
      %v305 = vadd.f32 %v290, %v297
      %v306 = vadd.f32 %v291, %v297
      %v307 = vmax.f32 %v299, 0.0
      %v308 = vmax.f32 %v300, 0.0
      %v309 = vmax.f32 %v301, 0.0
      %v310 = vmax.f32 %v302, 0.0
      %v311 = vmax.f32 %v303, 0.0
      %v312 = vmax.f32 %v304, 0.0
      %v313 = vmax.f32 %v305, 0.0
      %v314 = vmax.f32 %v306, 0.0
      %v323 = vrot.slane %v307, 7
      %v324 = vrot.slane %v308, 7
      %v325 = vrot.slane %v309, 7
      %v326 = vrot.slane %v310, 7
      %v327 = vrot.slane %v311, 7
      %v328 = vrot.slane %v312, 7
      %v329 = vrot.slane %v313, 7
      %v330 = vrot.slane %v314, 7
      %vm339 = vcmask 1040384
      %v340 = vsel %vm339, 0.0, %v323
      %v341 = vsel %vm339, 0.0, %v324
      %v342 = vsel %vm339, 0.0, %v325
      %v343 = vsel %vm339, 0.0, %v326
      %v344 = vsel %vm339, 0.0, %v327
      %v345 = vsel %vm339, 0.0, %v328
      %v346 = vsel %vm339, 0.0, %v329
      %v347 = vsel %vm339, 0.0, %v330
      %vm348 = vcmask 64512
      %349 = vst.msk [vmem:[#allocation2] sm:$0xff] %vm348, 0.0
      %s350 = scalar_lea.vmem [#allocation2], 72
      %351 = vst.msk [vmem:[%s350] sm:$0xff] %vm348, 0.0
      %s352 = scalar_lea.vmem [#allocation2], 8
      %353 = vst.msk [vmem:[%s352] sm:$0xff] %vm348, %v340
      %354 = vst.msk [vmem:[%s352 + $0x8] sm:$0xff] %vm348, %v341
      %355 = vst.msk [vmem:[%s352 + $0x10] sm:$0xff] %vm348, %v342
      %356 = vst.msk [vmem:[%s352 + $0x18] sm:$0xff] %vm348, %v343
      %357 = vst.msk [vmem:[%s352 + $0x20] sm:$0xff] %vm348, %v344
      %358 = vst.msk [vmem:[%s352 + $0x28] sm:$0xff] %vm348, %v345
      %359 = vst.msk [vmem:[%s352 + $0x30] sm:$0xff] %vm348, %v346
      %360 = vst.msk [vmem:[%s352 + $0x38] sm:$0xff] %vm348, %v347
      %s361 = scalar_lea.vmem [#allocation2], 80
      %362 = vst.msk [vmem:[%s361] sm:$0xff] %vm348, 0.0
      %s363 = scalar_lea.vmem [#allocation2], 152
      %364 = vst.msk [vmem:[%s363] sm:$0xff] %vm348, 0.0
      %s365 = scalar_lea.vmem [#allocation2], 88
      %366 = vst.msk [vmem:[%s365] sm:$0xff] %vm348, %v307
      %367 = vst.msk [vmem:[%s365 + $0x8] sm:$0xff] %vm348, %v308
      %368 = vst.msk [vmem:[%s365 + $0x10] sm:$0xff] %vm348, %v309
      %369 = vst.msk [vmem:[%s365 + $0x18] sm:$0xff] %vm348, %v310
      %370 = vst.msk [vmem:[%s365 + $0x20] sm:$0xff] %vm348, %v311
      %371 = vst.msk [vmem:[%s365 + $0x28] sm:$0xff] %vm348, %v312
      %372 = vst.msk [vmem:[%s365 + $0x30] sm:$0xff] %vm348, %v313
      %373 = vst.msk [vmem:[%s365 + $0x38] sm:$0xff] %vm348, %v314
      %v374 = vrot.slane %v307, 1
      %v375 = vrot.slane %v308, 1
      %v376 = vrot.slane %v309, 1
      %v377 = vrot.slane %v310, 1
      %v378 = vrot.slane %v311, 1
      %v379 = vrot.slane %v312, 1
      %v380 = vrot.slane %v313, 1
      %v381 = vrot.slane %v314, 1
      %vm390 = vcmask 1046528
      %v391 = vsel %vm390, %v374, 0.0
      %v392 = vsel %vm390, %v375, 0.0
      %v393 = vsel %vm390, %v376, 0.0
      %v394 = vsel %vm390, %v377, 0.0
      %v395 = vsel %vm390, %v378, 0.0
      %v396 = vsel %vm390, %v379, 0.0
      %v397 = vsel %vm390, %v380, 0.0
      %v398 = vsel %vm390, %v381, 0.0
      %s399 = scalar_lea.vmem [#allocation2], 160
      %400 = vst.msk [vmem:[%s399] sm:$0xff] %vm348, 0.0
      %s401 = scalar_lea.vmem [#allocation2], 232
      %402 = vst.msk [vmem:[%s401] sm:$0xff] %vm348, 0.0
      %s403 = scalar_lea.vmem [#allocation2], 168
      %404 = vst.msk [vmem:[%s403] sm:$0xff] %vm348, %v391
      %405 = vst.msk [vmem:[%s403 + $0x8] sm:$0xff] %vm348, %v392
      %406 = vst.msk [vmem:[%s403 + $0x10] sm:$0xff] %vm348, %v393
      %407 = vst.msk [vmem:[%s403 + $0x18] sm:$0xff] %vm348, %v394
      %408 = vst.msk [vmem:[%s403 + $0x20] sm:$0xff] %vm348, %v395
      %409 = vst.msk [vmem:[%s403 + $0x28] sm:$0xff] %vm348, %v396
      %410 = vst.msk [vmem:[%s403 + $0x30] sm:$0xff] %vm348, %v397
      %411 = vst.msk [vmem:[%s403 + $0x38] sm:$0xff] %vm348, %v398
      %v412 = vld [vmem:[#allocation2] sm:$0xff]
      %v413 = vld [vmem:[#allocation2 + $0x8] sm:$0xff]
      %v414 = vld [vmem:[#allocation2 + $0x10] sm:$0xff]
      %v415 = vld [vmem:[#allocation2 + $0x18] sm:$0xff]
      %v416 = vld [vmem:[#allocation2 + $0x20] sm:$0xff]
      %v417 = vld [vmem:[#allocation2 + $0x28] sm:$0xff]
      %v418 = vld [vmem:[#allocation2 + $0x30] sm:$0xff]
      %v419 = vld [vmem:[#allocation2 + $0x38] sm:$0xff]
      %v420 = vld [vmem:[%s3] sm:$0xff]
      %v422 = vsel %vm348, %v412, 0
      %v425 = vsel %vm348, %v413, 0
      %v428 = vsel %vm348, %v414, 0
      %v431 = vsel %vm348, %v415, 0
      %v434 = vsel %vm348, %v416, 0
      %v437 = vsel %vm348, %v417, 0
      %v440 = vsel %vm348, %v418, 0
      %v443 = vsel %vm348, %v419, 0
      %445 = vmatprep.subr.mxu0 0.0
      %446 = vmatpush1.msra.mxu0 %v420
      %447 = vmatprep.subr.mxu0 0.0
      %448 = vmatpush1.msra.mxu0 0.0
      %449 = vmatprep.subr.mxu0 0.0
      %450 = vmatpush1.msra.mxu0 0.0
      %451 = vmatprep.subr.mxu0 0.0
      %452 = vmatpush1.msra.mxu0 0.0
      %453 = vmatprep.subr.mxu0 0.0
      %454 = vmatpush1.msra.mxu0 0.0
      %455 = vmatprep.subr.mxu0 0.0
      %456 = vmatpush1.msra.mxu0 0.0
      %457 = vmatprep.subr.mxu0 0.0
      %458 = vmatpush1.msra.mxu0 0.0
      %459 = vmatprep.subr.mxu0 0.0
      %460 = vmatpush1.msra.mxu0 0.0
      %461 = vmatprep.subr.mxu0 0.0
      %462 = vmatpush1.msra.mxu0 0.0
      %463 = vmatprep.subr.mxu0 0.0
      %464 = vmatpush1.msra.mxu0 0.0
      %465 = vmatprep.subr.mxu0 0.0
      %466 = vmatpush1.msra.mxu0 0.0
      %467 = vmatprep.subr.mxu0 0.0
      %468 = vmatpush1.msra.mxu0 0.0
      %469 = vmatprep.subr.mxu0 0.0
      %470 = vmatpush1.msra.mxu0 0.0
      %471 = vmatprep.subr.mxu0 0.0
      %472 = vmatpush1.msra.mxu0 0.0
      %473 = vmatprep.subr.mxu0 0.0
      %474 = vmatpush1.msra.mxu0 0.0
      %475 = vmatprep.subr.mxu0 0.0
      %476 = vmatpush1.msra.mxu0 0.0
      %477 = vmatprep.subr.mxu0 0.0
      %478 = vmatpush1.msra.mxu0 0.0
      %479 = vmatprep.subr.mxu0 0.0
      %480 = vmatpush1.msra.mxu0 0.0
      %481 = vmatprep.subr.mxu0 0.0
      %482 = vmatpush1.msra.mxu0 0.0
      %483 = vmatprep.subr.mxu0 0.0
      %484 = vmatpush1.msra.mxu0 0.0
      %485 = vmatprep.subr.mxu0 0.0
      %486 = vmatpush1.msra.mxu0 0.0
      %487 = vmatprep.subr.mxu0 0.0
      %488 = vmatpush1.msra.mxu0 0.0
      %489 = vmatprep.subr.mxu0 0.0
      %490 = vmatpush1.msra.mxu0 0.0
      %491 = vmatprep.subr.mxu0 0.0
      %492 = vmatpush1.msra.mxu0 0.0
      %493 = vmatprep.subr.mxu0 0.0
      %494 = vmatpush1.msra.mxu0 0.0
      %495 = vmatprep.subr.mxu0 0.0
      %496 = vmatpush1.msra.mxu0 0.0
      %497 = vmatprep.subr.mxu0 0.0
      %498 = vmatpush1.msra.mxu0 0.0
      %499 = vmatprep.subr.mxu0 0.0
      %500 = vmatpush1.msra.mxu0 0.0
      %501 = vmatprep.subr.mxu0 0.0
      %502 = vmatpush1.msra.mxu0 0.0
      %503 = vmatprep.subr.mxu0 0.0
      %504 = vmatpush1.msra.mxu0 0.0
      %505 = vmatprep.subr.mxu0 0.0
      %506 = vmatpush1.msra.mxu0 0.0
      %507 = vmatprep.subr.mxu0 0.0
      %508 = vmatpush1.msra.mxu0 0.0
      %509 = vmatprep.mubr.f32.mxu0 0.0
      %510 = vmatmul.mubr.f32.gmra.mrb[0].mxu0 %v422
      %v511 = vpop.f32.mrb[0].mxu0
      %v512 = vadd.f32 0.0, %v511
      %v513 = vpop.f32.mrb[0].mxu0
      %514 = vmatprep.mubr.f32.mxu0 0.0
      %515 = vmatmul.mubr.f32.gmra.mrb[0].mxu0 %v425
      %v516 = vpop.f32.mrb[0].mxu0
      %v517 = vadd.f32 0.0, %v516
      %v518 = vpop.f32.mrb[0].mxu0
      %519 = vmatprep.mubr.f32.mxu0 0.0
      %520 = vmatmul.mubr.f32.gmra.mrb[0].mxu0 %v428
      %v521 = vpop.f32.mrb[0].mxu0
      %v522 = vadd.f32 0.0, %v521
      %v523 = vpop.f32.mrb[0].mxu0
      %524 = vmatprep.mubr.f32.mxu0 0.0
      %525 = vmatmul.mubr.f32.gmra.mrb[0].mxu0 %v431
      %v526 = vpop.f32.mrb[0].mxu0
      %v527 = vadd.f32 0.0, %v526
      %v528 = vpop.f32.mrb[0].mxu0
      %529 = vmatprep.mubr.f32.mxu0 0.0
      %530 = vmatmul.mubr.f32.gmra.mrb[0].mxu0 %v434
      %v531 = vpop.f32.mrb[0].mxu0
      %v532 = vadd.f32 0.0, %v531
      %v533 = vpop.f32.mrb[0].mxu0
      %534 = vmatprep.mubr.f32.mxu0 0.0
      %535 = vmatmul.mubr.f32.gmra.mrb[0].mxu0 %v437
      %v536 = vpop.f32.mrb[0].mxu0
      %v537 = vadd.f32 0.0, %v536
      %v538 = vpop.f32.mrb[0].mxu0
      %539 = vmatprep.mubr.f32.mxu0 0.0
      %540 = vmatmul.mubr.f32.gmra.mrb[0].mxu0 %v440
      %v541 = vpop.f32.mrb[0].mxu0
      %v542 = vadd.f32 0.0, %v541
      %v543 = vpop.f32.mrb[0].mxu0
      %544 = vmatprep.mubr.f32.mxu0 0.0
      %545 = vmatmul.mubr.f32.gmra.mrb[0].mxu0 %v443
      %v546 = vpop.f32.mrb[0].mxu0
      %v547 = vadd.f32 0.0, %v546
      %v548 = vpop.f32.mrb[0].mxu0
      %549 = vdwg.mxu0
      %550 = vst.msk [vmem:[#allocation3] sm:$0xff] %vm348, %v512
      %551 = vst.msk [vmem:[#allocation3 + $0x8] sm:$0xff] %vm348, %v517
      %552 = vst.msk [vmem:[#allocation3 + $0x10] sm:$0xff] %vm348, %v522
      %553 = vst.msk [vmem:[#allocation3 + $0x18] sm:$0xff] %vm348, %v527
      %554 = vst.msk [vmem:[#allocation3 + $0x20] sm:$0xff] %vm348, %v532
      %555 = vst.msk [vmem:[#allocation3 + $0x28] sm:$0xff] %vm348, %v537
      %556 = vst.msk [vmem:[#allocation3 + $0x30] sm:$0xff] %vm348, %v542
      %557 = vst.msk [vmem:[#allocation3 + $0x38] sm:$0xff] %vm348, %v547
      %v558 = vld [vmem:[%s361] sm:$0xff]
      %v559 = vld [vmem:[%s361 + $0x8] sm:$0xff]
      %v560 = vld [vmem:[%s361 + $0x10] sm:$0xff]
      %v561 = vld [vmem:[%s361 + $0x18] sm:$0xff]
      %v562 = vld [vmem:[%s361 + $0x20] sm:$0xff]
      %v563 = vld [vmem:[%s361 + $0x28] sm:$0xff]
      %v564 = vld [vmem:[%s361 + $0x30] sm:$0xff]
      %v565 = vld [vmem:[%s361 + $0x38] sm:$0xff]
      %s566 = scalar_lea.vmem %s3, 8
      %v567 = vld [vmem:[%s566] sm:$0xff]
      %v569 = vsel %vm348, %v558, 0
      %v572 = vsel %vm348, %v559, 0
      %v575 = vsel %vm348, %v560, 0
      %v578 = vsel %vm348, %v561, 0
      %v581 = vsel %vm348, %v562, 0
      %v584 = vsel %vm348, %v563, 0
      %v587 = vsel %vm348, %v564, 0
      %v590 = vsel %vm348, %v565, 0
      %592 = vmatprep.subr.mxu0 0.0
      %593 = vmatpush1.msra.mxu0 %v567
      %594 = vmatprep.subr.mxu0 0.0
      %595 = vmatpush1.msra.mxu0 0.0
      %596 = vmatprep.subr.mxu0 0.0
      %597 = vmatpush1.msra.mxu0 0.0
      %598 = vmatprep.subr.mxu0 0.0
      %599 = vmatpush1.msra.mxu0 0.0
      %600 = vmatprep.subr.mxu0 0.0
      %601 = vmatpush1.msra.mxu0 0.0
      %602 = vmatprep.subr.mxu0 0.0
      %603 = vmatpush1.msra.mxu0 0.0
      %604 = vmatprep.subr.mxu0 0.0
      %605 = vmatpush1.msra.mxu0 0.0
      %606 = vmatprep.subr.mxu0 0.0
      %607 = vmatpush1.msra.mxu0 0.0
      %608 = vmatprep.subr.mxu0 0.0
      %609 = vmatpush1.msra.mxu0 0.0
      %610 = vmatprep.subr.mxu0 0.0
      %611 = vmatpush1.msra.mxu0 0.0
      %612 = vmatprep.subr.mxu0 0.0
      %613 = vmatpush1.msra.mxu0 0.0
      %614 = vmatprep.subr.mxu0 0.0
      %615 = vmatpush1.msra.mxu0 0.0
      %616 = vmatprep.subr.mxu0 0.0
      %617 = vmatpush1.msra.mxu0 0.0
      %618 = vmatprep.subr.mxu0 0.0
      %619 = vmatpush1.msra.mxu0 0.0
      %620 = vmatprep.subr.mxu0 0.0
      %621 = vmatpush1.msra.mxu0 0.0
      %622 = vmatprep.subr.mxu0 0.0
      %623 = vmatpush1.msra.mxu0 0.0
      %624 = vmatprep.subr.mxu0 0.0
      %625 = vmatpush1.msra.mxu0 0.0
      %626 = vmatprep.subr.mxu0 0.0
      %627 = vmatpush1.msra.mxu0 0.0
      %628 = vmatprep.subr.mxu0 0.0
      %629 = vmatpush1.msra.mxu0 0.0
      %630 = vmatprep.subr.mxu0 0.0
      %631 = vmatpush1.msra.mxu0 0.0
      %632 = vmatprep.subr.mxu0 0.0
      %633 = vmatpush1.msra.mxu0 0.0
      %634 = vmatprep.subr.mxu0 0.0
      %635 = vmatpush1.msra.mxu0 0.0
      %636 = vmatprep.subr.mxu0 0.0
      %637 = vmatpush1.msra.mxu0 0.0
      %638 = vmatprep.subr.mxu0 0.0
      %639 = vmatpush1.msra.mxu0 0.0
      %640 = vmatprep.subr.mxu0 0.0
      %641 = vmatpush1.msra.mxu0 0.0
      %642 = vmatprep.subr.mxu0 0.0
      %643 = vmatpush1.msra.mxu0 0.0
      %644 = vmatprep.subr.mxu0 0.0
      %645 = vmatpush1.msra.mxu0 0.0
      %646 = vmatprep.subr.mxu0 0.0
      %647 = vmatpush1.msra.mxu0 0.0
      %648 = vmatprep.subr.mxu0 0.0
      %649 = vmatpush1.msra.mxu0 0.0
      %650 = vmatprep.subr.mxu0 0.0
      %651 = vmatpush1.msra.mxu0 0.0
      %652 = vmatprep.subr.mxu0 0.0
      %653 = vmatpush1.msra.mxu0 0.0
      %654 = vmatprep.subr.mxu0 0.0
      %655 = vmatpush1.msra.mxu0 0.0
      %656 = vmatprep.mubr.f32.mxu0 0.0
      %657 = vmatmul.mubr.f32.gmra.mrb[0].mxu0 %v569
      %v658 = vpop.f32.mrb[0].mxu0
      %v659 = vadd.f32 0.0, %v658
      %v660 = vpop.f32.mrb[0].mxu0
      %661 = vmatprep.mubr.f32.mxu0 0.0
      %662 = vmatmul.mubr.f32.gmra.mrb[0].mxu0 %v572
      %v663 = vpop.f32.mrb[0].mxu0
      %v664 = vadd.f32 0.0, %v663
      %v665 = vpop.f32.mrb[0].mxu0
      %666 = vmatprep.mubr.f32.mxu0 0.0
      %667 = vmatmul.mubr.f32.gmra.mrb[0].mxu0 %v575
      %v668 = vpop.f32.mrb[0].mxu0
      %v669 = vadd.f32 0.0, %v668
      %v670 = vpop.f32.mrb[0].mxu0
      %671 = vmatprep.mubr.f32.mxu0 0.0
      %672 = vmatmul.mubr.f32.gmra.mrb[0].mxu0 %v578
      %v673 = vpop.f32.mrb[0].mxu0
      %v674 = vadd.f32 0.0, %v673
      %v675 = vpop.f32.mrb[0].mxu0
      %676 = vmatprep.mubr.f32.mxu0 0.0
      %677 = vmatmul.mubr.f32.gmra.mrb[0].mxu0 %v581
      %v678 = vpop.f32.mrb[0].mxu0
      %v679 = vadd.f32 0.0, %v678
      %v680 = vpop.f32.mrb[0].mxu0
      %681 = vmatprep.mubr.f32.mxu0 0.0
      %682 = vmatmul.mubr.f32.gmra.mrb[0].mxu0 %v584
      %v683 = vpop.f32.mrb[0].mxu0
      %v684 = vadd.f32 0.0, %v683
      %v685 = vpop.f32.mrb[0].mxu0
      %686 = vmatprep.mubr.f32.mxu0 0.0
      %687 = vmatmul.mubr.f32.gmra.mrb[0].mxu0 %v587
      %v688 = vpop.f32.mrb[0].mxu0
      %v689 = vadd.f32 0.0, %v688
      %v690 = vpop.f32.mrb[0].mxu0
      %691 = vmatprep.mubr.f32.mxu0 0.0
      %692 = vmatmul.mubr.f32.gmra.mrb[0].mxu0 %v590
      %v693 = vpop.f32.mrb[0].mxu0
      %v694 = vadd.f32 0.0, %v693
      %v695 = vpop.f32.mrb[0].mxu0
      %696 = vdwg.mxu0
      %v697 = vld [vmem:[#allocation3] sm:$0xff]
      %v698 = vld [vmem:[#allocation3 + $0x8] sm:$0xff]
      %v699 = vld [vmem:[#allocation3 + $0x10] sm:$0xff]
      %v700 = vld [vmem:[#allocation3 + $0x18] sm:$0xff]
      %v701 = vld [vmem:[#allocation3 + $0x20] sm:$0xff]
      %v702 = vld [vmem:[#allocation3 + $0x28] sm:$0xff]
      %v703 = vld [vmem:[#allocation3 + $0x30] sm:$0xff]
      %v704 = vld [vmem:[#allocation3 + $0x38] sm:$0xff]
      %v705 = vadd.f32 %v697, %v659
      %v706 = vadd.f32 %v698, %v664
      %v707 = vadd.f32 %v699, %v669
      %v708 = vadd.f32 %v700, %v674
      %v709 = vadd.f32 %v701, %v679
      %v710 = vadd.f32 %v702, %v684
      %v711 = vadd.f32 %v703, %v689
      %v712 = vadd.f32 %v704, %v694
      %713 = vst.msk [vmem:[#allocation3] sm:$0xff] %vm348, %v705
      %714 = vst.msk [vmem:[#allocation3 + $0x8] sm:$0xff] %vm348, %v706
      %715 = vst.msk [vmem:[#allocation3 + $0x10] sm:$0xff] %vm348, %v707
      %716 = vst.msk [vmem:[#allocation3 + $0x18] sm:$0xff] %vm348, %v708
      %717 = vst.msk [vmem:[#allocation3 + $0x20] sm:$0xff] %vm348, %v709
      %718 = vst.msk [vmem:[#allocation3 + $0x28] sm:$0xff] %vm348, %v710
      %719 = vst.msk [vmem:[#allocation3 + $0x30] sm:$0xff] %vm348, %v711
      %720 = vst.msk [vmem:[#allocation3 + $0x38] sm:$0xff] %vm348, %v712
      %v721 = vld [vmem:[%s399] sm:$0xff]
      %v722 = vld [vmem:[%s399 + $0x8] sm:$0xff]
      %v723 = vld [vmem:[%s399 + $0x10] sm:$0xff]
      %v724 = vld [vmem:[%s399 + $0x18] sm:$0xff]
      %v725 = vld [vmem:[%s399 + $0x20] sm:$0xff]
      %v726 = vld [vmem:[%s399 + $0x28] sm:$0xff]
      %v727 = vld [vmem:[%s399 + $0x30] sm:$0xff]
      %v728 = vld [vmem:[%s399 + $0x38] sm:$0xff]
      %s729 = scalar_lea.vmem %s3, 16
      %v730 = vld [vmem:[%s729] sm:$0xff]
      %v732 = vsel %vm348, %v721, 0
      %v735 = vsel %vm348, %v722, 0
      %v738 = vsel %vm348, %v723, 0
      %v741 = vsel %vm348, %v724, 0
      %v744 = vsel %vm348, %v725, 0
      %v747 = vsel %vm348, %v726, 0
      %v750 = vsel %vm348, %v727, 0
      %v753 = vsel %vm348, %v728, 0
      %755 = vmatprep.subr.mxu0 0.0
      %756 = vmatpush1.msra.mxu0 %v730
      %757 = vmatprep.subr.mxu0 0.0
      %758 = vmatpush1.msra.mxu0 0.0
      %759 = vmatprep.subr.mxu0 0.0
      %760 = vmatpush1.msra.mxu0 0.0
      %761 = vmatprep.subr.mxu0 0.0
      %762 = vmatpush1.msra.mxu0 0.0
      %763 = vmatprep.subr.mxu0 0.0
      %764 = vmatpush1.msra.mxu0 0.0
      %765 = vmatprep.subr.mxu0 0.0
      %766 = vmatpush1.msra.mxu0 0.0
      %767 = vmatprep.subr.mxu0 0.0
      %768 = vmatpush1.msra.mxu0 0.0
      %769 = vmatprep.subr.mxu0 0.0
      %770 = vmatpush1.msra.mxu0 0.0
      %771 = vmatprep.subr.mxu0 0.0
      %772 = vmatpush1.msra.mxu0 0.0
      %773 = vmatprep.subr.mxu0 0.0
      %774 = vmatpush1.msra.mxu0 0.0
      %775 = vmatprep.subr.mxu0 0.0
      %776 = vmatpush1.msra.mxu0 0.0
      %777 = vmatprep.subr.mxu0 0.0
      %778 = vmatpush1.msra.mxu0 0.0
      %779 = vmatprep.subr.mxu0 0.0
      %780 = vmatpush1.msra.mxu0 0.0
      %781 = vmatprep.subr.mxu0 0.0
      %782 = vmatpush1.msra.mxu0 0.0
      %783 = vmatprep.subr.mxu0 0.0
      %784 = vmatpush1.msra.mxu0 0.0
      %785 = vmatprep.subr.mxu0 0.0
      %786 = vmatpush1.msra.mxu0 0.0
      %787 = vmatprep.subr.mxu0 0.0
      %788 = vmatpush1.msra.mxu0 0.0
      %789 = vmatprep.subr.mxu0 0.0
      %790 = vmatpush1.msra.mxu0 0.0
      %791 = vmatprep.subr.mxu0 0.0
      %792 = vmatpush1.msra.mxu0 0.0
      %793 = vmatprep.subr.mxu0 0.0
      %794 = vmatpush1.msra.mxu0 0.0
      %795 = vmatprep.subr.mxu0 0.0
      %796 = vmatpush1.msra.mxu0 0.0
      %797 = vmatprep.subr.mxu0 0.0
      %798 = vmatpush1.msra.mxu0 0.0
      %799 = vmatprep.subr.mxu0 0.0
      %800 = vmatpush1.msra.mxu0 0.0
      %801 = vmatprep.subr.mxu0 0.0
      %802 = vmatpush1.msra.mxu0 0.0
      %803 = vmatprep.subr.mxu0 0.0
      %804 = vmatpush1.msra.mxu0 0.0
      %805 = vmatprep.subr.mxu0 0.0
      %806 = vmatpush1.msra.mxu0 0.0
      %807 = vmatprep.subr.mxu0 0.0
      %808 = vmatpush1.msra.mxu0 0.0
      %809 = vmatprep.subr.mxu0 0.0
      %810 = vmatpush1.msra.mxu0 0.0
      %811 = vmatprep.subr.mxu0 0.0
      %812 = vmatpush1.msra.mxu0 0.0
      %813 = vmatprep.subr.mxu0 0.0
      %814 = vmatpush1.msra.mxu0 0.0
      %815 = vmatprep.subr.mxu0 0.0
      %816 = vmatpush1.msra.mxu0 0.0
      %817 = vmatprep.subr.mxu0 0.0
      %818 = vmatpush1.msra.mxu0 0.0
      %819 = vmatprep.mubr.f32.mxu0 0.0
      %820 = vmatmul.mubr.f32.gmra.mrb[0].mxu0 %v732
      %v821 = vpop.f32.mrb[0].mxu0
      %v822 = vadd.f32 0.0, %v821
      %v823 = vpop.f32.mrb[0].mxu0
      %824 = vmatprep.mubr.f32.mxu0 0.0
      %825 = vmatmul.mubr.f32.gmra.mrb[0].mxu0 %v735
      %v826 = vpop.f32.mrb[0].mxu0
      %v827 = vadd.f32 0.0, %v826
      %v828 = vpop.f32.mrb[0].mxu0
      %829 = vmatprep.mubr.f32.mxu0 0.0
      %830 = vmatmul.mubr.f32.gmra.mrb[0].mxu0 %v738
      %v831 = vpop.f32.mrb[0].mxu0
      %v832 = vadd.f32 0.0, %v831
      %v833 = vpop.f32.mrb[0].mxu0
      %834 = vmatprep.mubr.f32.mxu0 0.0
      %835 = vmatmul.mubr.f32.gmra.mrb[0].mxu0 %v741
      %v836 = vpop.f32.mrb[0].mxu0
      %v837 = vadd.f32 0.0, %v836
      %v838 = vpop.f32.mrb[0].mxu0
      %839 = vmatprep.mubr.f32.mxu0 0.0
      %840 = vmatmul.mubr.f32.gmra.mrb[0].mxu0 %v744
      %v841 = vpop.f32.mrb[0].mxu0
      %v842 = vadd.f32 0.0, %v841
      %v843 = vpop.f32.mrb[0].mxu0
      %844 = vmatprep.mubr.f32.mxu0 0.0
      %845 = vmatmul.mubr.f32.gmra.mrb[0].mxu0 %v747
      %v846 = vpop.f32.mrb[0].mxu0
      %v847 = vadd.f32 0.0, %v846
      %v848 = vpop.f32.mrb[0].mxu0
      %849 = vmatprep.mubr.f32.mxu0 0.0
      %850 = vmatmul.mubr.f32.gmra.mrb[0].mxu0 %v750
      %v851 = vpop.f32.mrb[0].mxu0
      %v852 = vadd.f32 0.0, %v851
      %v853 = vpop.f32.mrb[0].mxu0
      %854 = vmatprep.mubr.f32.mxu0 0.0
      %855 = vmatmul.mubr.f32.gmra.mrb[0].mxu0 %v753
      %v856 = vpop.f32.mrb[0].mxu0
      %v857 = vadd.f32 0.0, %v856
      %v858 = vpop.f32.mrb[0].mxu0
      %859 = vdwg.mxu0
      %v860 = vld [vmem:[#allocation3] sm:$0xff]
      %v861 = vld [vmem:[#allocation3 + $0x8] sm:$0xff]
      %v862 = vld [vmem:[#allocation3 + $0x10] sm:$0xff]
      %v863 = vld [vmem:[#allocation3 + $0x18] sm:$0xff]
      %v864 = vld [vmem:[#allocation3 + $0x20] sm:$0xff]
      %v865 = vld [vmem:[#allocation3 + $0x28] sm:$0xff]
      %v866 = vld [vmem:[#allocation3 + $0x30] sm:$0xff]
      %v867 = vld [vmem:[#allocation3 + $0x38] sm:$0xff]
      %v868 = vadd.f32 %v860, %v822
      %v869 = vadd.f32 %v861, %v827
      %v870 = vadd.f32 %v862, %v832
      %v871 = vadd.f32 %v863, %v837
      %v872 = vadd.f32 %v864, %v842
      %v873 = vadd.f32 %v865, %v847
      %v874 = vadd.f32 %v866, %v852
      %v875 = vadd.f32 %v867, %v857
      %876 = vst.msk [vmem:[#allocation3] sm:$0xff] %vm348, %v868
      %877 = vst.msk [vmem:[#allocation3 + $0x8] sm:$0xff] %vm348, %v869
      %878 = vst.msk [vmem:[#allocation3 + $0x10] sm:$0xff] %vm348, %v870
      %879 = vst.msk [vmem:[#allocation3 + $0x18] sm:$0xff] %vm348, %v871
      %880 = vst.msk [vmem:[#allocation3 + $0x20] sm:$0xff] %vm348, %v872
      %881 = vst.msk [vmem:[#allocation3 + $0x28] sm:$0xff] %vm348, %v873
      %882 = vst.msk [vmem:[#allocation3 + $0x30] sm:$0xff] %vm348, %v874
      %883 = vst.msk [vmem:[#allocation3 + $0x38] sm:$0xff] %vm348, %v875
      %v884 = vld [vmem:[%s352] sm:$0xff]
      %v885 = vld [vmem:[%s352 + $0x8] sm:$0xff]
      %v886 = vld [vmem:[%s352 + $0x10] sm:$0xff]
      %v887 = vld [vmem:[%s352 + $0x18] sm:$0xff]
      %v888 = vld [vmem:[%s352 + $0x20] sm:$0xff]
      %v889 = vld [vmem:[%s352 + $0x28] sm:$0xff]
      %v890 = vld [vmem:[%s352 + $0x30] sm:$0xff]
      %v891 = vld [vmem:[%s352 + $0x38] sm:$0xff]
      %s892 = scalar_lea.vmem %s3, 24
      %v893 = vld [vmem:[%s892] sm:$0xff]
      %v895 = vsel %vm348, %v884, 0
      %v898 = vsel %vm348, %v885, 0
      %v901 = vsel %vm348, %v886, 0
      %v904 = vsel %vm348, %v887, 0
      %v907 = vsel %vm348, %v888, 0
      %v910 = vsel %vm348, %v889, 0
      %v913 = vsel %vm348, %v890, 0
      %v916 = vsel %vm348, %v891, 0
      %918 = vmatprep.subr.mxu0 0.0
      %919 = vmatpush1.msra.mxu0 %v893
      %920 = vmatprep.subr.mxu0 0.0
      %921 = vmatpush1.msra.mxu0 0.0
      %922 = vmatprep.subr.mxu0 0.0
      %923 = vmatpush1.msra.mxu0 0.0
      %924 = vmatprep.subr.mxu0 0.0
      %925 = vmatpush1.msra.mxu0 0.0
      %926 = vmatprep.subr.mxu0 0.0
      %927 = vmatpush1.msra.mxu0 0.0
      %928 = vmatprep.subr.mxu0 0.0
      %929 = vmatpush1.msra.mxu0 0.0
      %930 = vmatprep.subr.mxu0 0.0
      %931 = vmatpush1.msra.mxu0 0.0
      %932 = vmatprep.subr.mxu0 0.0
      %933 = vmatpush1.msra.mxu0 0.0
      %934 = vmatprep.subr.mxu0 0.0
      %935 = vmatpush1.msra.mxu0 0.0
      %936 = vmatprep.subr.mxu0 0.0
      %937 = vmatpush1.msra.mxu0 0.0
      %938 = vmatprep.subr.mxu0 0.0
      %939 = vmatpush1.msra.mxu0 0.0
      %940 = vmatprep.subr.mxu0 0.0
      %941 = vmatpush1.msra.mxu0 0.0
      %942 = vmatprep.subr.mxu0 0.0
      %943 = vmatpush1.msra.mxu0 0.0
      %944 = vmatprep.subr.mxu0 0.0
      %945 = vmatpush1.msra.mxu0 0.0
      %946 = vmatprep.subr.mxu0 0.0
      %947 = vmatpush1.msra.mxu0 0.0
      %948 = vmatprep.subr.mxu0 0.0
      %949 = vmatpush1.msra.mxu0 0.0
      %950 = vmatprep.subr.mxu0 0.0
      %951 = vmatpush1.msra.mxu0 0.0
      %952 = vmatprep.subr.mxu0 0.0
      %953 = vmatpush1.msra.mxu0 0.0
      %954 = vmatprep.subr.mxu0 0.0
      %955 = vmatpush1.msra.mxu0 0.0
      %956 = vmatprep.subr.mxu0 0.0
      %957 = vmatpush1.msra.mxu0 0.0
      %958 = vmatprep.subr.mxu0 0.0
      %959 = vmatpush1.msra.mxu0 0.0
      %960 = vmatprep.subr.mxu0 0.0
      %961 = vmatpush1.msra.mxu0 0.0
      %962 = vmatprep.subr.mxu0 0.0
      %963 = vmatpush1.msra.mxu0 0.0
      %964 = vmatprep.subr.mxu0 0.0
      %965 = vmatpush1.msra.mxu0 0.0
      %966 = vmatprep.subr.mxu0 0.0
      %967 = vmatpush1.msra.mxu0 0.0
      %968 = vmatprep.subr.mxu0 0.0
      %969 = vmatpush1.msra.mxu0 0.0
      %970 = vmatprep.subr.mxu0 0.0
      %971 = vmatpush1.msra.mxu0 0.0
      %972 = vmatprep.subr.mxu0 0.0
      %973 = vmatpush1.msra.mxu0 0.0
      %974 = vmatprep.subr.mxu0 0.0
      %975 = vmatpush1.msra.mxu0 0.0
      %976 = vmatprep.subr.mxu0 0.0
      %977 = vmatpush1.msra.mxu0 0.0
      %978 = vmatprep.subr.mxu0 0.0
      %979 = vmatpush1.msra.mxu0 0.0
      %980 = vmatprep.subr.mxu0 0.0
      %981 = vmatpush1.msra.mxu0 0.0
      %982 = vmatprep.mubr.f32.mxu0 0.0
      %983 = vmatmul.mubr.f32.gmra.mrb[0].mxu0 %v895
      %v984 = vpop.f32.mrb[0].mxu0
      %v985 = vadd.f32 0.0, %v984
      %v986 = vpop.f32.mrb[0].mxu0
      %987 = vmatprep.mubr.f32.mxu0 0.0
      %988 = vmatmul.mubr.f32.gmra.mrb[0].mxu0 %v898
      %v989 = vpop.f32.mrb[0].mxu0
      %v990 = vadd.f32 0.0, %v989
      %v991 = vpop.f32.mrb[0].mxu0
      %992 = vmatprep.mubr.f32.mxu0 0.0
      %993 = vmatmul.mubr.f32.gmra.mrb[0].mxu0 %v901
      %v994 = vpop.f32.mrb[0].mxu0
      %v995 = vadd.f32 0.0, %v994
      %v996 = vpop.f32.mrb[0].mxu0
      %997 = vmatprep.mubr.f32.mxu0 0.0
      %998 = vmatmul.mubr.f32.gmra.mrb[0].mxu0 %v904
      %v999 = vpop.f32.mrb[0].mxu0
      %v1000 = vadd.f32 0.0, %v999
      %v1001 = vpop.f32.mrb[0].mxu0
      %1002 = vmatprep.mubr.f32.mxu0 0.0
      %1003 = vmatmul.mubr.f32.gmra.mrb[0].mxu0 %v907
      %v1004 = vpop.f32.mrb[0].mxu0
      %v1005 = vadd.f32 0.0, %v1004
      %v1006 = vpop.f32.mrb[0].mxu0
      %1007 = vmatprep.mubr.f32.mxu0 0.0
      %1008 = vmatmul.mubr.f32.gmra.mrb[0].mxu0 %v910
      %v1009 = vpop.f32.mrb[0].mxu0
      %v1010 = vadd.f32 0.0, %v1009
      %v1011 = vpop.f32.mrb[0].mxu0
      %1012 = vmatprep.mubr.f32.mxu0 0.0
      %1013 = vmatmul.mubr.f32.gmra.mrb[0].mxu0 %v913
      %v1014 = vpop.f32.mrb[0].mxu0
      %v1015 = vadd.f32 0.0, %v1014
      %v1016 = vpop.f32.mrb[0].mxu0
      %1017 = vmatprep.mubr.f32.mxu0 0.0
      %1018 = vmatmul.mubr.f32.gmra.mrb[0].mxu0 %v916
      %v1019 = vpop.f32.mrb[0].mxu0
      %v1020 = vadd.f32 0.0, %v1019
      %v1021 = vpop.f32.mrb[0].mxu0
      %1022 = vdwg.mxu0
      %v1023 = vld [vmem:[#allocation3] sm:$0xff]
      %v1024 = vld [vmem:[#allocation3 + $0x8] sm:$0xff]
      %v1025 = vld [vmem:[#allocation3 + $0x10] sm:$0xff]
      %v1026 = vld [vmem:[#allocation3 + $0x18] sm:$0xff]
      %v1027 = vld [vmem:[#allocation3 + $0x20] sm:$0xff]
      %v1028 = vld [vmem:[#allocation3 + $0x28] sm:$0xff]
      %v1029 = vld [vmem:[#allocation3 + $0x30] sm:$0xff]
      %v1030 = vld [vmem:[#allocation3 + $0x38] sm:$0xff]
      %v1031 = vadd.f32 %v1023, %v985
      %v1032 = vadd.f32 %v1024, %v990
      %v1033 = vadd.f32 %v1025, %v995
      %v1034 = vadd.f32 %v1026, %v1000
      %v1035 = vadd.f32 %v1027, %v1005
      %v1036 = vadd.f32 %v1028, %v1010
      %v1037 = vadd.f32 %v1029, %v1015
      %v1038 = vadd.f32 %v1030, %v1020
      %1039 = vst.msk [vmem:[#allocation3] sm:$0xff] %vm348, %v1031
      %1040 = vst.msk [vmem:[#allocation3 + $0x8] sm:$0xff] %vm348, %v1032
      %1041 = vst.msk [vmem:[#allocation3 + $0x10] sm:$0xff] %vm348, %v1033
      %1042 = vst.msk [vmem:[#allocation3 + $0x18] sm:$0xff] %vm348, %v1034
      %1043 = vst.msk [vmem:[#allocation3 + $0x20] sm:$0xff] %vm348, %v1035
      %1044 = vst.msk [vmem:[#allocation3 + $0x28] sm:$0xff] %vm348, %v1036
      %1045 = vst.msk [vmem:[#allocation3 + $0x30] sm:$0xff] %vm348, %v1037
      %1046 = vst.msk [vmem:[#allocation3 + $0x38] sm:$0xff] %vm348, %v1038
      %v1047 = vld [vmem:[%s365] sm:$0xff]
      %v1048 = vld [vmem:[%s365 + $0x8] sm:$0xff]
      %v1049 = vld [vmem:[%s365 + $0x10] sm:$0xff]
      %v1050 = vld [vmem:[%s365 + $0x18] sm:$0xff]
      %v1051 = vld [vmem:[%s365 + $0x20] sm:$0xff]
      %v1052 = vld [vmem:[%s365 + $0x28] sm:$0xff]
      %v1053 = vld [vmem:[%s365 + $0x30] sm:$0xff]
      %v1054 = vld [vmem:[%s365 + $0x38] sm:$0xff]
      %s1055 = scalar_lea.vmem %s3, 32
      %v1056 = vld [vmem:[%s1055] sm:$0xff]
      %v1058 = vsel %vm348, %v1047, 0
      %v1061 = vsel %vm348, %v1048, 0
      %v1064 = vsel %vm348, %v1049, 0
      %v1067 = vsel %vm348, %v1050, 0
      %v1070 = vsel %vm348, %v1051, 0
      %v1073 = vsel %vm348, %v1052, 0
      %v1076 = vsel %vm348, %v1053, 0
      %v1079 = vsel %vm348, %v1054, 0
      %1081 = vmatprep.subr.mxu0 0.0
      %1082 = vmatpush1.msra.mxu0 %v1056
      %1083 = vmatprep.subr.mxu0 0.0
      %1084 = vmatpush1.msra.mxu0 0.0
      %1085 = vmatprep.subr.mxu0 0.0
      %1086 = vmatpush1.msra.mxu0 0.0
      %1087 = vmatprep.subr.mxu0 0.0
      %1088 = vmatpush1.msra.mxu0 0.0
      %1089 = vmatprep.subr.mxu0 0.0
      %1090 = vmatpush1.msra.mxu0 0.0
      %1091 = vmatprep.subr.mxu0 0.0
      %1092 = vmatpush1.msra.mxu0 0.0
      %1093 = vmatprep.subr.mxu0 0.0
      %1094 = vmatpush1.msra.mxu0 0.0
      %1095 = vmatprep.subr.mxu0 0.0
      %1096 = vmatpush1.msra.mxu0 0.0
      %1097 = vmatprep.subr.mxu0 0.0
      %1098 = vmatpush1.msra.mxu0 0.0
      %1099 = vmatprep.subr.mxu0 0.0
      %1100 = vmatpush1.msra.mxu0 0.0
      %1101 = vmatprep.subr.mxu0 0.0
      %1102 = vmatpush1.msra.mxu0 0.0
      %1103 = vmatprep.subr.mxu0 0.0
      %1104 = vmatpush1.msra.mxu0 0.0
      %1105 = vmatprep.subr.mxu0 0.0
      %1106 = vmatpush1.msra.mxu0 0.0
      %1107 = vmatprep.subr.mxu0 0.0
      %1108 = vmatpush1.msra.mxu0 0.0
      %1109 = vmatprep.subr.mxu0 0.0
      %1110 = vmatpush1.msra.mxu0 0.0
      %1111 = vmatprep.subr.mxu0 0.0
      %1112 = vmatpush1.msra.mxu0 0.0
      %1113 = vmatprep.subr.mxu0 0.0
      %1114 = vmatpush1.msra.mxu0 0.0
      %1115 = vmatprep.subr.mxu0 0.0
      %1116 = vmatpush1.msra.mxu0 0.0
      %1117 = vmatprep.subr.mxu0 0.0
      %1118 = vmatpush1.msra.mxu0 0.0
      %1119 = vmatprep.subr.mxu0 0.0
      %1120 = vmatpush1.msra.mxu0 0.0
      %1121 = vmatprep.subr.mxu0 0.0
      %1122 = vmatpush1.msra.mxu0 0.0
      %1123 = vmatprep.subr.mxu0 0.0
      %1124 = vmatpush1.msra.mxu0 0.0
      %1125 = vmatprep.subr.mxu0 0.0
      %1126 = vmatpush1.msra.mxu0 0.0
      %1127 = vmatprep.subr.mxu0 0.0
      %1128 = vmatpush1.msra.mxu0 0.0
      %1129 = vmatprep.subr.mxu0 0.0
      %1130 = vmatpush1.msra.mxu0 0.0
      %1131 = vmatprep.subr.mxu0 0.0
      %1132 = vmatpush1.msra.mxu0 0.0
      %1133 = vmatprep.subr.mxu0 0.0
      %1134 = vmatpush1.msra.mxu0 0.0
      %1135 = vmatprep.subr.mxu0 0.0
      %1136 = vmatpush1.msra.mxu0 0.0
      %1137 = vmatprep.subr.mxu0 0.0
      %1138 = vmatpush1.msra.mxu0 0.0
      %1139 = vmatprep.subr.mxu0 0.0
      %1140 = vmatpush1.msra.mxu0 0.0
      %1141 = vmatprep.subr.mxu0 0.0
      %1142 = vmatpush1.msra.mxu0 0.0
      %1143 = vmatprep.subr.mxu0 0.0
      %1144 = vmatpush1.msra.mxu0 0.0
      %1145 = vmatprep.mubr.f32.mxu0 0.0
      %1146 = vmatmul.mubr.f32.gmra.mrb[0].mxu0 %v1058
      %v1147 = vpop.f32.mrb[0].mxu0
      %v1148 = vadd.f32 0.0, %v1147
      %v1149 = vpop.f32.mrb[0].mxu0
      %1150 = vmatprep.mubr.f32.mxu0 0.0
      %1151 = vmatmul.mubr.f32.gmra.mrb[0].mxu0 %v1061
      %v1152 = vpop.f32.mrb[0].mxu0
      %v1153 = vadd.f32 0.0, %v1152
      %v1154 = vpop.f32.mrb[0].mxu0
      %1155 = vmatprep.mubr.f32.mxu0 0.0
      %1156 = vmatmul.mubr.f32.gmra.mrb[0].mxu0 %v1064
      %v1157 = vpop.f32.mrb[0].mxu0
      %v1158 = vadd.f32 0.0, %v1157
      %v1159 = vpop.f32.mrb[0].mxu0
      %1160 = vmatprep.mubr.f32.mxu0 0.0
      %1161 = vmatmul.mubr.f32.gmra.mrb[0].mxu0 %v1067
      %v1162 = vpop.f32.mrb[0].mxu0
      %v1163 = vadd.f32 0.0, %v1162
      %v1164 = vpop.f32.mrb[0].mxu0
      %1165 = vmatprep.mubr.f32.mxu0 0.0
      %1166 = vmatmul.mubr.f32.gmra.mrb[0].mxu0 %v1070
      %v1167 = vpop.f32.mrb[0].mxu0
      %v1168 = vadd.f32 0.0, %v1167
      %v1169 = vpop.f32.mrb[0].mxu0
      %1170 = vmatprep.mubr.f32.mxu0 0.0
      %1171 = vmatmul.mubr.f32.gmra.mrb[0].mxu0 %v1073
      %v1172 = vpop.f32.mrb[0].mxu0
      %v1173 = vadd.f32 0.0, %v1172
      %v1174 = vpop.f32.mrb[0].mxu0
      %1175 = vmatprep.mubr.f32.mxu0 0.0
      %1176 = vmatmul.mubr.f32.gmra.mrb[0].mxu0 %v1076
      %v1177 = vpop.f32.mrb[0].mxu0
      %v1178 = vadd.f32 0.0, %v1177
      %v1179 = vpop.f32.mrb[0].mxu0
      %1180 = vmatprep.mubr.f32.mxu0 0.0
      %1181 = vmatmul.mubr.f32.gmra.mrb[0].mxu0 %v1079
      %v1182 = vpop.f32.mrb[0].mxu0
      %v1183 = vadd.f32 0.0, %v1182
      %v1184 = vpop.f32.mrb[0].mxu0
      %1185 = vdwg.mxu0
      %v1186 = vld [vmem:[#allocation3] sm:$0xff]
      %v1187 = vld [vmem:[#allocation3 + $0x8] sm:$0xff]
      %v1188 = vld [vmem:[#allocation3 + $0x10] sm:$0xff]
      %v1189 = vld [vmem:[#allocation3 + $0x18] sm:$0xff]
      %v1190 = vld [vmem:[#allocation3 + $0x20] sm:$0xff]
      %v1191 = vld [vmem:[#allocation3 + $0x28] sm:$0xff]
      %v1192 = vld [vmem:[#allocation3 + $0x30] sm:$0xff]
      %v1193 = vld [vmem:[#allocation3 + $0x38] sm:$0xff]
      %v1194 = vadd.f32 %v1186, %v1148
      %v1195 = vadd.f32 %v1187, %v1153
      %v1196 = vadd.f32 %v1188, %v1158
      %v1197 = vadd.f32 %v1189, %v1163
      %v1198 = vadd.f32 %v1190, %v1168
      %v1199 = vadd.f32 %v1191, %v1173
      %v1200 = vadd.f32 %v1192, %v1178
      %v1201 = vadd.f32 %v1193, %v1183
      %1202 = vst.msk [vmem:[#allocation3] sm:$0xff] %vm348, %v1194
      %1203 = vst.msk [vmem:[#allocation3 + $0x8] sm:$0xff] %vm348, %v1195
      %1204 = vst.msk [vmem:[#allocation3 + $0x10] sm:$0xff] %vm348, %v1196
      %1205 = vst.msk [vmem:[#allocation3 + $0x18] sm:$0xff] %vm348, %v1197
      %1206 = vst.msk [vmem:[#allocation3 + $0x20] sm:$0xff] %vm348, %v1198
      %1207 = vst.msk [vmem:[#allocation3 + $0x28] sm:$0xff] %vm348, %v1199
      %1208 = vst.msk [vmem:[#allocation3 + $0x30] sm:$0xff] %vm348, %v1200
      %1209 = vst.msk [vmem:[#allocation3 + $0x38] sm:$0xff] %vm348, %v1201
      %v1210 = vld [vmem:[%s403] sm:$0xff]
      %v1211 = vld [vmem:[%s403 + $0x8] sm:$0xff]
      %v1212 = vld [vmem:[%s403 + $0x10] sm:$0xff]
      %v1213 = vld [vmem:[%s403 + $0x18] sm:$0xff]
      %v1214 = vld [vmem:[%s403 + $0x20] sm:$0xff]
      %v1215 = vld [vmem:[%s403 + $0x28] sm:$0xff]
      %v1216 = vld [vmem:[%s403 + $0x30] sm:$0xff]
      %v1217 = vld [vmem:[%s403 + $0x38] sm:$0xff]
      %s1218 = scalar_lea.vmem %s3, 40
      %v1219 = vld [vmem:[%s1218] sm:$0xff]
      %v1221 = vsel %vm348, %v1210, 0
      %v1224 = vsel %vm348, %v1211, 0
      %v1227 = vsel %vm348, %v1212, 0
      %v1230 = vsel %vm348, %v1213, 0
      %v1233 = vsel %vm348, %v1214, 0
      %v1236 = vsel %vm348, %v1215, 0
      %v1239 = vsel %vm348, %v1216, 0
      %v1242 = vsel %vm348, %v1217, 0
      %1244 = vmatprep.subr.mxu0 0.0
      %1245 = vmatpush1.msra.mxu0 %v1219
      %1246 = vmatprep.subr.mxu0 0.0
      %1247 = vmatpush1.msra.mxu0 0.0
      %1248 = vmatprep.subr.mxu0 0.0
      %1249 = vmatpush1.msra.mxu0 0.0
      %1250 = vmatprep.subr.mxu0 0.0
      %1251 = vmatpush1.msra.mxu0 0.0
      %1252 = vmatprep.subr.mxu0 0.0
      %1253 = vmatpush1.msra.mxu0 0.0
      %1254 = vmatprep.subr.mxu0 0.0
      %1255 = vmatpush1.msra.mxu0 0.0
      %1256 = vmatprep.subr.mxu0 0.0
      %1257 = vmatpush1.msra.mxu0 0.0
      %1258 = vmatprep.subr.mxu0 0.0
      %1259 = vmatpush1.msra.mxu0 0.0
      %1260 = vmatprep.subr.mxu0 0.0
      %1261 = vmatpush1.msra.mxu0 0.0
      %1262 = vmatprep.subr.mxu0 0.0
      %1263 = vmatpush1.msra.mxu0 0.0
      %1264 = vmatprep.subr.mxu0 0.0
      %1265 = vmatpush1.msra.mxu0 0.0
      %1266 = vmatprep.subr.mxu0 0.0
      %1267 = vmatpush1.msra.mxu0 0.0
      %1268 = vmatprep.subr.mxu0 0.0
      %1269 = vmatpush1.msra.mxu0 0.0
      %1270 = vmatprep.subr.mxu0 0.0
      %1271 = vmatpush1.msra.mxu0 0.0
      %1272 = vmatprep.subr.mxu0 0.0
      %1273 = vmatpush1.msra.mxu0 0.0
      %1274 = vmatprep.subr.mxu0 0.0
      %1275 = vmatpush1.msra.mxu0 0.0
      %1276 = vmatprep.subr.mxu0 0.0
      %1277 = vmatpush1.msra.mxu0 0.0
      %1278 = vmatprep.subr.mxu0 0.0
      %1279 = vmatpush1.msra.mxu0 0.0
      %1280 = vmatprep.subr.mxu0 0.0
      %1281 = vmatpush1.msra.mxu0 0.0
      %1282 = vmatprep.subr.mxu0 0.0
      %1283 = vmatpush1.msra.mxu0 0.0
      %1284 = vmatprep.subr.mxu0 0.0
      %1285 = vmatpush1.msra.mxu0 0.0
      %1286 = vmatprep.subr.mxu0 0.0
      %1287 = vmatpush1.msra.mxu0 0.0
      %1288 = vmatprep.subr.mxu0 0.0
      %1289 = vmatpush1.msra.mxu0 0.0
      %1290 = vmatprep.subr.mxu0 0.0
      %1291 = vmatpush1.msra.mxu0 0.0
      %1292 = vmatprep.subr.mxu0 0.0
      %1293 = vmatpush1.msra.mxu0 0.0
      %1294 = vmatprep.subr.mxu0 0.0
      %1295 = vmatpush1.msra.mxu0 0.0
      %1296 = vmatprep.subr.mxu0 0.0
      %1297 = vmatpush1.msra.mxu0 0.0
      %1298 = vmatprep.subr.mxu0 0.0
      %1299 = vmatpush1.msra.mxu0 0.0
      %1300 = vmatprep.subr.mxu0 0.0
      %1301 = vmatpush1.msra.mxu0 0.0
      %1302 = vmatprep.subr.mxu0 0.0
      %1303 = vmatpush1.msra.mxu0 0.0
      %1304 = vmatprep.subr.mxu0 0.0
      %1305 = vmatpush1.msra.mxu0 0.0
      %1306 = vmatprep.subr.mxu0 0.0
      %1307 = vmatpush1.msra.mxu0 0.0
      %1308 = vmatprep.mubr.f32.mxu0 0.0
      %1309 = vmatmul.mubr.f32.gmra.mrb[0].mxu0 %v1221
      %v1310 = vpop.f32.mrb[0].mxu0
      %v1311 = vadd.f32 0.0, %v1310
      %v1312 = vpop.f32.mrb[0].mxu0
      %1313 = vmatprep.mubr.f32.mxu0 0.0
      %1314 = vmatmul.mubr.f32.gmra.mrb[0].mxu0 %v1224
      %v1315 = vpop.f32.mrb[0].mxu0
      %v1316 = vadd.f32 0.0, %v1315
      %v1317 = vpop.f32.mrb[0].mxu0
      %1318 = vmatprep.mubr.f32.mxu0 0.0
      %1319 = vmatmul.mubr.f32.gmra.mrb[0].mxu0 %v1227
      %v1320 = vpop.f32.mrb[0].mxu0
      %v1321 = vadd.f32 0.0, %v1320
      %v1322 = vpop.f32.mrb[0].mxu0
      %1323 = vmatprep.mubr.f32.mxu0 0.0
      %1324 = vmatmul.mubr.f32.gmra.mrb[0].mxu0 %v1230
      %v1325 = vpop.f32.mrb[0].mxu0
      %v1326 = vadd.f32 0.0, %v1325
      %v1327 = vpop.f32.mrb[0].mxu0
      %1328 = vmatprep.mubr.f32.mxu0 0.0
      %1329 = vmatmul.mubr.f32.gmra.mrb[0].mxu0 %v1233
      %v1330 = vpop.f32.mrb[0].mxu0
      %v1331 = vadd.f32 0.0, %v1330
      %v1332 = vpop.f32.mrb[0].mxu0
      %1333 = vmatprep.mubr.f32.mxu0 0.0
      %1334 = vmatmul.mubr.f32.gmra.mrb[0].mxu0 %v1236
      %v1335 = vpop.f32.mrb[0].mxu0
      %v1336 = vadd.f32 0.0, %v1335
      %v1337 = vpop.f32.mrb[0].mxu0
      %1338 = vmatprep.mubr.f32.mxu0 0.0
      %1339 = vmatmul.mubr.f32.gmra.mrb[0].mxu0 %v1239
      %v1340 = vpop.f32.mrb[0].mxu0
      %v1341 = vadd.f32 0.0, %v1340
      %v1342 = vpop.f32.mrb[0].mxu0
      %1343 = vmatprep.mubr.f32.mxu0 0.0
      %1344 = vmatmul.mubr.f32.gmra.mrb[0].mxu0 %v1242
      %v1345 = vpop.f32.mrb[0].mxu0
      %v1346 = vadd.f32 0.0, %v1345
      %v1347 = vpop.f32.mrb[0].mxu0
      %1348 = vdwg.mxu0
      %v1349 = vld [vmem:[#allocation3] sm:$0xff]
      %v1350 = vld [vmem:[#allocation3 + $0x8] sm:$0xff]
      %v1351 = vld [vmem:[#allocation3 + $0x10] sm:$0xff]
      %v1352 = vld [vmem:[#allocation3 + $0x18] sm:$0xff]
      %v1353 = vld [vmem:[#allocation3 + $0x20] sm:$0xff]
      %v1354 = vld [vmem:[#allocation3 + $0x28] sm:$0xff]
      %v1355 = vld [vmem:[#allocation3 + $0x30] sm:$0xff]
      %v1356 = vld [vmem:[#allocation3 + $0x38] sm:$0xff]
      %v1357 = vadd.f32 %v1349, %v1311
      %v1358 = vadd.f32 %v1350, %v1316
      %v1359 = vadd.f32 %v1351, %v1321
      %v1360 = vadd.f32 %v1352, %v1326
      %v1361 = vadd.f32 %v1353, %v1331
      %v1362 = vadd.f32 %v1354, %v1336
      %v1363 = vadd.f32 %v1355, %v1341
      %v1364 = vadd.f32 %v1356, %v1346
      %1365 = vst.msk [vmem:[#allocation3] sm:$0xff] %vm348, %v1357
      %1366 = vst.msk [vmem:[#allocation3 + $0x8] sm:$0xff] %vm348, %v1358
      %1367 = vst.msk [vmem:[#allocation3 + $0x10] sm:$0xff] %vm348, %v1359
      %1368 = vst.msk [vmem:[#allocation3 + $0x18] sm:$0xff] %vm348, %v1360
      %1369 = vst.msk [vmem:[#allocation3 + $0x20] sm:$0xff] %vm348, %v1361
      %1370 = vst.msk [vmem:[#allocation3 + $0x28] sm:$0xff] %vm348, %v1362
      %1371 = vst.msk [vmem:[#allocation3 + $0x30] sm:$0xff] %vm348, %v1363
      %1372 = vst.msk [vmem:[#allocation3 + $0x38] sm:$0xff] %vm348, %v1364
      %s1373 = scalar_lea.vmem [#allocation2], 16
      %v1374 = vld [vmem:[%s1373] sm:$0xff]
      %v1375 = vld [vmem:[%s1373 + $0x8] sm:$0xff]
      %v1376 = vld [vmem:[%s1373 + $0x10] sm:$0xff]
      %v1377 = vld [vmem:[%s1373 + $0x18] sm:$0xff]
      %v1378 = vld [vmem:[%s1373 + $0x20] sm:$0xff]
      %v1379 = vld [vmem:[%s1373 + $0x28] sm:$0xff]
      %v1380 = vld [vmem:[%s1373 + $0x30] sm:$0xff]
      %v1381 = vld [vmem:[%s1373 + $0x38] sm:$0xff]
      %s1382 = scalar_lea.vmem %s3, 48
      %v1383 = vld [vmem:[%s1382] sm:$0xff]
      %v1385 = vsel %vm348, %v1374, 0
      %v1388 = vsel %vm348, %v1375, 0
      %v1391 = vsel %vm348, %v1376, 0
      %v1394 = vsel %vm348, %v1377, 0
      %v1397 = vsel %vm348, %v1378, 0
      %v1400 = vsel %vm348, %v1379, 0
      %v1403 = vsel %vm348, %v1380, 0
      %v1406 = vsel %vm348, %v1381, 0
      %1408 = vmatprep.subr.mxu0 0.0
      %1409 = vmatpush1.msra.mxu0 %v1383
      %1410 = vmatprep.subr.mxu0 0.0
      %1411 = vmatpush1.msra.mxu0 0.0
      %1412 = vmatprep.subr.mxu0 0.0
      %1413 = vmatpush1.msra.mxu0 0.0
      %1414 = vmatprep.subr.mxu0 0.0
      %1415 = vmatpush1.msra.mxu0 0.0
      %1416 = vmatprep.subr.mxu0 0.0
      %1417 = vmatpush1.msra.mxu0 0.0
      %1418 = vmatprep.subr.mxu0 0.0
      %1419 = vmatpush1.msra.mxu0 0.0
      %1420 = vmatprep.subr.mxu0 0.0
      %1421 = vmatpush1.msra.mxu0 0.0
      %1422 = vmatprep.subr.mxu0 0.0
      %1423 = vmatpush1.msra.mxu0 0.0
      %1424 = vmatprep.subr.mxu0 0.0
      %1425 = vmatpush1.msra.mxu0 0.0
      %1426 = vmatprep.subr.mxu0 0.0
      %1427 = vmatpush1.msra.mxu0 0.0
      %1428 = vmatprep.subr.mxu0 0.0
      %1429 = vmatpush1.msra.mxu0 0.0
      %1430 = vmatprep.subr.mxu0 0.0
      %1431 = vmatpush1.msra.mxu0 0.0
      %1432 = vmatprep.subr.mxu0 0.0
      %1433 = vmatpush1.msra.mxu0 0.0
      %1434 = vmatprep.subr.mxu0 0.0
      %1435 = vmatpush1.msra.mxu0 0.0
      %1436 = vmatprep.subr.mxu0 0.0
      %1437 = vmatpush1.msra.mxu0 0.0
      %1438 = vmatprep.subr.mxu0 0.0
      %1439 = vmatpush1.msra.mxu0 0.0
      %1440 = vmatprep.subr.mxu0 0.0
      %1441 = vmatpush1.msra.mxu0 0.0
      %1442 = vmatprep.subr.mxu0 0.0
      %1443 = vmatpush1.msra.mxu0 0.0
      %1444 = vmatprep.subr.mxu0 0.0
      %1445 = vmatpush1.msra.mxu0 0.0
      %1446 = vmatprep.subr.mxu0 0.0
      %1447 = vmatpush1.msra.mxu0 0.0
      %1448 = vmatprep.subr.mxu0 0.0
      %1449 = vmatpush1.msra.mxu0 0.0
      %1450 = vmatprep.subr.mxu0 0.0
      %1451 = vmatpush1.msra.mxu0 0.0
      %1452 = vmatprep.subr.mxu0 0.0
      %1453 = vmatpush1.msra.mxu0 0.0
      %1454 = vmatprep.subr.mxu0 0.0
      %1455 = vmatpush1.msra.mxu0 0.0
      %1456 = vmatprep.subr.mxu0 0.0
      %1457 = vmatpush1.msra.mxu0 0.0
      %1458 = vmatprep.subr.mxu0 0.0
      %1459 = vmatpush1.msra.mxu0 0.0
      %1460 = vmatprep.subr.mxu0 0.0
      %1461 = vmatpush1.msra.mxu0 0.0
      %1462 = vmatprep.subr.mxu0 0.0
      %1463 = vmatpush1.msra.mxu0 0.0
      %1464 = vmatprep.subr.mxu0 0.0
      %1465 = vmatpush1.msra.mxu0 0.0
      %1466 = vmatprep.subr.mxu0 0.0
      %1467 = vmatpush1.msra.mxu0 0.0
      %1468 = vmatprep.subr.mxu0 0.0
      %1469 = vmatpush1.msra.mxu0 0.0
      %1470 = vmatprep.subr.mxu0 0.0
      %1471 = vmatpush1.msra.mxu0 0.0
      %1472 = vmatprep.mubr.f32.mxu0 0.0
      %1473 = vmatmul.mubr.f32.gmra.mrb[0].mxu0 %v1385
      %v1474 = vpop.f32.mrb[0].mxu0
      %v1475 = vadd.f32 0.0, %v1474
      %v1476 = vpop.f32.mrb[0].mxu0
      %1477 = vmatprep.mubr.f32.mxu0 0.0
      %1478 = vmatmul.mubr.f32.gmra.mrb[0].mxu0 %v1388
      %v1479 = vpop.f32.mrb[0].mxu0
      %v1480 = vadd.f32 0.0, %v1479
      %v1481 = vpop.f32.mrb[0].mxu0
      %1482 = vmatprep.mubr.f32.mxu0 0.0
      %1483 = vmatmul.mubr.f32.gmra.mrb[0].mxu0 %v1391
      %v1484 = vpop.f32.mrb[0].mxu0
      %v1485 = vadd.f32 0.0, %v1484
      %v1486 = vpop.f32.mrb[0].mxu0
      %1487 = vmatprep.mubr.f32.mxu0 0.0
      %1488 = vmatmul.mubr.f32.gmra.mrb[0].mxu0 %v1394
      %v1489 = vpop.f32.mrb[0].mxu0
      %v1490 = vadd.f32 0.0, %v1489
      %v1491 = vpop.f32.mrb[0].mxu0
      %1492 = vmatprep.mubr.f32.mxu0 0.0
      %1493 = vmatmul.mubr.f32.gmra.mrb[0].mxu0 %v1397
      %v1494 = vpop.f32.mrb[0].mxu0
      %v1495 = vadd.f32 0.0, %v1494
      %v1496 = vpop.f32.mrb[0].mxu0
      %1497 = vmatprep.mubr.f32.mxu0 0.0
      %1498 = vmatmul.mubr.f32.gmra.mrb[0].mxu0 %v1400
      %v1499 = vpop.f32.mrb[0].mxu0
      %v1500 = vadd.f32 0.0, %v1499
      %v1501 = vpop.f32.mrb[0].mxu0
      %1502 = vmatprep.mubr.f32.mxu0 0.0
      %1503 = vmatmul.mubr.f32.gmra.mrb[0].mxu0 %v1403
      %v1504 = vpop.f32.mrb[0].mxu0
      %v1505 = vadd.f32 0.0, %v1504
      %v1506 = vpop.f32.mrb[0].mxu0
      %1507 = vmatprep.mubr.f32.mxu0 0.0
      %1508 = vmatmul.mubr.f32.gmra.mrb[0].mxu0 %v1406
      %v1509 = vpop.f32.mrb[0].mxu0
      %v1510 = vadd.f32 0.0, %v1509
      %v1511 = vpop.f32.mrb[0].mxu0
      %1512 = vdwg.mxu0
      %v1513 = vld [vmem:[#allocation3] sm:$0xff]
      %v1514 = vld [vmem:[#allocation3 + $0x8] sm:$0xff]
      %v1515 = vld [vmem:[#allocation3 + $0x10] sm:$0xff]
      %v1516 = vld [vmem:[#allocation3 + $0x18] sm:$0xff]
      %v1517 = vld [vmem:[#allocation3 + $0x20] sm:$0xff]
      %v1518 = vld [vmem:[#allocation3 + $0x28] sm:$0xff]
      %v1519 = vld [vmem:[#allocation3 + $0x30] sm:$0xff]
      %v1520 = vld [vmem:[#allocation3 + $0x38] sm:$0xff]
      %v1521 = vadd.f32 %v1513, %v1475
      %v1522 = vadd.f32 %v1514, %v1480
      %v1523 = vadd.f32 %v1515, %v1485
      %v1524 = vadd.f32 %v1516, %v1490
      %v1525 = vadd.f32 %v1517, %v1495
      %v1526 = vadd.f32 %v1518, %v1500
      %v1527 = vadd.f32 %v1519, %v1505
      %v1528 = vadd.f32 %v1520, %v1510
      %1529 = vst.msk [vmem:[#allocation3] sm:$0xff] %vm348, %v1521
      %1530 = vst.msk [vmem:[#allocation3 + $0x8] sm:$0xff] %vm348, %v1522
      %1531 = vst.msk [vmem:[#allocation3 + $0x10] sm:$0xff] %vm348, %v1523
      %1532 = vst.msk [vmem:[#allocation3 + $0x18] sm:$0xff] %vm348, %v1524
      %1533 = vst.msk [vmem:[#allocation3 + $0x20] sm:$0xff] %vm348, %v1525
      %1534 = vst.msk [vmem:[#allocation3 + $0x28] sm:$0xff] %vm348, %v1526
      %1535 = vst.msk [vmem:[#allocation3 + $0x30] sm:$0xff] %vm348, %v1527
      %1536 = vst.msk [vmem:[#allocation3 + $0x38] sm:$0xff] %vm348, %v1528
      %s1537 = scalar_lea.vmem [#allocation2], 96
      %v1538 = vld [vmem:[%s1537] sm:$0xff]
      %v1539 = vld [vmem:[%s1537 + $0x8] sm:$0xff]
      %v1540 = vld [vmem:[%s1537 + $0x10] sm:$0xff]
      %v1541 = vld [vmem:[%s1537 + $0x18] sm:$0xff]
      %v1542 = vld [vmem:[%s1537 + $0x20] sm:$0xff]
      %v1543 = vld [vmem:[%s1537 + $0x28] sm:$0xff]
      %v1544 = vld [vmem:[%s1537 + $0x30] sm:$0xff]
      %v1545 = vld [vmem:[%s1537 + $0x38] sm:$0xff]
      %s1546 = scalar_lea.vmem %s3, 56
      %v1547 = vld [vmem:[%s1546] sm:$0xff]
      %v1549 = vsel %vm348, %v1538, 0
      %v1552 = vsel %vm348, %v1539, 0
      %v1555 = vsel %vm348, %v1540, 0
      %v1558 = vsel %vm348, %v1541, 0
      %v1561 = vsel %vm348, %v1542, 0
      %v1564 = vsel %vm348, %v1543, 0
      %v1567 = vsel %vm348, %v1544, 0
      %v1570 = vsel %vm348, %v1545, 0
      %1572 = vmatprep.subr.mxu0 0.0
      %1573 = vmatpush1.msra.mxu0 %v1547
      %1574 = vmatprep.subr.mxu0 0.0
      %1575 = vmatpush1.msra.mxu0 0.0
      %1576 = vmatprep.subr.mxu0 0.0
      %1577 = vmatpush1.msra.mxu0 0.0
      %1578 = vmatprep.subr.mxu0 0.0
      %1579 = vmatpush1.msra.mxu0 0.0
      %1580 = vmatprep.subr.mxu0 0.0
      %1581 = vmatpush1.msra.mxu0 0.0
      %1582 = vmatprep.subr.mxu0 0.0
      %1583 = vmatpush1.msra.mxu0 0.0
      %1584 = vmatprep.subr.mxu0 0.0
      %1585 = vmatpush1.msra.mxu0 0.0
      %1586 = vmatprep.subr.mxu0 0.0
      %1587 = vmatpush1.msra.mxu0 0.0
      %1588 = vmatprep.subr.mxu0 0.0
      %1589 = vmatpush1.msra.mxu0 0.0
      %1590 = vmatprep.subr.mxu0 0.0
      %1591 = vmatpush1.msra.mxu0 0.0
      %1592 = vmatprep.subr.mxu0 0.0
      %1593 = vmatpush1.msra.mxu0 0.0
      %1594 = vmatprep.subr.mxu0 0.0
      %1595 = vmatpush1.msra.mxu0 0.0
      %1596 = vmatprep.subr.mxu0 0.0
      %1597 = vmatpush1.msra.mxu0 0.0
      %1598 = vmatprep.subr.mxu0 0.0
      %1599 = vmatpush1.msra.mxu0 0.0
      %1600 = vmatprep.subr.mxu0 0.0
      %1601 = vmatpush1.msra.mxu0 0.0
      %1602 = vmatprep.subr.mxu0 0.0
      %1603 = vmatpush1.msra.mxu0 0.0
      %1604 = vmatprep.subr.mxu0 0.0
      %1605 = vmatpush1.msra.mxu0 0.0
      %1606 = vmatprep.subr.mxu0 0.0
      %1607 = vmatpush1.msra.mxu0 0.0
      %1608 = vmatprep.subr.mxu0 0.0
      %1609 = vmatpush1.msra.mxu0 0.0
      %1610 = vmatprep.subr.mxu0 0.0
      %1611 = vmatpush1.msra.mxu0 0.0
      %1612 = vmatprep.subr.mxu0 0.0
      %1613 = vmatpush1.msra.mxu0 0.0
      %1614 = vmatprep.subr.mxu0 0.0
      %1615 = vmatpush1.msra.mxu0 0.0
      %1616 = vmatprep.subr.mxu0 0.0
      %1617 = vmatpush1.msra.mxu0 0.0
      %1618 = vmatprep.subr.mxu0 0.0
      %1619 = vmatpush1.msra.mxu0 0.0
      %1620 = vmatprep.subr.mxu0 0.0
      %1621 = vmatpush1.msra.mxu0 0.0
      %1622 = vmatprep.subr.mxu0 0.0
      %1623 = vmatpush1.msra.mxu0 0.0
      %1624 = vmatprep.subr.mxu0 0.0
      %1625 = vmatpush1.msra.mxu0 0.0
      %1626 = vmatprep.subr.mxu0 0.0
      %1627 = vmatpush1.msra.mxu0 0.0
      %1628 = vmatprep.subr.mxu0 0.0
      %1629 = vmatpush1.msra.mxu0 0.0
      %1630 = vmatprep.subr.mxu0 0.0
      %1631 = vmatpush1.msra.mxu0 0.0
      %1632 = vmatprep.subr.mxu0 0.0
      %1633 = vmatpush1.msra.mxu0 0.0
      %1634 = vmatprep.subr.mxu0 0.0
      %1635 = vmatpush1.msra.mxu0 0.0
      %1636 = vmatprep.mubr.f32.mxu0 0.0
      %1637 = vmatmul.mubr.f32.gmra.mrb[0].mxu0 %v1549
      %v1638 = vpop.f32.mrb[0].mxu0
      %v1639 = vadd.f32 0.0, %v1638
      %v1640 = vpop.f32.mrb[0].mxu0
      %1641 = vmatprep.mubr.f32.mxu0 0.0
      %1642 = vmatmul.mubr.f32.gmra.mrb[0].mxu0 %v1552
      %v1643 = vpop.f32.mrb[0].mxu0
      %v1644 = vadd.f32 0.0, %v1643
      %v1645 = vpop.f32.mrb[0].mxu0
      %1646 = vmatprep.mubr.f32.mxu0 0.0
      %1647 = vmatmul.mubr.f32.gmra.mrb[0].mxu0 %v1555
      %v1648 = vpop.f32.mrb[0].mxu0
      %v1649 = vadd.f32 0.0, %v1648
      %v1650 = vpop.f32.mrb[0].mxu0
      %1651 = vmatprep.mubr.f32.mxu0 0.0
      %1652 = vmatmul.mubr.f32.gmra.mrb[0].mxu0 %v1558
      %v1653 = vpop.f32.mrb[0].mxu0
      %v1654 = vadd.f32 0.0, %v1653
      %v1655 = vpop.f32.mrb[0].mxu0
      %1656 = vmatprep.mubr.f32.mxu0 0.0
      %1657 = vmatmul.mubr.f32.gmra.mrb[0].mxu0 %v1561
      %v1658 = vpop.f32.mrb[0].mxu0
      %v1659 = vadd.f32 0.0, %v1658
      %v1660 = vpop.f32.mrb[0].mxu0
      %1661 = vmatprep.mubr.f32.mxu0 0.0
      %1662 = vmatmul.mubr.f32.gmra.mrb[0].mxu0 %v1564
      %v1663 = vpop.f32.mrb[0].mxu0
      %v1664 = vadd.f32 0.0, %v1663
      %v1665 = vpop.f32.mrb[0].mxu0
      %1666 = vmatprep.mubr.f32.mxu0 0.0
      %1667 = vmatmul.mubr.f32.gmra.mrb[0].mxu0 %v1567
      %v1668 = vpop.f32.mrb[0].mxu0
      %v1669 = vadd.f32 0.0, %v1668
      %v1670 = vpop.f32.mrb[0].mxu0
      %1671 = vmatprep.mubr.f32.mxu0 0.0
      %1672 = vmatmul.mubr.f32.gmra.mrb[0].mxu0 %v1570
      %v1673 = vpop.f32.mrb[0].mxu0
      %v1674 = vadd.f32 0.0, %v1673
      %v1675 = vpop.f32.mrb[0].mxu0
      %1676 = vdwg.mxu0
      %v1677 = vld [vmem:[#allocation3] sm:$0xff]
      %v1678 = vld [vmem:[#allocation3 + $0x8] sm:$0xff]
      %v1679 = vld [vmem:[#allocation3 + $0x10] sm:$0xff]
      %v1680 = vld [vmem:[#allocation3 + $0x18] sm:$0xff]
      %v1681 = vld [vmem:[#allocation3 + $0x20] sm:$0xff]
      %v1682 = vld [vmem:[#allocation3 + $0x28] sm:$0xff]
      %v1683 = vld [vmem:[#allocation3 + $0x30] sm:$0xff]
      %v1684 = vld [vmem:[#allocation3 + $0x38] sm:$0xff]
      %v1685 = vadd.f32 %v1677, %v1639
      %v1686 = vadd.f32 %v1678, %v1644
      %v1687 = vadd.f32 %v1679, %v1649
      %v1688 = vadd.f32 %v1680, %v1654
      %v1689 = vadd.f32 %v1681, %v1659
      %v1690 = vadd.f32 %v1682, %v1664
      %v1691 = vadd.f32 %v1683, %v1669
      %v1692 = vadd.f32 %v1684, %v1674
      %1693 = vst.msk [vmem:[#allocation3] sm:$0xff] %vm348, %v1685
      %1694 = vst.msk [vmem:[#allocation3 + $0x8] sm:$0xff] %vm348, %v1686
      %1695 = vst.msk [vmem:[#allocation3 + $0x10] sm:$0xff] %vm348, %v1687
      %1696 = vst.msk [vmem:[#allocation3 + $0x18] sm:$0xff] %vm348, %v1688
      %1697 = vst.msk [vmem:[#allocation3 + $0x20] sm:$0xff] %vm348, %v1689
      %1698 = vst.msk [vmem:[#allocation3 + $0x28] sm:$0xff] %vm348, %v1690
      %1699 = vst.msk [vmem:[#allocation3 + $0x30] sm:$0xff] %vm348, %v1691
      %1700 = vst.msk [vmem:[#allocation3 + $0x38] sm:$0xff] %vm348, %v1692
      %s1701 = scalar_lea.vmem [#allocation2], 176
      %v1702 = vld [vmem:[%s1701] sm:$0xff]
      %v1703 = vld [vmem:[%s1701 + $0x8] sm:$0xff]
      %v1704 = vld [vmem:[%s1701 + $0x10] sm:$0xff]
      %v1705 = vld [vmem:[%s1701 + $0x18] sm:$0xff]
      %v1706 = vld [vmem:[%s1701 + $0x20] sm:$0xff]
      %v1707 = vld [vmem:[%s1701 + $0x28] sm:$0xff]
      %v1708 = vld [vmem:[%s1701 + $0x30] sm:$0xff]
      %v1709 = vld [vmem:[%s1701 + $0x38] sm:$0xff]
      %s1710 = scalar_lea.vmem %s3, 64
      %v1711 = vld [vmem:[%s1710] sm:$0xff]
      %v1713 = vsel %vm348, %v1702, 0
      %v1716 = vsel %vm348, %v1703, 0
      %v1719 = vsel %vm348, %v1704, 0
      %v1722 = vsel %vm348, %v1705, 0
      %v1725 = vsel %vm348, %v1706, 0
      %v1728 = vsel %vm348, %v1707, 0
      %v1731 = vsel %vm348, %v1708, 0
      %v1734 = vsel %vm348, %v1709, 0
      %1736 = vmatprep.subr.mxu0 0.0
      %1737 = vmatpush1.msra.mxu0 %v1711
      %1738 = vmatprep.subr.mxu0 0.0
      %1739 = vmatpush1.msra.mxu0 0.0
      %1740 = vmatprep.subr.mxu0 0.0
      %1741 = vmatpush1.msra.mxu0 0.0
      %1742 = vmatprep.subr.mxu0 0.0
      %1743 = vmatpush1.msra.mxu0 0.0
      %1744 = vmatprep.subr.mxu0 0.0
      %1745 = vmatpush1.msra.mxu0 0.0
      %1746 = vmatprep.subr.mxu0 0.0
      %1747 = vmatpush1.msra.mxu0 0.0
      %1748 = vmatprep.subr.mxu0 0.0
      %1749 = vmatpush1.msra.mxu0 0.0
      %1750 = vmatprep.subr.mxu0 0.0
      %1751 = vmatpush1.msra.mxu0 0.0
      %1752 = vmatprep.subr.mxu0 0.0
      %1753 = vmatpush1.msra.mxu0 0.0
      %1754 = vmatprep.subr.mxu0 0.0
      %1755 = vmatpush1.msra.mxu0 0.0
      %1756 = vmatprep.subr.mxu0 0.0
      %1757 = vmatpush1.msra.mxu0 0.0
      %1758 = vmatprep.subr.mxu0 0.0
      %1759 = vmatpush1.msra.mxu0 0.0
      %1760 = vmatprep.subr.mxu0 0.0
      %1761 = vmatpush1.msra.mxu0 0.0
      %1762 = vmatprep.subr.mxu0 0.0
      %1763 = vmatpush1.msra.mxu0 0.0
      %1764 = vmatprep.subr.mxu0 0.0
      %1765 = vmatpush1.msra.mxu0 0.0
      %1766 = vmatprep.subr.mxu0 0.0
      %1767 = vmatpush1.msra.mxu0 0.0
      %1768 = vmatprep.subr.mxu0 0.0
      %1769 = vmatpush1.msra.mxu0 0.0
      %1770 = vmatprep.subr.mxu0 0.0
      %1771 = vmatpush1.msra.mxu0 0.0
      %1772 = vmatprep.subr.mxu0 0.0
      %1773 = vmatpush1.msra.mxu0 0.0
      %1774 = vmatprep.subr.mxu0 0.0
      %1775 = vmatpush1.msra.mxu0 0.0
      %1776 = vmatprep.subr.mxu0 0.0
      %1777 = vmatpush1.msra.mxu0 0.0
      %1778 = vmatprep.subr.mxu0 0.0
      %1779 = vmatpush1.msra.mxu0 0.0
      %1780 = vmatprep.subr.mxu0 0.0
      %1781 = vmatpush1.msra.mxu0 0.0
      %1782 = vmatprep.subr.mxu0 0.0
      %1783 = vmatpush1.msra.mxu0 0.0
      %1784 = vmatprep.subr.mxu0 0.0
      %1785 = vmatpush1.msra.mxu0 0.0
      %1786 = vmatprep.subr.mxu0 0.0
      %1787 = vmatpush1.msra.mxu0 0.0
      %1788 = vmatprep.subr.mxu0 0.0
      %1789 = vmatpush1.msra.mxu0 0.0
      %1790 = vmatprep.subr.mxu0 0.0
      %1791 = vmatpush1.msra.mxu0 0.0
      %1792 = vmatprep.subr.mxu0 0.0
      %1793 = vmatpush1.msra.mxu0 0.0
      %1794 = vmatprep.subr.mxu0 0.0
      %1795 = vmatpush1.msra.mxu0 0.0
      %1796 = vmatprep.subr.mxu0 0.0
      %1797 = vmatpush1.msra.mxu0 0.0
      %1798 = vmatprep.subr.mxu0 0.0
      %1799 = vmatpush1.msra.mxu0 0.0
      %1800 = vmatprep.mubr.f32.mxu0 0.0
      %1801 = vmatmul.mubr.f32.gmra.mrb[0].mxu0 %v1713
      %v1802 = vpop.f32.mrb[0].mxu0
      %v1803 = vadd.f32 0.0, %v1802
      %v1804 = vpop.f32.mrb[0].mxu0
      %1805 = vmatprep.mubr.f32.mxu0 0.0
      %1806 = vmatmul.mubr.f32.gmra.mrb[0].mxu0 %v1716
      %v1807 = vpop.f32.mrb[0].mxu0
      %v1808 = vadd.f32 0.0, %v1807
      %v1809 = vpop.f32.mrb[0].mxu0
      %1810 = vmatprep.mubr.f32.mxu0 0.0
      %1811 = vmatmul.mubr.f32.gmra.mrb[0].mxu0 %v1719
      %v1812 = vpop.f32.mrb[0].mxu0
      %v1813 = vadd.f32 0.0, %v1812
      %v1814 = vpop.f32.mrb[0].mxu0
      %1815 = vmatprep.mubr.f32.mxu0 0.0
      %1816 = vmatmul.mubr.f32.gmra.mrb[0].mxu0 %v1722
      %v1817 = vpop.f32.mrb[0].mxu0
      %v1818 = vadd.f32 0.0, %v1817
      %v1819 = vpop.f32.mrb[0].mxu0
      %1820 = vmatprep.mubr.f32.mxu0 0.0
      %1821 = vmatmul.mubr.f32.gmra.mrb[0].mxu0 %v1725
      %v1822 = vpop.f32.mrb[0].mxu0
      %v1823 = vadd.f32 0.0, %v1822
      %v1824 = vpop.f32.mrb[0].mxu0
      %1825 = vmatprep.mubr.f32.mxu0 0.0
      %1826 = vmatmul.mubr.f32.gmra.mrb[0].mxu0 %v1728
      %v1827 = vpop.f32.mrb[0].mxu0
      %v1828 = vadd.f32 0.0, %v1827
      %v1829 = vpop.f32.mrb[0].mxu0
      %1830 = vmatprep.mubr.f32.mxu0 0.0
      %1831 = vmatmul.mubr.f32.gmra.mrb[0].mxu0 %v1731
      %v1832 = vpop.f32.mrb[0].mxu0
      %v1833 = vadd.f32 0.0, %v1832
      %v1834 = vpop.f32.mrb[0].mxu0
      %1835 = vmatprep.mubr.f32.mxu0 0.0
      %1836 = vmatmul.mubr.f32.gmra.mrb[0].mxu0 %v1734
      %v1837 = vpop.f32.mrb[0].mxu0
      %v1838 = vadd.f32 0.0, %v1837
      %v1839 = vpop.f32.mrb[0].mxu0
      %1840 = vdwg.mxu0
      %v1841 = vld [vmem:[#allocation3] sm:$0xff]
      %v1842 = vld [vmem:[#allocation3 + $0x8] sm:$0xff]
      %v1843 = vld [vmem:[#allocation3 + $0x10] sm:$0xff]
      %v1844 = vld [vmem:[#allocation3 + $0x18] sm:$0xff]
      %v1845 = vld [vmem:[#allocation3 + $0x20] sm:$0xff]
      %v1846 = vld [vmem:[#allocation3 + $0x28] sm:$0xff]
      %v1847 = vld [vmem:[#allocation3 + $0x30] sm:$0xff]
      %v1848 = vld [vmem:[#allocation3 + $0x38] sm:$0xff]
      %v1849 = vadd.f32 %v1841, %v1803
      %v1850 = vadd.f32 %v1842, %v1808
      %v1851 = vadd.f32 %v1843, %v1813
      %v1852 = vadd.f32 %v1844, %v1818
      %v1853 = vadd.f32 %v1845, %v1823
      %v1854 = vadd.f32 %v1846, %v1828
      %v1855 = vadd.f32 %v1847, %v1833
      %v1856 = vadd.f32 %v1848, %v1838
      %1857 = vst.msk [vmem:[#allocation3] sm:$0xff] %vm348, %v1849
      %1858 = vst.msk [vmem:[#allocation3 + $0x8] sm:$0xff] %vm348, %v1850
      %1859 = vst.msk [vmem:[#allocation3 + $0x10] sm:$0xff] %vm348, %v1851
      %1860 = vst.msk [vmem:[#allocation3 + $0x18] sm:$0xff] %vm348, %v1852
      %1861 = vst.msk [vmem:[#allocation3 + $0x20] sm:$0xff] %vm348, %v1853
      %1862 = vst.msk [vmem:[#allocation3 + $0x28] sm:$0xff] %vm348, %v1854
      %1863 = vst.msk [vmem:[#allocation3 + $0x30] sm:$0xff] %vm348, %v1855
      %1864 = vst.msk [vmem:[#allocation3 + $0x38] sm:$0xff] %vm348, %v1856
      %v1865 = vld [vmem:[#allocation3] sm:$0xff]
      %v1866 = vld [vmem:[#allocation3 + $0x8] sm:$0xff]
      %v1867 = vld [vmem:[#allocation3 + $0x10] sm:$0xff]
      %v1868 = vld [vmem:[#allocation3 + $0x18] sm:$0xff]
      %v1869 = vld [vmem:[#allocation3 + $0x20] sm:$0xff]
      %v1870 = vld [vmem:[#allocation3 + $0x28] sm:$0xff]
      %v1871 = vld [vmem:[#allocation3 + $0x30] sm:$0xff]
      %v1872 = vld [vmem:[#allocation3 + $0x38] sm:$0xff]
      %1873 = vst.msk [vmem:[%s262] sm:$0xff] %vm348, %v1865
      %1874 = vst.msk [vmem:[%s262 + $0x8] sm:$0xff] %vm348, %v1866
      %1875 = vst.msk [vmem:[%s262 + $0x10] sm:$0xff] %vm348, %v1867
      %1876 = vst.msk [vmem:[%s262 + $0x18] sm:$0xff] %vm348, %v1868
      %1877 = vst.msk [vmem:[%s262 + $0x20] sm:$0xff] %vm348, %v1869
      %1878 = vst.msk [vmem:[%s262 + $0x28] sm:$0xff] %vm348, %v1870
      %1879 = vst.msk [vmem:[%s262 + $0x30] sm:$0xff] %vm348, %v1871
      %1880 = vst.msk [vmem:[%s262 + $0x38] sm:$0xff] %vm348, %v1872
      %v1881 = vsel %vm348, %v1865, 0.0
      %v1882 = vsel %vm348, %v1866, 0.0
      %v1883 = vadd.f32 %v1881, %v1882
      %v1884 = vsel %vm348, %v1867, 0.0
      %v1885 = vadd.f32 %v1883, %v1884
      %v1886 = vsel %vm348, %v1868, 0.0
      %v1887 = vadd.f32 %v1885, %v1886
      %v1888 = vsel %vm348, %v1869, 0.0
      %v1889 = vadd.f32 %v1887, %v1888
      %v1890 = vsel %vm348, %v1870, 0.0
      %v1891 = vadd.f32 %v1889, %v1890
      %v1892 = vsel %vm348, %v1871, 0.0
      %v1893 = vadd.f32 %v1891, %v1892
      %v1894 = vsel %vm348, %v1872, 0.0
      %v1895 = vadd.f32 %v1893, %v1894
      %v1896 = vrot.slane %v1895, 4
      %v1897 = vadd.f32 %v1895, %v1896
      %v1898 = vrot.slane %v1897, 2
      %v1899 = vadd.f32 %v1897, %v1898
      %v1900 = vrot.slane %v1899, 1
      %v1901 = vadd.f32 %v1899, %v1900
      %vm1902 = vcmask 57344
      %1903 = vst.msk [vmem:[%s265] sm:$0x1] %vm1902, %v1901
      %v1904 = vmul.f32 %v1865, %v1865
      %v1905 = vmul.f32 %v1866, %v1866
      %v1906 = vmul.f32 %v1867, %v1867
      %v1907 = vmul.f32 %v1868, %v1868
      %v1908 = vmul.f32 %v1869, %v1869
      %v1909 = vmul.f32 %v1870, %v1870
      %v1910 = vmul.f32 %v1871, %v1871
      %v1911 = vmul.f32 %v1872, %v1872
      %v1912 = vsel %vm348, %v1904, 0.0
      %v1913 = vsel %vm348, %v1905, 0.0
      %v1914 = vadd.f32 %v1912, %v1913
      %v1915 = vsel %vm348, %v1906, 0.0
      %v1916 = vadd.f32 %v1914, %v1915
      %v1917 = vsel %vm348, %v1907, 0.0
      %v1918 = vadd.f32 %v1916, %v1917
      %v1919 = vsel %vm348, %v1908, 0.0
      %v1920 = vadd.f32 %v1918, %v1919
      %v1921 = vsel %vm348, %v1909, 0.0
      %v1922 = vadd.f32 %v1920, %v1921
      %v1923 = vsel %vm348, %v1910, 0.0
      %v1924 = vadd.f32 %v1922, %v1923
      %v1925 = vsel %vm348, %v1911, 0.0
      %v1926 = vadd.f32 %v1924, %v1925
      %v1927 = vrot.slane %v1926, 4
      %v1928 = vadd.f32 %v1926, %v1927
      %v1929 = vrot.slane %v1928, 2
      %v1930 = vadd.f32 %v1928, %v1929
      %v1931 = vrot.slane %v1930, 1
      %v1932 = vadd.f32 %v1930, %v1931
      %1933 = vst.msk [vmem:[%s268] sm:$0x1] %vm1902, %v1932
      %p1934 = scmp.lt.s32.totalorder %s18, 1
      %s1935 = scalar_select %p1934, %s18, 1
      %s1936 = smul.addr %s1935, 8
      %s1937 = smul.addr %s1936, 8
      %s1938 = scalar_lea.vmem %s4, %s1937
      %p1939 = scmp.lt.s32.totalorder %s18, 1
      %s1940 = scalar_select %p1939, %s18, 1
      %s1941 = scalar_lea.vmem %s5, %s1940
      %p1942 = scmp.lt.s32.totalorder %s18, 1
      %s1943 = scalar_select %p1942, %s18, 1
      %s1944 = scalar_lea.vmem %s6, %s1943
      // Predicated region
      $region37: #{resnext_block_forward.5} parent=35 // pred_check
        %p1945 = pneg %p125
      $region38: #{resnext_block_forward.5} parent=35 // pred_check_branch
        %1947 = sbr.rel (%p1945) target = $region40
      $region39: #{resnext_block_forward.5} parent=35 // pred_region
        _
      $region40: #{resnext_block_forward.5} parent=35 // pred_fallthru
        _
      // Predicated region
      $region41: #{resnext_block_forward.5} parent=35 // pred_check
        %p1948 = pneg %p151
      $region42: #{resnext_block_forward.5} parent=35 // pred_check_branch
        %1950 = sbr.rel (%p1948) target = $region44
      $region43: #{resnext_block_forward.5} parent=35 // pred_region
        _
      $region44: #{resnext_block_forward.5} parent=35 // pred_fallthru
        _
      // Predicated region
      $region45: #{resnext_block_forward.5} parent=35 // pred_check
        %p1951 = pneg %p177
      $region46: #{resnext_block_forward.5} parent=35 // pred_check_branch
        %1953 = sbr.rel (%p1951) target = $region48
      $region47: #{resnext_block_forward.5} parent=35 // pred_region
        _
      $region48: #{resnext_block_forward.5} parent=35 // pred_fallthru
        _
    $region36: #{resnext_block_forward.5} parent=5 // pred_fallthru
      _
    %p1954 = scmp.le.s32.totalorder 2, %s13
    // Predicated region
    $region49: #{resnext_block_forward.5} parent=5 // pred_check
      %p1955 = pneg %p1954
    $region50: #{resnext_block_forward.5} parent=5 // pred_check_branch
      %1957 = sbr.rel (%p1955) target = $region52
    $region51: #{resnext_block_forward.5} parent=5 // pred_region
      %s1958 = ssub.s32 %s13, 2
      // Predicated region
      $region53: #{resnext_block_forward.5} parent=51 // pred_check
        %p1959 = pneg %p131
      $region54: #{resnext_block_forward.5} parent=51 // pred_check_branch
        %1961 = sbr.rel (%p1959) target = $region56
      $region55: #{resnext_block_forward.5} parent=51 // pred_region
        %p1962 = scmp.lt.s32.totalorder %s19, 1
        %s1963 = scalar_select %p1962, %s19, 1
        %s1964 = smul.addr %s1963, 8
        %s1965 = smul.addr %s1964, 8
        %s1966 = scalar_lea.vmem %s4, %s1965
      $region56: #{resnext_block_forward.5} parent=51 // pred_fallthru
        _
      // Predicated region
      $region57: #{resnext_block_forward.5} parent=51 // pred_check
        %p1967 = pneg %p157
      $region58: #{resnext_block_forward.5} parent=51 // pred_check_branch
        %1969 = sbr.rel (%p1967) target = $region60
      $region59: #{resnext_block_forward.5} parent=51 // pred_region
        %p1970 = scmp.lt.s32.totalorder %s19, 1
        %s1971 = scalar_select %p1970, %s19, 1
        %s1972 = scalar_lea.vmem %s5, %s1971
      $region60: #{resnext_block_forward.5} parent=51 // pred_fallthru
        _
      // Predicated region
      $region61: #{resnext_block_forward.5} parent=51 // pred_check
        %p1973 = pneg %p183
      $region62: #{resnext_block_forward.5} parent=51 // pred_check_branch
        %1975 = sbr.rel (%p1973) target = $region64
      $region63: #{resnext_block_forward.5} parent=51 // pred_region
        %p1976 = scmp.lt.s32.totalorder %s19, 1
        %s1977 = scalar_select %p1976, %s19, 1
        %s1978 = scalar_lea.vmem %s6, %s1977
      $region64: #{resnext_block_forward.5} parent=51 // pred_fallthru
        _
    $region52: #{resnext_block_forward.5} parent=5 // pred_fallthru
      _
  $region6: #{resnext_block_forward.5} parent=0 // loop_footer
    %s17 = sadd.s32 1, %s13
  $region7: #{resnext_block_forward.5} parent=0 // loop_footer_branch
    %12 = sbr.rel target = $region3
  $region8: #{resnext_block_forward.5} parent=0 // loop_exit
    _

</llo_original>
